<compile_context>
chip_gen: v7x
topology: tpu7x:2x2x1
jax: 0.10.0
libtpu: 0.0.40
codegen_flags: <defaults>
</compile_context>

<pallas_src>
import math

import jax
import jax.numpy as jnp
from jax import lax
from jax.experimental import pallas as pl
from jax.experimental.pallas import tpu as pltpu

# ---------------- config (mirrors MouthMotionNetwork.__init__) ----------------
AUDIO_IN_DIM = 29            # args.audio_extractor == 'deepspeech'
AUDIO_DIM = 32
SEQ_LEN = 8
WIN_SIZE = 16
NUM_LEVELS = 12
LEVEL_DIM = 1
BASE_RES = 64
LOG2_HASHMAP = 17
TABLE_SIZE = 2 ** LOG2_HASHMAP
BOUND = 0.15
DESIRED_RES = 384 * BOUND
EMBEDDING_DIM = 32           # embedding_gs == True
IN_DIM_X = 3 * NUM_LEVELS * LEVEL_DIM + EMBEDDING_DIM   # 68
HIDDEN = 32
MLP_IN = IN_DIM_X + AUDIO_DIM                            # 100 (individual_dim = 0)
OUT_DIM = 3

# fused sigma+jaw MLP layout (block-diagonal hidden layers)
FUSED_H = 2 * HIDDEN          # 64
FUSED_OUT = 2 * OUT_DIM       # 6 : [d_xyz(3) | jaw(3)]
SLAB_W1 = 0                   # rows [  0,  64): block-diag layer-1  (64, 64)
SLAB_W2 = FUSED_H             # rows [ 64, 128): block-diag layer-2  (64, 64) lane-padded
SLAB_W0 = 2 * FUSED_H         # rows [128, 196): layer-0 rows for enc_x (68, 64)
SLAB_ROWS = 2 * FUSED_H + IN_DIM_X   # 196  (all offsets 8-aligned)

MAX_TN = 1024                 # max point tile rows (multiple of 8)


def _round_up(v, m):
    return ((v + m - 1) // m) * m


# =============================== Pallas kernels ===============================
def _leaky(v):
    # LeakyReLU(negative_slope=0.02)
    return jnp.where(v >= 0, v, 0.02 * v)


def audio_kernel(a_ref,
                 c1w, c1b, c2w, c2b, c3w, c3b, c4w, c4b,
                 f1w, f1b, f2w, f2b,
                 t1w, t1b, t2w, t2b, t3w, t3b, t4w, t4b, t5w, t5b,
                 lw, lb,
                 out_ref):
    # a_ref: (L=16, B=8, Cin=29) time-major f32.

    def conv_s2(x, w_ref, b_ref):
        """Conv1d(k=3, stride=2, pad=1) + LeakyReLU on time-major x:(L,B,Cin)."""
        L, B, Cin = x.shape
        T = L // 2
        w0, w1, w2 = w_ref[0], w_ref[1], w_ref[2]            # (Cin, Cout)
        # layout-free regroup: row (t, r) of (T, 2B, Cin) is time 2t + r//B
        xr = x.reshape(T, 2 * B, Cin)
        even = xr[:, :B, :]                                   # x[2t]   (T, B, Cin)
        odd = xr[:, B:, :]                                    # x[2t+1] (T, B, Cin)
        if T > 1:                                             # x[2t-1] (left pad = 0)
            prev = jnp.concatenate(
                [jnp.zeros((1, B, Cin), jnp.float32), odd[:T - 1]], axis=0)
        else:
            prev = jnp.zeros((1, B, Cin), jnp.float32)

        def flat(v):                                          # (T,B,Cin) -> (T*B,Cin)
            return v.reshape(T * B, Cin)

        out = (jnp.dot(flat(prev), w0, preferred_element_type=jnp.float32)
               + jnp.dot(flat(even), w1, preferred_element_type=jnp.float32)
               + jnp.dot(flat(odd), w2, preferred_element_type=jnp.float32)
               + b_ref[...])                                  # (T*B, Cout)
        cout = out.shape[-1]
        return _leaky(out).reshape(T, B, cout)

    def conv_s1(y, w_ref, b_ref):
        """Conv1d(k=3, stride=1, pad=1) + LeakyReLU on y:(T, C) (seq on rows)."""
        T, C = y.shape
        w0, w1, w2 = w_ref[0], w_ref[1], w_ref[2]
        zero = jnp.zeros((1, C), jnp.float32)
        prev = jnp.concatenate([zero, y[:T - 1]], axis=0)     # y[t-1]
        nxt = jnp.concatenate([y[1:], zero], axis=0)          # y[t+1]
        out = (jnp.dot(prev, w0, preferred_element_type=jnp.float32)
               + jnp.dot(y, w1, preferred_element_type=jnp.float32)
               + jnp.dot(nxt, w2, preferred_element_type=jnp.float32)
               + b_ref[...])
        return _leaky(out)

    # ---- AudioNet.encoder_conv : 4x (Conv1d stride 2 + LeakyReLU) ----
    x = a_ref[...]                                            # (16, 8, 29)
    x = conv_s2(x, c1w, c1b)                                  # (8, 8, 32)
    x = conv_s2(x, c2w, c2b)                                  # (4, 8, 32)
    x = conv_s2(x, c3w, c3b)                                  # (2, 8, 64)
    x = conv_s2(x, c4w, c4b)                                  # (1, 8, 64)
    x = x.reshape(SEQ_LEN, 64)                                # squeeze(-1) -> (8, 64)

    # ---- AudioNet.encoder_fc1 ----
    x = _leaky(jnp.dot(x, f1w[...], preferred_element_type=jnp.float32) + f1b[...])
    enc = jnp.dot(x, f2w[...], preferred_element_type=jnp.float32) + f2b[...]   # (8, 32)

    # ---- AudioAttNet : 5x (Conv1d stride 1 + LeakyReLU) on the (seq, C) code ----
    y = conv_s1(enc, t1w, t1b)                                # (8, 16)
    y = conv_s1(y, t2w, t2b)                                  # (8, 8)
    y = conv_s1(y, t3w, t3b)                                  # (8, 4)
    y = conv_s1(y, t4w, t4b)                                  # (8, 2)
    y = conv_s1(y, t5w, t5b)                                  # (8, 1)

    # attentionNet: Linear(seq, seq) + Softmax over the sequence (column form)
    logits = jnp.dot(lw[...], y, preferred_element_type=jnp.float32) + lb[...]   # (8, 1)
    m = jnp.max(logits, axis=0, keepdims=True)
    e = jnp.exp(logits - m)
    att = e / jnp.sum(e, axis=0, keepdims=True)               # (8, 1)

    # sum_t att[t] * enc_a[t]  ->  (1, 32)
    out_ref[...] = jnp.sum(att * enc, axis=0, keepdims=True)


def point_mlp_kernel(encx_ref, bias0_ref, w_ref, out_ref):
    """Fused sigma_net + jaw_net (block-diagonal), bf16 MXU with f32 accum."""
    w1 = w_ref[SLAB_W1:SLAB_W1 + FUSED_H, :]                  # (64, 64) bf16
    w2 = w_ref[SLAB_W2:SLAB_W2 + FUSED_H, :FUSED_OUT]         # (64, 6)  bf16
    w0x = w_ref[SLAB_W0:SLAB_W0 + IN_DIM_X, :]                # (68, 64) bf16

    # layer 0: enc_x part + precomputed audio bias (replaces broadcast+concat)
    h = jnp.dot(encx_ref[...], w0x,
                preferred_element_type=jnp.float32) + bias0_ref[...]   # (TN, 64) f32
    h = jnp.maximum(h, 0.0).astype(jnp.bfloat16)
    # layer 1 (block-diagonal)
    h = jnp.maximum(jnp.dot(h, w1, preferred_element_type=jnp.float32), 0.0)
    # layer 2 (block-diagonal, d_xyz scaling already folded into the weights)
    out_ref[...] = jnp.dot(h.astype(jnp.bfloat16), w2,
                           preferred_element_type=jnp.float32)          # (TN, 6)


# ================================ JAX wrappers ================================
def encode_audio(params, a):
    """a: (seq=8, C_in=29, T>=16) float32, PyTorch NCL layout -> (1, 32) code."""
    half_w = WIN_SIZE // 2
    a = a[:, :, 8 - half_w: 8 + half_w]                       # (8, 29, 16)
    a_tm = jnp.transpose(a, (2, 0, 1)).astype(jnp.float32)    # time-major (16, 8, 29)

    w = params['audio']
    args = (a_tm,
            w['c1w'], w['c1b'], w['c2w'], w['c2b'],
            w['c3w'], w['c3b'], w['c4w'], w['c4b'],
            w['f1w'], w['f1b'], w['f2w'], w['f2b'],
            w['t1w'], w['t1b'], w['t2w'], w['t2b'], w['t3w'], w['t3b'],
            w['t4w'], w['t4b'], w['t5w'], w['t5b'],
            w['lw'], w['lb'])
    vmem = pl.BlockSpec(memory_space=pltpu.MemorySpace.VMEM)
    return pl.pallas_call(
        audio_kernel,
        out_shape=jax.ShapeDtypeStruct((1, AUDIO_DIM), jnp.float32),
        in_specs=[vmem] * len(args),
        out_specs=vmem,
    )(*args)


def _pack_point_weights(params):
    """Fuse sigma/jaw MLPs into one block-diagonal chain; pack into one slab."""
    s, j = params['sigma'], params['jaw']
    # layer 0 fused along the output dim; split enc_x rows / audio rows
    w0 = jnp.concatenate([s['w0'], j['w0']], axis=1)          # (100, 64)
    w0_x, w0_a = w0[:IN_DIM_X], w0[IN_DIM_X:]                 # (68,64), (32,64)
    # layer 1: block-diagonal
    z = jnp.zeros((HIDDEN, HIDDEN), jnp.float32)
    w1 = jnp.block([[s['w1'], z], [z, j['w1']]])              # (64, 64)
    # layer 2: block-diagonal, with d_xyz scaling folded into the sigma columns
    scale = jnp.array([0.01 / 5.0, 0.01, 0.01 / 5.0], jnp.float32)
    z3 = jnp.zeros((HIDDEN, OUT_DIM), jnp.float32)
    w2 = jnp.block([[s['w2'] * scale[None, :], z3], [z3, j['w2']]])     # (64, 6)
    w2p = jnp.pad(w2, ((0, 0), (0, FUSED_H - FUSED_OUT)))               # (64, 64)
    slab = jnp.concatenate([w1, w2p, w0_x], axis=0).astype(jnp.bfloat16)  # (196, 64)
    return slab, w0_a                                          # w0_a stays f32


def point_mlps(params, enc_x, enc_a):
    N = enc_x.shape[0]
    # biggest tile <= MAX_TN that still leaves >= 2 grid steps (v7x: 2 TCs)
    tn = min(MAX_TN, max(8, _round_up(pl.cdiv(N, 2), 8)))
    Np = _round_up(N, tn)
    if Np != N:
        enc_x = jnp.pad(enc_x, ((0, Np - N), (0, 0)))
    enc_x = enc_x.astype(jnp.bfloat16)

    w_slab, w0_audio = _pack_point_weights(params)
    bias0 = jnp.dot(enc_a, w0_audio)                          # (1, 64) f32, once

    out = pl.pallas_call(
        point_mlp_kernel,
        out_shape=jax.ShapeDtypeStruct((Np, FUSED_OUT), jnp.float32),
        grid=(Np // tn,),
        in_specs=[pl.BlockSpec((tn, IN_DIM_X), lambda i: (i, 0)),
                  pl.BlockSpec((1, FUSED_H), lambda i: (0, 0)),
                  pl.BlockSpec((SLAB_ROWS, FUSED_H), lambda i: (0, 0))],
        out_specs=pl.BlockSpec((tn, FUSED_OUT), lambda i: (i, 0)),
        compiler_params=pltpu.CompilerParams(dimension_semantics=("parallel",)),
    )(enc_x, bias0, w_slab)
    return out[:N, :OUT_DIM], out[:N, OUT_DIM:]


def hash_encode(coords2d, table, bound):
    """Multiresolution hash encoding for 2D coords (plain JAX glue).

    coords2d: (N, 2) in [-bound, bound]; table: (NUM_LEVELS, TABLE_SIZE, LEVEL_DIM).
    """
    x = (coords2d + bound) / (2.0 * bound)                    # normalize to [0, 1]
    per_level_scale = 2.0 ** (math.log2(DESIRED_RES / BASE_RES) / (NUM_LEVELS - 1))
    p0 = jnp.uint32(1)
    p1 = jnp.uint32(2654435761)
    feats = []
    for lvl in range(NUM_LEVELS):
        scale = BASE_RES * (per_level_scale ** lvl) - 1.0
        pos = x * scale + 0.5
        pos0 = jnp.floor(pos)
        frac = pos - pos0
        pos0u = pos0.astype(jnp.uint32)
        f = jnp.zeros((x.shape[0], LEVEL_DIM), jnp.float32)
        tbl = table[lvl]
        for dx in (0, 1):
            for dy in (0, 1):
                cx = pos0u[:, 0] + jnp.uint32(dx)
                cy = pos0u[:, 1] + jnp.uint32(dy)
                idx = ((cx * p0) ^ (cy * p1)) & jnp.uint32(TABLE_SIZE - 1)
                wx = frac[:, 0] if dx else (1.0 - frac[:, 0])
                wy = frac[:, 1] if dy else (1.0 - frac[:, 1])
                f = f + (wx * wy)[:, None] * tbl[idx]
        feats.append(f)
    return jnp.concatenate(feats, axis=-1)                    # (N, NUM_LEVELS*LEVEL_DIM)


def encode_x(params, x, bound):
    """x: (N, 3 + 32); split into xyz coords + gaussian embedding (embedding_gs)."""
    xyz, embedding = x[:, :3], x[:, 3:]
    xy = xyz[:, :2]                                           # x[:, :-1]
    yz = xyz[:, 1:3]                                          # x[:, 1:]
    xz = jnp.concatenate([xyz[:, :1], xyz[:, 2:3]], axis=-1)
    f_xy = hash_encode(xy, params['enc_xy'], bound)
    f_yz = hash_encode(yz, params['enc_yz'], bound)
    f_xz = hash_encode(xz, params['enc_xz'], bound)
    return jnp.concatenate([f_xy, f_yz, f_xz, embedding], axis=-1)   # (N, 68)


@jax.jit
def mouth_motion_forward(params, x, a):
    enc_x = encode_x(params, x, bound=BOUND)                  # (N, 68)
    enc_a = encode_audio(params, a)                           # (1, 32)  Pallas kernel
    d_xyz, jaw_exp = point_mlps(params, enc_x, enc_a)         # Pallas kernel
    return {'d_xyz': d_xyz, 'jaw_exp': jaw_exp}


# ================================ parameter init ================================
def init_params(key):
    keys = iter(jax.random.split(key, 64))

    def lin(shape, fan_in):
        b = 1.0 / math.sqrt(fan_in)
        return jax.random.uniform(next(keys), shape, jnp.float32, -b, b)

    audio = {
        # conv weights stored (K=3, Cin, Cout); linear weights stored (in, out)
        'c1w': lin((3, AUDIO_IN_DIM, 32), 3 * AUDIO_IN_DIM), 'c1b': lin((1, 32), 3 * AUDIO_IN_DIM),
        'c2w': lin((3, 32, 32), 3 * 32), 'c2b': lin((1, 32), 3 * 32),
        'c3w': lin((3, 32, 64), 3 * 32), 'c3b': lin((1, 64), 3 * 32),
        'c4w': lin((3, 64, 64), 3 * 64), 'c4b': lin((1, 64), 3 * 64),
        'f1w': lin((64, 64), 64), 'f1b': lin((1, 64), 64),
        'f2w': lin((64, AUDIO_DIM), 64), 'f2b': lin((1, AUDIO_DIM), 64),
        't1w': lin((3, AUDIO_DIM, 16), 3 * AUDIO_DIM), 't1b': lin((1, 16), 3 * AUDIO_DIM),
        't2w': lin((3, 16, 8), 3 * 16), 't2b': lin((1, 8), 3 * 16),
        't3w': lin((3, 8, 4), 3 * 8), 't3b': lin((1, 4), 3 * 8),
        't4w': lin((3, 4, 2), 3 * 4), 't4b': lin((1, 2), 3 * 4),
        't5w': lin((3, 2, 1), 3 * 2), 't5b': lin((1, 1), 3 * 2),
        # attentionNet Linear applied as lw @ y_col + lb (column form)
        'lw': lin((SEQ_LEN, SEQ_LEN), SEQ_LEN), 'lb': lin((SEQ_LEN, 1), SEQ_LEN),
    }

    def mlp3():
        return {'w0': lin((MLP_IN, HIDDEN), MLP_IN),
                'w1': lin((HIDDEN, HIDDEN), HIDDEN),
                'w2': lin((HIDDEN, OUT_DIM), HIDDEN)}

    def table():
        return jax.random.uniform(next(keys), (NUM_LEVELS, TABLE_SIZE, LEVEL_DIM),
                                  jnp.float32, -1e-4, 1e-4)

    # NOTE: aud_ch_att_net exists in __init__ but is unused in forward -> omitted.
    return {'audio': audio, 'sigma': mlp3(), 'jaw': mlp3(),
            'enc_xy': table(), 'enc_yz': table(), 'enc_xz': table()}


# ==================================== main ====================================
if __name__ == "__main__":
    key = jax.random.PRNGKey(0)
    pkey, ckey, ekey, akey = jax.random.split(key, 4)

    params = init_params(pkey)

    N = 256
    coords = jax.random.uniform(ckey, (N, 3), jnp.float32, -0.1, 0.1)     # within bound
    embed = 0.1 * jax.random.normal(ekey, (N, EMBEDDING_DIM), jnp.float32)
    x = jnp.concatenate([coords, embed], axis=-1)                          # (N, 35)

    # audio window: (seq_len, audio_in_dim, T) in PyTorch NCL layout
    a = jax.random.normal(akey, (SEQ_LEN, AUDIO_IN_DIM, 16), jnp.float32)

    out = mouth_motion_forward(params, x, a)
    out = jax.block_until_ready(out)

    assert out['d_xyz'].shape == (N, 3) and out['d_xyz'].dtype == jnp.float32
    assert out['jaw_exp'].shape == (N, 3) and out['jaw_exp'].dtype == jnp.float32
    assert bool(jnp.all(jnp.isfinite(out['d_xyz']))) and bool(jnp.all(jnp.isfinite(out['jaw_exp'])))
    print("KERNEL_OK")
</pallas_src>

<mosaic_0001>
module attributes {stable_mosaic.version = 11 : i64} {
  func.func @audio_kernel(%arg0: memref<16x8x29xf32, #tpu.memory_space<vmem>>, %arg1: memref<3x29x32xf32, #tpu.memory_space<vmem>>, %arg2: memref<1x32xf32, #tpu.memory_space<vmem>>, %arg3: memref<3x32x32xf32, #tpu.memory_space<vmem>>, %arg4: memref<1x32xf32, #tpu.memory_space<vmem>>, %arg5: memref<3x32x64xf32, #tpu.memory_space<vmem>>, %arg6: memref<1x64xf32, #tpu.memory_space<vmem>>, %arg7: memref<3x64x64xf32, #tpu.memory_space<vmem>>, %arg8: memref<1x64xf32, #tpu.memory_space<vmem>>, %arg9: memref<64x64xf32, #tpu.memory_space<vmem>>, %arg10: memref<1x64xf32, #tpu.memory_space<vmem>>, %arg11: memref<64x32xf32, #tpu.memory_space<vmem>>, %arg12: memref<1x32xf32, #tpu.memory_space<vmem>>, %arg13: memref<3x32x16xf32, #tpu.memory_space<vmem>>, %arg14: memref<1x16xf32, #tpu.memory_space<vmem>>, %arg15: memref<3x16x8xf32, #tpu.memory_space<vmem>>, %arg16: memref<1x8xf32, #tpu.memory_space<vmem>>, %arg17: memref<3x8x4xf32, #tpu.memory_space<vmem>>, %arg18: memref<1x4xf32, #tpu.memory_space<vmem>>, %arg19: memref<3x4x2xf32, #tpu.memory_space<vmem>>, %arg20: memref<1x2xf32, #tpu.memory_space<vmem>>, %arg21: memref<3x2x1xf32, #tpu.memory_space<vmem>>, %arg22: memref<1x1xf32, #tpu.memory_space<vmem>>, %arg23: memref<8x8xf32, #tpu.memory_space<vmem>>, %arg24: memref<8x1xf32, #tpu.memory_space<vmem>>, %arg25: memref<1x32xf32, #tpu.memory_space<vmem>>) attributes {dimension_semantics = [], scalar_prefetch = 0 : i64, scratch_operands = 0 : i64, tpu.core_type = #tpu.core_type<tc>} {
    %c0 = arith.constant 0 : index
    %c0_0 = arith.constant 0 : index
    %c0_1 = arith.constant 0 : index
    %0 = vector.load %arg0[%c0, %c0_0, %c0_1] : memref<16x8x29xf32, #tpu.memory_space<vmem>>, vector<16x8x29xf32>
    %c0_2 = arith.constant 0 : index
    %c0_3 = arith.constant 0 : index
    %c0_4 = arith.constant 0 : index
    %1 = vector.load %arg1[%c0_2, %c0_3, %c0_4] : memref<3x29x32xf32, #tpu.memory_space<vmem>>, vector<1x29x32xf32>
    %2 = vector.shape_cast %1 : vector<1x29x32xf32> to vector<29x32xf32>
    %c1 = arith.constant 1 : index
    %c0_5 = arith.constant 0 : index
    %c0_6 = arith.constant 0 : index
    %3 = vector.load %arg1[%c1, %c0_5, %c0_6] : memref<3x29x32xf32, #tpu.memory_space<vmem>>, vector<1x29x32xf32>
    %4 = vector.shape_cast %3 : vector<1x29x32xf32> to vector<29x32xf32>
    %c2 = arith.constant 2 : index
    %c0_7 = arith.constant 0 : index
    %c0_8 = arith.constant 0 : index
    %5 = vector.load %arg1[%c2, %c0_7, %c0_8] : memref<3x29x32xf32, #tpu.memory_space<vmem>>, vector<1x29x32xf32>
    %6 = vector.shape_cast %5 : vector<1x29x32xf32> to vector<29x32xf32>
    %7 = vector.shape_cast %0 : vector<16x8x29xf32> to vector<8x16x29xf32>
    %8 = vector.extract_strided_slice %7 {offsets = [0, 0, 0], sizes = [8, 8, 29], strides = [1, 1, 1]} : vector<8x16x29xf32> to vector<8x8x29xf32>
    %9 = vector.extract_strided_slice %7 {offsets = [0, 8, 0], sizes = [8, 8, 29], strides = [1, 1, 1]} : vector<8x16x29xf32> to vector<8x8x29xf32>
    %cst = arith.constant 0.000000e+00 : f32
    %10 = vector.broadcast %cst : f32 to vector<1x8x29xf32>
    %11 = vector.extract_strided_slice %9 {offsets = [0, 0, 0], sizes = [7, 8, 29], strides = [1, 1, 1]} : vector<8x8x29xf32> to vector<7x8x29xf32>
    %12 = tpu.concatenate %10, %11 in 0 : vector<1x8x29xf32>, vector<7x8x29xf32> -> vector<8x8x29xf32>
    %13 = vector.shape_cast %12 : vector<8x8x29xf32> to vector<64x29xf32>
    %cst_9 = arith.constant dense<0.000000e+00> : vector<64x32xf32>
    %14 = tpu.matmul %13, %2, %cst_9 {dimension_numbers = #tpu.dot_dimension_numbers<[1], [0], [0], [1], [0, 0, 1, 1], [], []>} : vector<64x29xf32>, vector<29x32xf32>, vector<64x32xf32> -> vector<64x32xf32>
    %15 = vector.shape_cast %8 : vector<8x8x29xf32> to vector<64x29xf32>
    %cst_10 = arith.constant dense<0.000000e+00> : vector<64x32xf32>
    %16 = tpu.matmul %15, %4, %cst_10 {dimension_numbers = #tpu.dot_dimension_numbers<[1], [0], [0], [1], [0, 0, 1, 1], [], []>} : vector<64x29xf32>, vector<29x32xf32>, vector<64x32xf32> -> vector<64x32xf32>
    %17 = arith.addf %14, %16 : vector<64x32xf32>
    %18 = vector.shape_cast %9 : vector<8x8x29xf32> to vector<64x29xf32>
    %cst_11 = arith.constant dense<0.000000e+00> : vector<64x32xf32>
    %19 = tpu.matmul %18, %6, %cst_11 {dimension_numbers = #tpu.dot_dimension_numbers<[1], [0], [0], [1], [0, 0, 1, 1], [], []>} : vector<64x29xf32>, vector<29x32xf32>, vector<64x32xf32> -> vector<64x32xf32>
    %20 = arith.addf %17, %19 : vector<64x32xf32>
    %c0_12 = arith.constant 0 : index
    %c0_13 = arith.constant 0 : index
    %21 = vector.load %arg2[%c0_12, %c0_13] : memref<1x32xf32, #tpu.memory_space<vmem>>, vector<1x32xf32>
    %22 = vector.broadcast %21 : vector<1x32xf32> to vector<64x32xf32>
    %23 = arith.addf %20, %22 : vector<64x32xf32>
    %cst_14 = arith.constant 0.000000e+00 : f32
    %24 = vector.broadcast %cst_14 : f32 to vector<64x32xf32>
    %25 = arith.cmpf oge, %23, %24 : vector<64x32xf32>
    %cst_15 = arith.constant 2.000000e-02 : f32
    %26 = vector.broadcast %cst_15 : f32 to vector<64x32xf32>
    %27 = arith.mulf %26, %23 : vector<64x32xf32>
    %28 = arith.select %25, %23, %27 : vector<64x32xi1>, vector<64x32xf32>
    %29 = vector.shape_cast %28 : vector<64x32xf32> to vector<8x8x32xf32>
    %c0_16 = arith.constant 0 : index
    %c0_17 = arith.constant 0 : index
    %c0_18 = arith.constant 0 : index
    %30 = vector.load %arg3[%c0_16, %c0_17, %c0_18] : memref<3x32x32xf32, #tpu.memory_space<vmem>>, vector<1x32x32xf32>
    %31 = vector.shape_cast %30 : vector<1x32x32xf32> to vector<32x32xf32>
    %c1_19 = arith.constant 1 : index
    %c0_20 = arith.constant 0 : index
    %c0_21 = arith.constant 0 : index
    %32 = vector.load %arg3[%c1_19, %c0_20, %c0_21] : memref<3x32x32xf32, #tpu.memory_space<vmem>>, vector<1x32x32xf32>
    %33 = vector.shape_cast %32 : vector<1x32x32xf32> to vector<32x32xf32>
    %c2_22 = arith.constant 2 : index
    %c0_23 = arith.constant 0 : index
    %c0_24 = arith.constant 0 : index
    %34 = vector.load %arg3[%c2_22, %c0_23, %c0_24] : memref<3x32x32xf32, #tpu.memory_space<vmem>>, vector<1x32x32xf32>
    %35 = vector.shape_cast %34 : vector<1x32x32xf32> to vector<32x32xf32>
    %36 = vector.shape_cast %29 : vector<8x8x32xf32> to vector<4x16x32xf32>
    %37 = vector.extract_strided_slice %36 {offsets = [0, 0, 0], sizes = [4, 8, 32], strides = [1, 1, 1]} : vector<4x16x32xf32> to vector<4x8x32xf32>
    %38 = vector.extract_strided_slice %36 {offsets = [0, 8, 0], sizes = [4, 8, 32], strides = [1, 1, 1]} : vector<4x16x32xf32> to vector<4x8x32xf32>
    %cst_25 = arith.constant 0.000000e+00 : f32
    %39 = vector.broadcast %cst_25 : f32 to vector<1x8x32xf32>
    %40 = vector.extract_strided_slice %38 {offsets = [0, 0, 0], sizes = [3, 8, 32], strides = [1, 1, 1]} : vector<4x8x32xf32> to vector<3x8x32xf32>
    %41 = tpu.concatenate %39, %40 in 0 : vector<1x8x32xf32>, vector<3x8x32xf32> -> vector<4x8x32xf32>
    %42 = vector.shape_cast %41 : vector<4x8x32xf32> to vector<32x32xf32>
    %cst_26 = arith.constant dense<0.000000e+00> : vector<32x32xf32>
    %43 = tpu.matmul %42, %31, %cst_26 {dimension_numbers = #tpu.dot_dimension_numbers<[1], [0], [0], [1], [0, 0, 1, 1], [], []>} : vector<32x32xf32>, vector<32x32xf32>, vector<32x32xf32> -> vector<32x32xf32>
    %44 = vector.shape_cast %37 : vector<4x8x32xf32> to vector<32x32xf32>
    %cst_27 = arith.constant dense<0.000000e+00> : vector<32x32xf32>
    %45 = tpu.matmul %44, %33, %cst_27 {dimension_numbers = #tpu.dot_dimension_numbers<[1], [0], [0], [1], [0, 0, 1, 1], [], []>} : vector<32x32xf32>, vector<32x32xf32>, vector<32x32xf32> -> vector<32x32xf32>
    %46 = arith.addf %43, %45 : vector<32x32xf32>
    %47 = vector.shape_cast %38 : vector<4x8x32xf32> to vector<32x32xf32>
    %cst_28 = arith.constant dense<0.000000e+00> : vector<32x32xf32>
    %48 = tpu.matmul %47, %35, %cst_28 {dimension_numbers = #tpu.dot_dimension_numbers<[1], [0], [0], [1], [0, 0, 1, 1], [], []>} : vector<32x32xf32>, vector<32x32xf32>, vector<32x32xf32> -> vector<32x32xf32>
    %49 = arith.addf %46, %48 : vector<32x32xf32>
    %c0_29 = arith.constant 0 : index
    %c0_30 = arith.constant 0 : index
    %50 = vector.load %arg4[%c0_29, %c0_30] : memref<1x32xf32, #tpu.memory_space<vmem>>, vector<1x32xf32>
    %51 = vector.broadcast %50 : vector<1x32xf32> to vector<32x32xf32>
    %52 = arith.addf %49, %51 : vector<32x32xf32>
    %cst_31 = arith.constant 0.000000e+00 : f32
    %53 = vector.broadcast %cst_31 : f32 to vector<32x32xf32>
    %54 = arith.cmpf oge, %52, %53 : vector<32x32xf32>
    %cst_32 = arith.constant 2.000000e-02 : f32
    %55 = vector.broadcast %cst_32 : f32 to vector<32x32xf32>
    %56 = arith.mulf %55, %52 : vector<32x32xf32>
    %57 = arith.select %54, %52, %56 : vector<32x32xi1>, vector<32x32xf32>
    %58 = vector.shape_cast %57 : vector<32x32xf32> to vector<4x8x32xf32>
    %c0_33 = arith.constant 0 : index
    %c0_34 = arith.constant 0 : index
    %c0_35 = arith.constant 0 : index
    %59 = vector.load %arg5[%c0_33, %c0_34, %c0_35] : memref<3x32x64xf32, #tpu.memory_space<vmem>>, vector<1x32x64xf32>
    %60 = vector.shape_cast %59 : vector<1x32x64xf32> to vector<32x64xf32>
    %c1_36 = arith.constant 1 : index
    %c0_37 = arith.constant 0 : index
    %c0_38 = arith.constant 0 : index
    %61 = vector.load %arg5[%c1_36, %c0_37, %c0_38] : memref<3x32x64xf32, #tpu.memory_space<vmem>>, vector<1x32x64xf32>
    %62 = vector.shape_cast %61 : vector<1x32x64xf32> to vector<32x64xf32>
    %c2_39 = arith.constant 2 : index
    %c0_40 = arith.constant 0 : index
    %c0_41 = arith.constant 0 : index
    %63 = vector.load %arg5[%c2_39, %c0_40, %c0_41] : memref<3x32x64xf32, #tpu.memory_space<vmem>>, vector<1x32x64xf32>
    %64 = vector.shape_cast %63 : vector<1x32x64xf32> to vector<32x64xf32>
    %65 = vector.shape_cast %58 : vector<4x8x32xf32> to vector<2x16x32xf32>
    %66 = vector.extract_strided_slice %65 {offsets = [0, 0, 0], sizes = [2, 8, 32], strides = [1, 1, 1]} : vector<2x16x32xf32> to vector<2x8x32xf32>
    %67 = vector.extract_strided_slice %65 {offsets = [0, 8, 0], sizes = [2, 8, 32], strides = [1, 1, 1]} : vector<2x16x32xf32> to vector<2x8x32xf32>
    %cst_42 = arith.constant 0.000000e+00 : f32
    %68 = vector.broadcast %cst_42 : f32 to vector<1x8x32xf32>
    %69 = vector.extract_strided_slice %67 {offsets = [0, 0, 0], sizes = [1, 8, 32], strides = [1, 1, 1]} : vector<2x8x32xf32> to vector<1x8x32xf32>
    %70 = tpu.concatenate %68, %69 in 0 : vector<1x8x32xf32>, vector<1x8x32xf32> -> vector<2x8x32xf32>
    %71 = vector.shape_cast %70 : vector<2x8x32xf32> to vector<16x32xf32>
    %cst_43 = arith.constant dense<0.000000e+00> : vector<16x64xf32>
    %72 = tpu.matmul %71, %60, %cst_43 {dimension_numbers = #tpu.dot_dimension_numbers<[1], [0], [0], [1], [0, 0, 1, 1], [], []>} : vector<16x32xf32>, vector<32x64xf32>, vector<16x64xf32> -> vector<16x64xf32>
    %73 = vector.shape_cast %66 : vector<2x8x32xf32> to vector<16x32xf32>
    %cst_44 = arith.constant dense<0.000000e+00> : vector<16x64xf32>
    %74 = tpu.matmul %73, %62, %cst_44 {dimension_numbers = #tpu.dot_dimension_numbers<[1], [0], [0], [1], [0, 0, 1, 1], [], []>} : vector<16x32xf32>, vector<32x64xf32>, vector<16x64xf32> -> vector<16x64xf32>
    %75 = arith.addf %72, %74 : vector<16x64xf32>
    %76 = vector.shape_cast %67 : vector<2x8x32xf32> to vector<16x32xf32>
    %cst_45 = arith.constant dense<0.000000e+00> : vector<16x64xf32>
    %77 = tpu.matmul %76, %64, %cst_45 {dimension_numbers = #tpu.dot_dimension_numbers<[1], [0], [0], [1], [0, 0, 1, 1], [], []>} : vector<16x32xf32>, vector<32x64xf32>, vector<16x64xf32> -> vector<16x64xf32>
    %78 = arith.addf %75, %77 : vector<16x64xf32>
    %c0_46 = arith.constant 0 : index
    %c0_47 = arith.constant 0 : index
    %79 = vector.load %arg6[%c0_46, %c0_47] : memref<1x64xf32, #tpu.memory_space<vmem>>, vector<1x64xf32>
    %80 = vector.broadcast %79 : vector<1x64xf32> to vector<16x64xf32>
    %81 = arith.addf %78, %80 : vector<16x64xf32>
    %cst_48 = arith.constant 0.000000e+00 : f32
    %82 = vector.broadcast %cst_48 : f32 to vector<16x64xf32>
    %83 = arith.cmpf oge, %81, %82 : vector<16x64xf32>
    %cst_49 = arith.constant 2.000000e-02 : f32
    %84 = vector.broadcast %cst_49 : f32 to vector<16x64xf32>
    %85 = arith.mulf %84, %81 : vector<16x64xf32>
    %86 = arith.select %83, %81, %85 : vector<16x64xi1>, vector<16x64xf32>
    %87 = vector.shape_cast %86 : vector<16x64xf32> to vector<2x8x64xf32>
    %c0_50 = arith.constant 0 : index
    %c0_51 = arith.constant 0 : index
    %c0_52 = arith.constant 0 : index
    %88 = vector.load %arg7[%c0_50, %c0_51, %c0_52] : memref<3x64x64xf32, #tpu.memory_space<vmem>>, vector<1x64x64xf32>
    %89 = vector.shape_cast %88 : vector<1x64x64xf32> to vector<64x64xf32>
    %c1_53 = arith.constant 1 : index
    %c0_54 = arith.constant 0 : index
    %c0_55 = arith.constant 0 : index
    %90 = vector.load %arg7[%c1_53, %c0_54, %c0_55] : memref<3x64x64xf32, #tpu.memory_space<vmem>>, vector<1x64x64xf32>
    %91 = vector.shape_cast %90 : vector<1x64x64xf32> to vector<64x64xf32>
    %c2_56 = arith.constant 2 : index
    %c0_57 = arith.constant 0 : index
    %c0_58 = arith.constant 0 : index
    %92 = vector.load %arg7[%c2_56, %c0_57, %c0_58] : memref<3x64x64xf32, #tpu.memory_space<vmem>>, vector<1x64x64xf32>
    %93 = vector.shape_cast %92 : vector<1x64x64xf32> to vector<64x64xf32>
    %94 = vector.shape_cast %87 : vector<2x8x64xf32> to vector<1x16x64xf32>
    %95 = vector.extract_strided_slice %94 {offsets = [0, 0, 0], sizes = [1, 8, 64], strides = [1, 1, 1]} : vector<1x16x64xf32> to vector<1x8x64xf32>
    %96 = vector.extract_strided_slice %94 {offsets = [0, 8, 0], sizes = [1, 8, 64], strides = [1, 1, 1]} : vector<1x16x64xf32> to vector<1x8x64xf32>
    %cst_59 = arith.constant 0.000000e+00 : f32
    %97 = vector.broadcast %cst_59 : f32 to vector<1x8x64xf32>
    %98 = vector.shape_cast %97 : vector<1x8x64xf32> to vector<8x64xf32>
    %cst_60 = arith.constant dense<0.000000e+00> : vector<8x64xf32>
    %99 = tpu.matmul %98, %89, %cst_60 {dimension_numbers = #tpu.dot_dimension_numbers<[1], [0], [0], [1], [0, 0, 1, 1], [], []>} : vector<8x64xf32>, vector<64x64xf32>, vector<8x64xf32> -> vector<8x64xf32>
    %100 = vector.shape_cast %95 : vector<1x8x64xf32> to vector<8x64xf32>
    %cst_61 = arith.constant dense<0.000000e+00> : vector<8x64xf32>
    %101 = tpu.matmul %100, %91, %cst_61 {dimension_numbers = #tpu.dot_dimension_numbers<[1], [0], [0], [1], [0, 0, 1, 1], [], []>} : vector<8x64xf32>, vector<64x64xf32>, vector<8x64xf32> -> vector<8x64xf32>
    %102 = arith.addf %99, %101 : vector<8x64xf32>
    %103 = vector.shape_cast %96 : vector<1x8x64xf32> to vector<8x64xf32>
    %cst_62 = arith.constant dense<0.000000e+00> : vector<8x64xf32>
    %104 = tpu.matmul %103, %93, %cst_62 {dimension_numbers = #tpu.dot_dimension_numbers<[1], [0], [0], [1], [0, 0, 1, 1], [], []>} : vector<8x64xf32>, vector<64x64xf32>, vector<8x64xf32> -> vector<8x64xf32>
    %105 = arith.addf %102, %104 : vector<8x64xf32>
    %c0_63 = arith.constant 0 : index
    %c0_64 = arith.constant 0 : index
    %106 = vector.load %arg8[%c0_63, %c0_64] : memref<1x64xf32, #tpu.memory_space<vmem>>, vector<1x64xf32>
    %107 = vector.broadcast %106 : vector<1x64xf32> to vector<8x64xf32>
    %108 = arith.addf %105, %107 : vector<8x64xf32>
    %cst_65 = arith.constant 0.000000e+00 : f32
    %109 = vector.broadcast %cst_65 : f32 to vector<8x64xf32>
    %110 = arith.cmpf oge, %108, %109 : vector<8x64xf32>
    %cst_66 = arith.constant 2.000000e-02 : f32
    %111 = vector.broadcast %cst_66 : f32 to vector<8x64xf32>
    %112 = arith.mulf %111, %108 : vector<8x64xf32>
    %113 = arith.select %110, %108, %112 : vector<8x64xi1>, vector<8x64xf32>
    %114 = vector.shape_cast %113 : vector<8x64xf32> to vector<1x8x64xf32>
    %115 = vector.shape_cast %114 : vector<1x8x64xf32> to vector<8x64xf32>
    %c0_67 = arith.constant 0 : index
    %c0_68 = arith.constant 0 : index
    %116 = vector.load %arg9[%c0_67, %c0_68] : memref<64x64xf32, #tpu.memory_space<vmem>>, vector<64x64xf32>
    %cst_69 = arith.constant dense<0.000000e+00> : vector<8x64xf32>
    %117 = tpu.matmul %115, %116, %cst_69 {dimension_numbers = #tpu.dot_dimension_numbers<[1], [0], [0], [1], [0, 0, 1, 1], [], []>} : vector<8x64xf32>, vector<64x64xf32>, vector<8x64xf32> -> vector<8x64xf32>
    %c0_70 = arith.constant 0 : index
    %c0_71 = arith.constant 0 : index
    %118 = vector.load %arg10[%c0_70, %c0_71] : memref<1x64xf32, #tpu.memory_space<vmem>>, vector<1x64xf32>
    %119 = vector.broadcast %118 : vector<1x64xf32> to vector<8x64xf32>
    %120 = arith.addf %117, %119 : vector<8x64xf32>
    %cst_72 = arith.constant 0.000000e+00 : f32
    %121 = vector.broadcast %cst_72 : f32 to vector<8x64xf32>
    %122 = arith.cmpf oge, %120, %121 : vector<8x64xf32>
    %cst_73 = arith.constant 2.000000e-02 : f32
    %123 = vector.broadcast %cst_73 : f32 to vector<8x64xf32>
    %124 = arith.mulf %123, %120 : vector<8x64xf32>
    %125 = arith.select %122, %120, %124 : vector<8x64xi1>, vector<8x64xf32>
    %c0_74 = arith.constant 0 : index
    %c0_75 = arith.constant 0 : index
    %126 = vector.load %arg11[%c0_74, %c0_75] : memref<64x32xf32, #tpu.memory_space<vmem>>, vector<64x32xf32>
    %cst_76 = arith.constant dense<0.000000e+00> : vector<8x32xf32>
    %127 = tpu.matmul %125, %126, %cst_76 {dimension_numbers = #tpu.dot_dimension_numbers<[1], [0], [0], [1], [0, 0, 1, 1], [], []>} : vector<8x64xf32>, vector<64x32xf32>, vector<8x32xf32> -> vector<8x32xf32>
    %c0_77 = arith.constant 0 : index
    %c0_78 = arith.constant 0 : index
    %128 = vector.load %arg12[%c0_77, %c0_78] : memref<1x32xf32, #tpu.memory_space<vmem>>, vector<1x32xf32>
    %129 = vector.broadcast %128 : vector<1x32xf32> to vector<8x32xf32>
    %130 = arith.addf %127, %129 : vector<8x32xf32>
    %c0_79 = arith.constant 0 : index
    %c0_80 = arith.constant 0 : index
    %c0_81 = arith.constant 0 : index
    %131 = vector.load %arg13[%c0_79, %c0_80, %c0_81] : memref<3x32x16xf32, #tpu.memory_space<vmem>>, vector<1x32x16xf32>
    %132 = vector.shape_cast %131 : vector<1x32x16xf32> to vector<32x16xf32>
    %c1_82 = arith.constant 1 : index
    %c0_83 = arith.constant 0 : index
    %c0_84 = arith.constant 0 : index
    %133 = vector.load %arg13[%c1_82, %c0_83, %c0_84] : memref<3x32x16xf32, #tpu.memory_space<vmem>>, vector<1x32x16xf32>
    %134 = vector.shape_cast %133 : vector<1x32x16xf32> to vector<32x16xf32>
    %c2_85 = arith.constant 2 : index
    %c0_86 = arith.constant 0 : index
    %c0_87 = arith.constant 0 : index
    %135 = vector.load %arg13[%c2_85, %c0_86, %c0_87] : memref<3x32x16xf32, #tpu.memory_space<vmem>>, vector<1x32x16xf32>
    %136 = vector.shape_cast %135 : vector<1x32x16xf32> to vector<32x16xf32>
    %cst_88 = arith.constant 0.000000e+00 : f32
    %137 = vector.broadcast %cst_88 : f32 to vector<1x32xf32>
    %138 = vector.extract_strided_slice %130 {offsets = [0, 0], sizes = [7, 32], strides = [1, 1]} : vector<8x32xf32> to vector<7x32xf32>
    %139 = tpu.concatenate %137, %138 in 0 : vector<1x32xf32>, vector<7x32xf32> -> vector<8x32xf32>
    %140 = vector.extract_strided_slice %130 {offsets = [1, 0], sizes = [7, 32], strides = [1, 1]} : vector<8x32xf32> to vector<7x32xf32>
    %141 = tpu.concatenate %140, %137 in 0 : vector<7x32xf32>, vector<1x32xf32> -> vector<8x32xf32>
    %cst_89 = arith.constant dense<0.000000e+00> : vector<8x16xf32>
    %142 = tpu.matmul %139, %132, %cst_89 {dimension_numbers = #tpu.dot_dimension_numbers<[1], [0], [0], [1], [0, 0, 1, 1], [], []>} : vector<8x32xf32>, vector<32x16xf32>, vector<8x16xf32> -> vector<8x16xf32>
    %cst_90 = arith.constant dense<0.000000e+00> : vector<8x16xf32>
    %143 = tpu.matmul %130, %134, %cst_90 {dimension_numbers = #tpu.dot_dimension_numbers<[1], [0], [0], [1], [0, 0, 1, 1], [], []>} : vector<8x32xf32>, vector<32x16xf32>, vector<8x16xf32> -> vector<8x16xf32>
    %144 = arith.addf %142, %143 : vector<8x16xf32>
    %cst_91 = arith.constant dense<0.000000e+00> : vector<8x16xf32>
    %145 = tpu.matmul %141, %136, %cst_91 {dimension_numbers = #tpu.dot_dimension_numbers<[1], [0], [0], [1], [0, 0, 1, 1], [], []>} : vector<8x32xf32>, vector<32x16xf32>, vector<8x16xf32> -> vector<8x16xf32>
    %146 = arith.addf %144, %145 : vector<8x16xf32>
    %c0_92 = arith.constant 0 : index
    %c0_93 = arith.constant 0 : index
    %147 = vector.load %arg14[%c0_92, %c0_93] : memref<1x16xf32, #tpu.memory_space<vmem>>, vector<1x16xf32>
    %148 = vector.broadcast %147 : vector<1x16xf32> to vector<8x16xf32>
    %149 = arith.addf %146, %148 : vector<8x16xf32>
    %cst_94 = arith.constant 0.000000e+00 : f32
    %150 = vector.broadcast %cst_94 : f32 to vector<8x16xf32>
    %151 = arith.cmpf oge, %149, %150 : vector<8x16xf32>
    %cst_95 = arith.constant 2.000000e-02 : f32
    %152 = vector.broadcast %cst_95 : f32 to vector<8x16xf32>
    %153 = arith.mulf %152, %149 : vector<8x16xf32>
    %154 = arith.select %151, %149, %153 : vector<8x16xi1>, vector<8x16xf32>
    %c0_96 = arith.constant 0 : index
    %c0_97 = arith.constant 0 : index
    %c0_98 = arith.constant 0 : index
    %155 = vector.load %arg15[%c0_96, %c0_97, %c0_98] : memref<3x16x8xf32, #tpu.memory_space<vmem>>, vector<1x16x8xf32>
    %156 = vector.shape_cast %155 : vector<1x16x8xf32> to vector<16x8xf32>
    %c1_99 = arith.constant 1 : index
    %c0_100 = arith.constant 0 : index
    %c0_101 = arith.constant 0 : index
    %157 = vector.load %arg15[%c1_99, %c0_100, %c0_101] : memref<3x16x8xf32, #tpu.memory_space<vmem>>, vector<1x16x8xf32>
    %158 = vector.shape_cast %157 : vector<1x16x8xf32> to vector<16x8xf32>
    %c2_102 = arith.constant 2 : index
    %c0_103 = arith.constant 0 : index
    %c0_104 = arith.constant 0 : index
    %159 = vector.load %arg15[%c2_102, %c0_103, %c0_104] : memref<3x16x8xf32, #tpu.memory_space<vmem>>, vector<1x16x8xf32>
    %160 = vector.shape_cast %159 : vector<1x16x8xf32> to vector<16x8xf32>
    %cst_105 = arith.constant 0.000000e+00 : f32
    %161 = vector.broadcast %cst_105 : f32 to vector<1x16xf32>
    %162 = vector.extract_strided_slice %154 {offsets = [0, 0], sizes = [7, 16], strides = [1, 1]} : vector<8x16xf32> to vector<7x16xf32>
    %163 = tpu.concatenate %161, %162 in 0 : vector<1x16xf32>, vector<7x16xf32> -> vector<8x16xf32>
    %164 = vector.extract_strided_slice %154 {offsets = [1, 0], sizes = [7, 16], strides = [1, 1]} : vector<8x16xf32> to vector<7x16xf32>
    %165 = tpu.concatenate %164, %161 in 0 : vector<7x16xf32>, vector<1x16xf32> -> vector<8x16xf32>
    %cst_106 = arith.constant dense<0.000000e+00> : vector<8x8xf32>
    %166 = tpu.matmul %163, %156, %cst_106 {dimension_numbers = #tpu.dot_dimension_numbers<[1], [0], [0], [1], [0, 0, 1, 1], [], []>} : vector<8x16xf32>, vector<16x8xf32>, vector<8x8xf32> -> vector<8x8xf32>
    %cst_107 = arith.constant dense<0.000000e+00> : vector<8x8xf32>
    %167 = tpu.matmul %154, %158, %cst_107 {dimension_numbers = #tpu.dot_dimension_numbers<[1], [0], [0], [1], [0, 0, 1, 1], [], []>} : vector<8x16xf32>, vector<16x8xf32>, vector<8x8xf32> -> vector<8x8xf32>
    %168 = arith.addf %166, %167 : vector<8x8xf32>
    %cst_108 = arith.constant dense<0.000000e+00> : vector<8x8xf32>
    %169 = tpu.matmul %165, %160, %cst_108 {dimension_numbers = #tpu.dot_dimension_numbers<[1], [0], [0], [1], [0, 0, 1, 1], [], []>} : vector<8x16xf32>, vector<16x8xf32>, vector<8x8xf32> -> vector<8x8xf32>
    %170 = arith.addf %168, %169 : vector<8x8xf32>
    %c0_109 = arith.constant 0 : index
    %c0_110 = arith.constant 0 : index
    %171 = vector.load %arg16[%c0_109, %c0_110] : memref<1x8xf32, #tpu.memory_space<vmem>>, vector<1x8xf32>
    %172 = vector.broadcast %171 : vector<1x8xf32> to vector<8x8xf32>
    %173 = arith.addf %170, %172 : vector<8x8xf32>
    %cst_111 = arith.constant 0.000000e+00 : f32
    %174 = vector.broadcast %cst_111 : f32 to vector<8x8xf32>
    %175 = arith.cmpf oge, %173, %174 : vector<8x8xf32>
    %cst_112 = arith.constant 2.000000e-02 : f32
    %176 = vector.broadcast %cst_112 : f32 to vector<8x8xf32>
    %177 = arith.mulf %176, %173 : vector<8x8xf32>
    %178 = arith.select %175, %173, %177 : vector<8x8xi1>, vector<8x8xf32>
    %c0_113 = arith.constant 0 : index
    %c0_114 = arith.constant 0 : index
    %c0_115 = arith.constant 0 : index
    %179 = vector.load %arg17[%c0_113, %c0_114, %c0_115] : memref<3x8x4xf32, #tpu.memory_space<vmem>>, vector<1x8x4xf32>
    %180 = vector.shape_cast %179 : vector<1x8x4xf32> to vector<8x4xf32>
    %c1_116 = arith.constant 1 : index
    %c0_117 = arith.constant 0 : index
    %c0_118 = arith.constant 0 : index
    %181 = vector.load %arg17[%c1_116, %c0_117, %c0_118] : memref<3x8x4xf32, #tpu.memory_space<vmem>>, vector<1x8x4xf32>
    %182 = vector.shape_cast %181 : vector<1x8x4xf32> to vector<8x4xf32>
    %c2_119 = arith.constant 2 : index
    %c0_120 = arith.constant 0 : index
    %c0_121 = arith.constant 0 : index
    %183 = vector.load %arg17[%c2_119, %c0_120, %c0_121] : memref<3x8x4xf32, #tpu.memory_space<vmem>>, vector<1x8x4xf32>
    %184 = vector.shape_cast %183 : vector<1x8x4xf32> to vector<8x4xf32>
    %cst_122 = arith.constant 0.000000e+00 : f32
    %185 = vector.broadcast %cst_122 : f32 to vector<1x8xf32>
    %186 = vector.extract_strided_slice %178 {offsets = [0, 0], sizes = [7, 8], strides = [1, 1]} : vector<8x8xf32> to vector<7x8xf32>
    %187 = tpu.concatenate %185, %186 in 0 : vector<1x8xf32>, vector<7x8xf32> -> vector<8x8xf32>
    %188 = vector.extract_strided_slice %178 {offsets = [1, 0], sizes = [7, 8], strides = [1, 1]} : vector<8x8xf32> to vector<7x8xf32>
    %189 = tpu.concatenate %188, %185 in 0 : vector<7x8xf32>, vector<1x8xf32> -> vector<8x8xf32>
    %cst_123 = arith.constant dense<0.000000e+00> : vector<8x4xf32>
    %190 = tpu.matmul %187, %180, %cst_123 {dimension_numbers = #tpu.dot_dimension_numbers<[1], [0], [0], [1], [0, 0, 1, 1], [], []>} : vector<8x8xf32>, vector<8x4xf32>, vector<8x4xf32> -> vector<8x4xf32>
    %cst_124 = arith.constant dense<0.000000e+00> : vector<8x4xf32>
    %191 = tpu.matmul %178, %182, %cst_124 {dimension_numbers = #tpu.dot_dimension_numbers<[1], [0], [0], [1], [0, 0, 1, 1], [], []>} : vector<8x8xf32>, vector<8x4xf32>, vector<8x4xf32> -> vector<8x4xf32>
    %192 = arith.addf %190, %191 : vector<8x4xf32>
    %cst_125 = arith.constant dense<0.000000e+00> : vector<8x4xf32>
    %193 = tpu.matmul %189, %184, %cst_125 {dimension_numbers = #tpu.dot_dimension_numbers<[1], [0], [0], [1], [0, 0, 1, 1], [], []>} : vector<8x8xf32>, vector<8x4xf32>, vector<8x4xf32> -> vector<8x4xf32>
    %194 = arith.addf %192, %193 : vector<8x4xf32>
    %c0_126 = arith.constant 0 : index
    %c0_127 = arith.constant 0 : index
    %195 = vector.load %arg18[%c0_126, %c0_127] : memref<1x4xf32, #tpu.memory_space<vmem>>, vector<1x4xf32>
    %196 = vector.broadcast %195 : vector<1x4xf32> to vector<8x4xf32>
    %197 = arith.addf %194, %196 : vector<8x4xf32>
    %cst_128 = arith.constant 0.000000e+00 : f32
    %198 = vector.broadcast %cst_128 : f32 to vector<8x4xf32>
    %199 = arith.cmpf oge, %197, %198 : vector<8x4xf32>
    %cst_129 = arith.constant 2.000000e-02 : f32
    %200 = vector.broadcast %cst_129 : f32 to vector<8x4xf32>
    %201 = arith.mulf %200, %197 : vector<8x4xf32>
    %202 = arith.select %199, %197, %201 : vector<8x4xi1>, vector<8x4xf32>
    %c0_130 = arith.constant 0 : index
    %c0_131 = arith.constant 0 : index
    %c0_132 = arith.constant 0 : index
    %203 = vector.load %arg19[%c0_130, %c0_131, %c0_132] : memref<3x4x2xf32, #tpu.memory_space<vmem>>, vector<1x4x2xf32>
    %204 = vector.shape_cast %203 : vector<1x4x2xf32> to vector<4x2xf32>
    %c1_133 = arith.constant 1 : index
    %c0_134 = arith.constant 0 : index
    %c0_135 = arith.constant 0 : index
    %205 = vector.load %arg19[%c1_133, %c0_134, %c0_135] : memref<3x4x2xf32, #tpu.memory_space<vmem>>, vector<1x4x2xf32>
    %206 = vector.shape_cast %205 : vector<1x4x2xf32> to vector<4x2xf32>
    %c2_136 = arith.constant 2 : index
    %c0_137 = arith.constant 0 : index
    %c0_138 = arith.constant 0 : index
    %207 = vector.load %arg19[%c2_136, %c0_137, %c0_138] : memref<3x4x2xf32, #tpu.memory_space<vmem>>, vector<1x4x2xf32>
    %208 = vector.shape_cast %207 : vector<1x4x2xf32> to vector<4x2xf32>
    %cst_139 = arith.constant 0.000000e+00 : f32
    %209 = vector.broadcast %cst_139 : f32 to vector<1x4xf32>
    %210 = vector.extract_strided_slice %202 {offsets = [0, 0], sizes = [7, 4], strides = [1, 1]} : vector<8x4xf32> to vector<7x4xf32>
    %211 = tpu.concatenate %209, %210 in 0 : vector<1x4xf32>, vector<7x4xf32> -> vector<8x4xf32>
    %212 = vector.extract_strided_slice %202 {offsets = [1, 0], sizes = [7, 4], strides = [1, 1]} : vector<8x4xf32> to vector<7x4xf32>
    %213 = tpu.concatenate %212, %209 in 0 : vector<7x4xf32>, vector<1x4xf32> -> vector<8x4xf32>
    %cst_140 = arith.constant dense<0.000000e+00> : vector<8x2xf32>
    %214 = tpu.matmul %211, %204, %cst_140 {dimension_numbers = #tpu.dot_dimension_numbers<[1], [0], [0], [1], [0, 0, 1, 1], [], []>} : vector<8x4xf32>, vector<4x2xf32>, vector<8x2xf32> -> vector<8x2xf32>
    %cst_141 = arith.constant dense<0.000000e+00> : vector<8x2xf32>
    %215 = tpu.matmul %202, %206, %cst_141 {dimension_numbers = #tpu.dot_dimension_numbers<[1], [0], [0], [1], [0, 0, 1, 1], [], []>} : vector<8x4xf32>, vector<4x2xf32>, vector<8x2xf32> -> vector<8x2xf32>
    %216 = arith.addf %214, %215 : vector<8x2xf32>
    %cst_142 = arith.constant dense<0.000000e+00> : vector<8x2xf32>
    %217 = tpu.matmul %213, %208, %cst_142 {dimension_numbers = #tpu.dot_dimension_numbers<[1], [0], [0], [1], [0, 0, 1, 1], [], []>} : vector<8x4xf32>, vector<4x2xf32>, vector<8x2xf32> -> vector<8x2xf32>
    %218 = arith.addf %216, %217 : vector<8x2xf32>
    %c0_143 = arith.constant 0 : index
    %c0_144 = arith.constant 0 : index
    %219 = vector.load %arg20[%c0_143, %c0_144] : memref<1x2xf32, #tpu.memory_space<vmem>>, vector<1x2xf32>
    %220 = vector.broadcast %219 : vector<1x2xf32> to vector<8x2xf32>
    %221 = arith.addf %218, %220 : vector<8x2xf32>
    %cst_145 = arith.constant 0.000000e+00 : f32
    %222 = vector.broadcast %cst_145 : f32 to vector<8x2xf32>
    %223 = arith.cmpf oge, %221, %222 : vector<8x2xf32>
    %cst_146 = arith.constant 2.000000e-02 : f32
    %224 = vector.broadcast %cst_146 : f32 to vector<8x2xf32>
    %225 = arith.mulf %224, %221 : vector<8x2xf32>
    %226 = arith.select %223, %221, %225 : vector<8x2xi1>, vector<8x2xf32>
    %c0_147 = arith.constant 0 : index
    %c0_148 = arith.constant 0 : index
    %c0_149 = arith.constant 0 : index
    %227 = vector.load %arg21[%c0_147, %c0_148, %c0_149] : memref<3x2x1xf32, #tpu.memory_space<vmem>>, vector<1x2x1xf32>
    %228 = vector.shape_cast %227 : vector<1x2x1xf32> to vector<2x1xf32>
    %c1_150 = arith.constant 1 : index
    %c0_151 = arith.constant 0 : index
    %c0_152 = arith.constant 0 : index
    %229 = vector.load %arg21[%c1_150, %c0_151, %c0_152] : memref<3x2x1xf32, #tpu.memory_space<vmem>>, vector<1x2x1xf32>
    %230 = vector.shape_cast %229 : vector<1x2x1xf32> to vector<2x1xf32>
    %c2_153 = arith.constant 2 : index
    %c0_154 = arith.constant 0 : index
    %c0_155 = arith.constant 0 : index
    %231 = vector.load %arg21[%c2_153, %c0_154, %c0_155] : memref<3x2x1xf32, #tpu.memory_space<vmem>>, vector<1x2x1xf32>
    %232 = vector.shape_cast %231 : vector<1x2x1xf32> to vector<2x1xf32>
    %cst_156 = arith.constant 0.000000e+00 : f32
    %233 = vector.broadcast %cst_156 : f32 to vector<1x2xf32>
    %234 = vector.extract_strided_slice %226 {offsets = [0, 0], sizes = [7, 2], strides = [1, 1]} : vector<8x2xf32> to vector<7x2xf32>
    %235 = tpu.concatenate %233, %234 in 0 : vector<1x2xf32>, vector<7x2xf32> -> vector<8x2xf32>
    %236 = vector.extract_strided_slice %226 {offsets = [1, 0], sizes = [7, 2], strides = [1, 1]} : vector<8x2xf32> to vector<7x2xf32>
    %237 = tpu.concatenate %236, %233 in 0 : vector<7x2xf32>, vector<1x2xf32> -> vector<8x2xf32>
    %cst_157 = arith.constant dense<0.000000e+00> : vector<8x1xf32>
    %238 = tpu.matmul %235, %228, %cst_157 {dimension_numbers = #tpu.dot_dimension_numbers<[1], [0], [0], [1], [0, 0, 1, 1], [], []>} : vector<8x2xf32>, vector<2x1xf32>, vector<8x1xf32> -> vector<8x1xf32>
    %cst_158 = arith.constant dense<0.000000e+00> : vector<8x1xf32>
    %239 = tpu.matmul %226, %230, %cst_158 {dimension_numbers = #tpu.dot_dimension_numbers<[1], [0], [0], [1], [0, 0, 1, 1], [], []>} : vector<8x2xf32>, vector<2x1xf32>, vector<8x1xf32> -> vector<8x1xf32>
    %240 = arith.addf %238, %239 : vector<8x1xf32>
    %cst_159 = arith.constant dense<0.000000e+00> : vector<8x1xf32>
    %241 = tpu.matmul %237, %232, %cst_159 {dimension_numbers = #tpu.dot_dimension_numbers<[1], [0], [0], [1], [0, 0, 1, 1], [], []>} : vector<8x2xf32>, vector<2x1xf32>, vector<8x1xf32> -> vector<8x1xf32>
    %242 = arith.addf %240, %241 : vector<8x1xf32>
    %c0_160 = arith.constant 0 : index
    %c0_161 = arith.constant 0 : index
    %243 = vector.load %arg22[%c0_160, %c0_161] : memref<1x1xf32, #tpu.memory_space<vmem>>, vector<1x1xf32>
    %244 = vector.broadcast %243 : vector<1x1xf32> to vector<8x1xf32>
    %245 = arith.addf %242, %244 : vector<8x1xf32>
    %cst_162 = arith.constant 0.000000e+00 : f32
    %246 = vector.broadcast %cst_162 : f32 to vector<8x1xf32>
    %247 = arith.cmpf oge, %245, %246 : vector<8x1xf32>
    %cst_163 = arith.constant 2.000000e-02 : f32
    %248 = vector.broadcast %cst_163 : f32 to vector<8x1xf32>
    %249 = arith.mulf %248, %245 : vector<8x1xf32>
    %250 = arith.select %247, %245, %249 : vector<8x1xi1>, vector<8x1xf32>
    %c0_164 = arith.constant 0 : index
    %c0_165 = arith.constant 0 : index
    %251 = vector.load %arg23[%c0_164, %c0_165] : memref<8x8xf32, #tpu.memory_space<vmem>>, vector<8x8xf32>
    %cst_166 = arith.constant dense<0.000000e+00> : vector<8x1xf32>
    %252 = tpu.matmul %251, %250, %cst_166 {dimension_numbers = #tpu.dot_dimension_numbers<[1], [0], [0], [1], [0, 0, 1, 1], [], []>} : vector<8x8xf32>, vector<8x1xf32>, vector<8x1xf32> -> vector<8x1xf32>
    %c0_167 = arith.constant 0 : index
    %c0_168 = arith.constant 0 : index
    %253 = vector.load %arg24[%c0_167, %c0_168] : memref<8x1xf32, #tpu.memory_space<vmem>>, vector<8x1xf32>
    %254 = arith.addf %252, %253 : vector<8x1xf32>
    %cst_169 = arith.constant dense<0xFF800000> : vector<1xf32>
    %255 = vector.multi_reduction <maximumf>, %254, %cst_169 [0] : vector<8x1xf32> to vector<1xf32>
    %256 = vector.shape_cast %255 : vector<1xf32> to vector<1x1xf32>
    %257 = vector.broadcast %256 : vector<1x1xf32> to vector<8x1xf32>
    %258 = arith.subf %254, %257 : vector<8x1xf32>
    %259 = math.exp %258 : vector<8x1xf32>
    %cst_170 = arith.constant dense<0.000000e+00> : vector<1xf32>
    %260 = vector.multi_reduction <add>, %259, %cst_170 [0] : vector<8x1xf32> to vector<1xf32>
    %261 = vector.shape_cast %260 : vector<1xf32> to vector<1x1xf32>
    %262 = vector.broadcast %261 : vector<1x1xf32> to vector<8x1xf32>
    %263 = arith.divf %259, %262 : vector<8x1xf32>
    %264 = vector.broadcast %263 : vector<8x1xf32> to vector<8x32xf32>
    %265 = arith.mulf %264, %130 : vector<8x32xf32>
    %cst_171 = arith.constant dense<0.000000e+00> : vector<32xf32>
    %266 = vector.multi_reduction <add>, %265, %cst_171 [0] : vector<8x32xf32> to vector<32xf32>
    %267 = vector.shape_cast %266 : vector<32xf32> to vector<1x32xf32>
    %c0_172 = arith.constant 0 : index
    %c0_173 = arith.constant 0 : index
    %268 = vector.load %arg25[%c0_172, %c0_173] : memref<1x32xf32, #tpu.memory_space<vmem>>, vector<1x32xf32>
    tpu.vector_store %arg25[%c0_172, %c0_173], %267 {strides = array<i32>} : memref<1x32xf32, #tpu.memory_space<vmem>>, vector<1x32xf32>,
    return
  }
}

module attributes {stable_mosaic.version = 11 : i64} {
  func.func @point_mlp_kernel(%arg0: i32, %arg1: memref<128x68xbf16, #tpu.memory_space<vmem>>, %arg2: memref<1x64xf32, #tpu.memory_space<vmem>>, %arg3: memref<196x64xbf16, #tpu.memory_space<vmem>>, %arg4: memref<128x6xf32, #tpu.memory_space<vmem>>) attributes {dimension_semantics = [#tpu.dimension_semantics<parallel>], iteration_bounds = array<i64: 2>, scalar_prefetch = 0 : i64, scratch_operands = 0 : i64, tpu.core_type = #tpu.core_type<tc>, window_params = [{transform_indices = @transform_0, window_bounds = array<i64: 128, 68>}, {pipeline_mode = #tpu.pipeline_mode<synchronous>, transform_indices = @transform_1, window_bounds = array<i64: 1, 64>}, {pipeline_mode = #tpu.pipeline_mode<synchronous>, transform_indices = @transform_2, window_bounds = array<i64: 196, 64>}, {transform_indices = @transform_3, window_bounds = array<i64: 128, 6>}]} {
    %c0 = arith.constant 0 : index
    %c0_0 = arith.constant 0 : index
    %0 = vector.load %arg3[%c0, %c0_0] : memref<196x64xbf16, #tpu.memory_space<vmem>>, vector<64x64xbf16>
    %c64 = arith.constant 64 : index
    %c0_1 = arith.constant 0 : index
    %1 = vector.load %arg3[%c64, %c0_1] : memref<196x64xbf16, #tpu.memory_space<vmem>>, vector<64x6xbf16>
    %c128 = arith.constant 128 : index
    %c0_2 = arith.constant 0 : index
    %2 = vector.load %arg3[%c128, %c0_2] : memref<196x64xbf16, #tpu.memory_space<vmem>>, vector<68x64xbf16>
    %c0_3 = arith.constant 0 : index
    %c0_4 = arith.constant 0 : index
    %3 = vector.load %arg1[%c0_3, %c0_4] : memref<128x68xbf16, #tpu.memory_space<vmem>>, vector<128x68xbf16>
    %cst = arith.constant dense<0.000000e+00> : vector<128x64xf32>
    %4 = tpu.matmul %3, %2, %cst {dimension_numbers = #tpu.dot_dimension_numbers<[1], [0], [0], [1], [0, 0, 1, 1], [], []>} : vector<128x68xbf16>, vector<68x64xbf16>, vector<128x64xf32> -> vector<128x64xf32>
    %c0_5 = arith.constant 0 : index
    %c0_6 = arith.constant 0 : index
    %5 = vector.load %arg2[%c0_5, %c0_6] : memref<1x64xf32, #tpu.memory_space<vmem>>, vector<1x64xf32>
    %6 = vector.broadcast %5 : vector<1x64xf32> to vector<128x64xf32>
    %7 = arith.addf %4, %6 : vector<128x64xf32>
    %cst_7 = arith.constant 0.000000e+00 : f32
    %8 = vector.broadcast %cst_7 : f32 to vector<128x64xf32>
    %9 = arith.maximumf %7, %8 : vector<128x64xf32>
    %10 = arith.truncf %9 : vector<128x64xf32> to vector<128x64xbf16>
    %cst_8 = arith.constant dense<0.000000e+00> : vector<128x64xf32>
    %11 = tpu.matmul %10, %0, %cst_8 {dimension_numbers = #tpu.dot_dimension_numbers<[1], [0], [0], [1], [0, 0, 1, 1], [], []>} : vector<128x64xbf16>, vector<64x64xbf16>, vector<128x64xf32> -> vector<128x64xf32>
    %cst_9 = arith.constant 0.000000e+00 : f32
    %12 = vector.broadcast %cst_9 : f32 to vector<128x64xf32>
    %13 = arith.maximumf %11, %12 : vector<128x64xf32>
    %14 = arith.truncf %13 : vector<128x64xf32> to vector<128x64xbf16>
    %cst_10 = arith.constant dense<0.000000e+00> : vector<128x6xf32>
    %15 = tpu.matmul %14, %1, %cst_10 {dimension_numbers = #tpu.dot_dimension_numbers<[1], [0], [0], [1], [0, 0, 1, 1], [], []>} : vector<128x64xbf16>, vector<64x6xbf16>, vector<128x6xf32> -> vector<128x6xf32>
    %c0_11 = arith.constant 0 : index
    %c0_12 = arith.constant 0 : index
    %16 = vector.load %arg4[%c0_11, %c0_12] : memref<128x6xf32, #tpu.memory_space<vmem>>, vector<128x6xf32>
    tpu.vector_store %arg4[%c0_11, %c0_12], %15 {strides = array<i32>} : memref<128x6xf32, #tpu.memory_space<vmem>>, vector<128x6xf32>,
    return
  }
  func.func @transform_0(%arg0: i32) -> (i32, i32) {
    %c0_i32 = arith.constant 0 : i32
    %c0_i32_0 = arith.constant 0 : i32
    return %arg0, %c0_i32 : i32, i32
  }
  func.func @transform_1(%arg0: i32) -> (i32, i32) {
    %c0_i32 = arith.constant 0 : i32
    %c0_i32_0 = arith.constant 0 : i32
    %c0_i32_1 = arith.constant 0 : i32
    return %c0_i32, %c0_i32_0 : i32, i32
  }
  func.func @transform_2(%arg0: i32) -> (i32, i32) {
    %c0_i32 = arith.constant 0 : i32
    %c0_i32_0 = arith.constant 0 : i32
    %c0_i32_1 = arith.constant 0 : i32
    return %c0_i32, %c0_i32_0 : i32, i32
  }
  func.func @transform_3(%arg0: i32) -> (i32, i32) {
    %c0_i32 = arith.constant 0 : i32
    %c0_i32_0 = arith.constant 0 : i32
    return %arg0, %c0_i32 : i32, i32
  }
}

</mosaic_0001>

<llo_original>
// kernel: mouth_motion_forward.2
$region0: #{mouth_motion_forward.2}
  #allocation0 [shape = 'u32[]', space=smem, size = 0x4, offset = 0x4, fixed_abs, tag = 'smem constant byte address 0x4 - core index']
  #allocation1 [shape = 'u32[144,128]{1,0:T(1,128)}', space=vmem, size = 0x12000, scoped, tag = 'internal scratch']
  #allocation2 [shape = 'f32[1,1]{1,0:T(1,128)S(1)}', space=vmem, size = 0x200, scoped, tag = 'scoped memory for mouth_motion_forward.2']
  %s0 = inlined_call_operand.vmem [shape: f32[16,8,29], index: 0, kind: input, shape index: {}]
  %s1 = inlined_call_operand.vmem [shape: f32[3,29,32], index: 1, kind: input, shape index: {}]
  %s2 = inlined_call_operand.vmem [shape: f32[1,32], index: 2, kind: input, shape index: {}]
  %s3 = inlined_call_operand.vmem [shape: f32[3,32,32], index: 3, kind: input, shape index: {}]
  %s4 = inlined_call_operand.vmem [shape: f32[1,32], index: 4, kind: input, shape index: {}]
  %s5 = inlined_call_operand.vmem [shape: f32[3,32,64], index: 5, kind: input, shape index: {}]
  %s6 = inlined_call_operand.vmem [shape: f32[1,64], index: 6, kind: input, shape index: {}]
  %s7 = inlined_call_operand.vmem [shape: f32[3,64,64], index: 7, kind: input, shape index: {}]
  %s8 = inlined_call_operand.vmem [shape: f32[1,64], index: 8, kind: input, shape index: {}]
  %s9 = inlined_call_operand.vmem [shape: f32[64,64], index: 9, kind: input, shape index: {}]
  %s10 = inlined_call_operand.vmem [shape: f32[1,64], index: 10, kind: input, shape index: {}]
  %s11 = inlined_call_operand.vmem [shape: f32[64,32], index: 11, kind: input, shape index: {}]
  %s12 = inlined_call_operand.vmem [shape: f32[1,32], index: 12, kind: input, shape index: {}]
  %s13 = inlined_call_operand.vmem [shape: f32[3,32,16], index: 13, kind: input, shape index: {}]
  %s14 = inlined_call_operand.vmem [shape: f32[1,16], index: 14, kind: input, shape index: {}]
  %s15 = inlined_call_operand.vmem [shape: f32[3,16,8], index: 15, kind: input, shape index: {}]
  %s16 = inlined_call_operand.vmem [shape: f32[1,8], index: 16, kind: input, shape index: {}]
  %s17 = inlined_call_operand.vmem [shape: f32[3,8,4], index: 17, kind: input, shape index: {}]
  %s18 = inlined_call_operand.vmem [shape: f32[1,4], index: 18, kind: input, shape index: {}]
  %s19 = inlined_call_operand.vmem [shape: f32[3,4,2], index: 19, kind: input, shape index: {}]
  %s20 = inlined_call_operand.vmem [shape: f32[1,2], index: 20, kind: input, shape index: {}]
  %s21 = inlined_call_operand.vmem [shape: f32[3,2,1], index: 21, kind: input, shape index: {}]
  %s22 = inlined_call_operand.<no memory space> [shape: f32[1,1], index: 22, kind: input, shape index: {}]
  %s23 = inlined_call_operand.vmem [shape: f32[8,8], index: 23, kind: input, shape index: {}]
  %s24 = inlined_call_operand.vmem [shape: f32[8,1], index: 24, kind: input, shape index: {}]
  %s25 = inlined_call_operand.vmem [shape: f32[1,32], index: 25, kind: output, shape index: {}]
  %s26 = sld [smem:[#allocation0]]
  $region110: #{mouth_motion_forward.2} parent=0
    _
  %s28 = ssub.s32 1, %s26
  %s29 = scalar_select 0, %s28, %s26
  %v30 = vstv %s22
  %31 = vst [vmem:[#allocation2] sm:$0x1] %v30
  // Predicated region
  $region2: #{mouth_motion_forward.2} parent=0 // pred_check
    _
  $region3: #{mouth_motion_forward.2} parent=0 // pred_check_branch
    %33 = sbr.rel (0) target = $region5
  $region4: #{mouth_motion_forward.2} parent=0 // pred_region
    _
  $region5: #{mouth_motion_forward.2} parent=0 // pred_fallthru
    _
  // Predicated region
  $region6: #{mouth_motion_forward.2} parent=0 // pred_check
    _
  $region7: #{mouth_motion_forward.2} parent=0 // pred_check_branch
    %35 = sbr.rel (0) target = $region9
  $region8: #{mouth_motion_forward.2} parent=0 // pred_region
    _
  $region9: #{mouth_motion_forward.2} parent=0 // pred_fallthru
    _
  // Predicated region
  $region10: #{mouth_motion_forward.2} parent=0 // pred_check
    _
  $region11: #{mouth_motion_forward.2} parent=0 // pred_check_branch
    %37 = sbr.rel (0) target = $region13
  $region12: #{mouth_motion_forward.2} parent=0 // pred_region
    _
  $region13: #{mouth_motion_forward.2} parent=0 // pred_fallthru
    _
  // Predicated region
  $region14: #{mouth_motion_forward.2} parent=0 // pred_check
    _
  $region15: #{mouth_motion_forward.2} parent=0 // pred_check_branch
    %39 = sbr.rel (0) target = $region17
  $region16: #{mouth_motion_forward.2} parent=0 // pred_region
    _
  $region17: #{mouth_motion_forward.2} parent=0 // pred_fallthru
    _
  // Predicated region
  $region18: #{mouth_motion_forward.2} parent=0 // pred_check
    _
  $region19: #{mouth_motion_forward.2} parent=0 // pred_check_branch
    %41 = sbr.rel (0) target = $region21
  $region20: #{mouth_motion_forward.2} parent=0 // pred_region
    _
  $region21: #{mouth_motion_forward.2} parent=0 // pred_fallthru
    _
  // Predicated region
  $region22: #{mouth_motion_forward.2} parent=0 // pred_check
    _
  $region23: #{mouth_motion_forward.2} parent=0 // pred_check_branch
    %43 = sbr.rel (0) target = $region25
  $region24: #{mouth_motion_forward.2} parent=0 // pred_region
    _
  $region25: #{mouth_motion_forward.2} parent=0 // pred_fallthru
    _
  // Predicated region
  $region26: #{mouth_motion_forward.2} parent=0 // pred_check
    _
  $region27: #{mouth_motion_forward.2} parent=0 // pred_check_branch
    %45 = sbr.rel (0) target = $region29
  $region28: #{mouth_motion_forward.2} parent=0 // pred_region
    _
  $region29: #{mouth_motion_forward.2} parent=0 // pred_fallthru
    _
  // Predicated region
  $region30: #{mouth_motion_forward.2} parent=0 // pred_check
    _
  $region31: #{mouth_motion_forward.2} parent=0 // pred_check_branch
    %47 = sbr.rel (0) target = $region33
  $region32: #{mouth_motion_forward.2} parent=0 // pred_region
    _
  $region33: #{mouth_motion_forward.2} parent=0 // pred_fallthru
    _
  // Predicated region
  $region34: #{mouth_motion_forward.2} parent=0 // pred_check
    _
  $region35: #{mouth_motion_forward.2} parent=0 // pred_check_branch
    %49 = sbr.rel (0) target = $region37
  $region36: #{mouth_motion_forward.2} parent=0 // pred_region
    _
  $region37: #{mouth_motion_forward.2} parent=0 // pred_fallthru
    _
  // Predicated region
  $region38: #{mouth_motion_forward.2} parent=0 // pred_check
    _
  $region39: #{mouth_motion_forward.2} parent=0 // pred_check_branch
    %51 = sbr.rel (0) target = $region41
  $region40: #{mouth_motion_forward.2} parent=0 // pred_region
    _
  $region41: #{mouth_motion_forward.2} parent=0 // pred_fallthru
    _
  // Predicated region
  $region42: #{mouth_motion_forward.2} parent=0 // pred_check
    _
  $region43: #{mouth_motion_forward.2} parent=0 // pred_check_branch
    %53 = sbr.rel (0) target = $region45
  $region44: #{mouth_motion_forward.2} parent=0 // pred_region
    _
  $region45: #{mouth_motion_forward.2} parent=0 // pred_fallthru
    _
  // Predicated region
  $region46: #{mouth_motion_forward.2} parent=0 // pred_check
    _
  $region47: #{mouth_motion_forward.2} parent=0 // pred_check_branch
    %55 = sbr.rel (0) target = $region49
  $region48: #{mouth_motion_forward.2} parent=0 // pred_region
    _
  $region49: #{mouth_motion_forward.2} parent=0 // pred_fallthru
    _
  // Predicated region
  $region50: #{mouth_motion_forward.2} parent=0 // pred_check
    _
  $region51: #{mouth_motion_forward.2} parent=0 // pred_check_branch
    %57 = sbr.rel (0) target = $region53
  $region52: #{mouth_motion_forward.2} parent=0 // pred_region
    _
  $region53: #{mouth_motion_forward.2} parent=0 // pred_fallthru
    _
  // Predicated region
  $region54: #{mouth_motion_forward.2} parent=0 // pred_check
    _
  $region55: #{mouth_motion_forward.2} parent=0 // pred_check_branch
    %59 = sbr.rel (0) target = $region57
  $region56: #{mouth_motion_forward.2} parent=0 // pred_region
    _
  $region57: #{mouth_motion_forward.2} parent=0 // pred_fallthru
    _
  // Predicated region
  $region58: #{mouth_motion_forward.2} parent=0 // pred_check
    _
  $region59: #{mouth_motion_forward.2} parent=0 // pred_check_branch
    %61 = sbr.rel (0) target = $region61
  $region60: #{mouth_motion_forward.2} parent=0 // pred_region
    _
  $region61: #{mouth_motion_forward.2} parent=0 // pred_fallthru
    _
  // Predicated region
  $region62: #{mouth_motion_forward.2} parent=0 // pred_check
    _
  $region63: #{mouth_motion_forward.2} parent=0 // pred_check_branch
    %63 = sbr.rel (0) target = $region65
  $region64: #{mouth_motion_forward.2} parent=0 // pred_region
    _
  $region65: #{mouth_motion_forward.2} parent=0 // pred_fallthru
    _
  // Predicated region
  $region66: #{mouth_motion_forward.2} parent=0 // pred_check
    _
  $region67: #{mouth_motion_forward.2} parent=0 // pred_check_branch
    %65 = sbr.rel (0) target = $region69
  $region68: #{mouth_motion_forward.2} parent=0 // pred_region
    _
  $region69: #{mouth_motion_forward.2} parent=0 // pred_fallthru
    _
  // Predicated region
  $region70: #{mouth_motion_forward.2} parent=0 // pred_check
    _
  $region71: #{mouth_motion_forward.2} parent=0 // pred_check_branch
    %67 = sbr.rel (0) target = $region73
  $region72: #{mouth_motion_forward.2} parent=0 // pred_region
    _
  $region73: #{mouth_motion_forward.2} parent=0 // pred_fallthru
    _
  // Predicated region
  $region74: #{mouth_motion_forward.2} parent=0 // pred_check
    _
  $region75: #{mouth_motion_forward.2} parent=0 // pred_check_branch
    %69 = sbr.rel (0) target = $region77
  $region76: #{mouth_motion_forward.2} parent=0 // pred_region
    _
  $region77: #{mouth_motion_forward.2} parent=0 // pred_fallthru
    _
  // Predicated region
  $region78: #{mouth_motion_forward.2} parent=0 // pred_check
    _
  $region79: #{mouth_motion_forward.2} parent=0 // pred_check_branch
    %71 = sbr.rel (0) target = $region81
  $region80: #{mouth_motion_forward.2} parent=0 // pred_region
    _
  $region81: #{mouth_motion_forward.2} parent=0 // pred_fallthru
    _
  // Predicated region
  $region82: #{mouth_motion_forward.2} parent=0 // pred_check
    _
  $region83: #{mouth_motion_forward.2} parent=0 // pred_check_branch
    %73 = sbr.rel (0) target = $region85
  $region84: #{mouth_motion_forward.2} parent=0 // pred_region
    _
  $region85: #{mouth_motion_forward.2} parent=0 // pred_fallthru
    _
  // Predicated region
  $region86: #{mouth_motion_forward.2} parent=0 // pred_check
    _
  $region87: #{mouth_motion_forward.2} parent=0 // pred_check_branch
    %75 = sbr.rel (0) target = $region89
  $region88: #{mouth_motion_forward.2} parent=0 // pred_region
    _
  $region89: #{mouth_motion_forward.2} parent=0 // pred_fallthru
    _
  // Predicated region
  $region90: #{mouth_motion_forward.2} parent=0 // pred_check
    _
  $region91: #{mouth_motion_forward.2} parent=0 // pred_check_branch
    %77 = sbr.rel (0) target = $region93
  $region92: #{mouth_motion_forward.2} parent=0 // pred_region
    _
  $region93: #{mouth_motion_forward.2} parent=0 // pred_fallthru
    _
  // Predicated region
  $region94: #{mouth_motion_forward.2} parent=0 // pred_check
    _
  $region95: #{mouth_motion_forward.2} parent=0 // pred_check_branch
    %79 = sbr.rel (0) target = $region97
  $region96: #{mouth_motion_forward.2} parent=0 // pred_region
    _
  $region97: #{mouth_motion_forward.2} parent=0 // pred_fallthru
    _
  // Predicated region
  $region98: #{mouth_motion_forward.2} parent=0 // pred_check
    _
  $region99: #{mouth_motion_forward.2} parent=0 // pred_check_branch
    %81 = sbr.rel (0) target = $region101
  $region100: #{mouth_motion_forward.2} parent=0 // pred_region
    _
  $region101: #{mouth_motion_forward.2} parent=0 // pred_fallthru
    _
  %v82 = vld [vmem:[%s0] sm:$0xff]
  %v83 = vld [vmem:[%s0 + $0x8] sm:$0xff]
  %v84 = vld [vmem:[%s0 + $0x10] sm:$0xff]
  %v85 = vld [vmem:[%s0 + $0x18] sm:$0xff]
  %v86 = vld [vmem:[%s0 + $0x20] sm:$0xff]
  %v87 = vld [vmem:[%s0 + $0x28] sm:$0xff]
  %v88 = vld [vmem:[%s0 + $0x30] sm:$0xff]
  %v89 = vld [vmem:[%s0 + $0x38] sm:$0xff]
  %v90 = vld [vmem:[%s0 + $0x40] sm:$0xff]
  %v91 = vld [vmem:[%s0 + $0x48] sm:$0xff]
  %v92 = vld [vmem:[%s0 + $0x50] sm:$0xff]
  %v93 = vld [vmem:[%s0 + $0x58] sm:$0xff]
  %v94 = vld [vmem:[%s0 + $0x60] sm:$0xff]
  %v95 = vld [vmem:[%s0 + $0x68] sm:$0xff]
  %v96 = vld [vmem:[%s0 + $0x70] sm:$0xff]
  %v97 = vld [vmem:[%s0 + $0x78] sm:$0xff]
  %v98 = vld [vmem:[%s1] sm:$0xff]
  %v99 = vld [vmem:[%s1 + $0x8] sm:$0xff]
  %v100 = vld [vmem:[%s1 + $0x10] sm:$0xff]
  %v101 = vld [vmem:[%s1 + $0x18] sm:$0x1f]
  %s102 = scalar_lea.vmem %s1, 32
  %v103 = vld [vmem:[%s102] sm:$0xff]
  %v104 = vld [vmem:[%s102 + $0x8] sm:$0xff]
  %v105 = vld [vmem:[%s102 + $0x10] sm:$0xff]
  %v106 = vld [vmem:[%s102 + $0x18] sm:$0x1f]
  %s107 = scalar_lea.vmem %s1, 64
  %v108 = vld [vmem:[%s107] sm:$0xff]
  %v109 = vld [vmem:[%s107 + $0x8] sm:$0xff]
  %v110 = vld [vmem:[%s107 + $0x10] sm:$0xff]
  %v111 = vld [vmem:[%s107 + $0x18] sm:$0x1f]
  %vm112 = vcmask 236544
  %v114 = vsel %vm112, %v82, 0
  %v117 = vsel %vm112, %v84, 0
  %v120 = vsel %vm112, %v86, 0
  %v123 = vsel %vm112, %v88, 0
  %v126 = vsel %vm112, %v90, 0
  %v129 = vsel %vm112, %v92, 0
  %v132 = vsel %vm112, %v94, 0
  %v135 = vsel %vm112, %v96, 0
  %vm137 = vcmask 1044480
  %v139 = vsel %vm137, %v106, 0
  %141 = vmatprep.subr.mxu0 0.0
  %142 = vmatpush1.msra.mxu0 %v103
  %143 = vmatprep.subr.mxu0 0.0
  %144 = vmatpush1.msra.mxu0 %v104
  %145 = vmatprep.subr.mxu0 0.0
  %146 = vmatpush1.msra.mxu0 %v105
  %147 = vmatprep.subr.mxu0 0.0
  %148 = vmatpush1.msra.mxu0 %v139
  %149 = vmatprep.subr.mxu0 0.0
  %150 = vmatpush1.msra.mxu0 0.0
  %151 = vmatprep.subr.mxu0 0.0
  %152 = vmatpush1.msra.mxu0 0.0
  %153 = vmatprep.subr.mxu0 0.0
  %154 = vmatpush1.msra.mxu0 0.0
  %155 = vmatprep.subr.mxu0 0.0
  %156 = vmatpush1.msra.mxu0 0.0
  %157 = vmatprep.subr.mxu0 0.0
  %158 = vmatpush1.msra.mxu0 0.0
  %159 = vmatprep.subr.mxu0 0.0
  %160 = vmatpush1.msra.mxu0 0.0
  %161 = vmatprep.subr.mxu0 0.0
  %162 = vmatpush1.msra.mxu0 0.0
  %163 = vmatprep.subr.mxu0 0.0
  %164 = vmatpush1.msra.mxu0 0.0
  %165 = vmatprep.subr.mxu0 0.0
  %166 = vmatpush1.msra.mxu0 0.0
  %167 = vmatprep.subr.mxu0 0.0
  %168 = vmatpush1.msra.mxu0 0.0
  %169 = vmatprep.subr.mxu0 0.0
  %170 = vmatpush1.msra.mxu0 0.0
  %171 = vmatprep.subr.mxu0 0.0
  %172 = vmatpush1.msra.mxu0 0.0
  %173 = vmatprep.subr.mxu0 0.0
  %174 = vmatpush1.msra.mxu0 0.0
  %175 = vmatprep.subr.mxu0 0.0
  %176 = vmatpush1.msra.mxu0 0.0
  %177 = vmatprep.subr.mxu0 0.0
  %178 = vmatpush1.msra.mxu0 0.0
  %179 = vmatprep.subr.mxu0 0.0
  %180 = vmatpush1.msra.mxu0 0.0
  %181 = vmatprep.subr.mxu0 0.0
  %182 = vmatpush1.msra.mxu0 0.0
  %183 = vmatprep.subr.mxu0 0.0
  %184 = vmatpush1.msra.mxu0 0.0
  %185 = vmatprep.subr.mxu0 0.0
  %186 = vmatpush1.msra.mxu0 0.0
  %187 = vmatprep.subr.mxu0 0.0
  %188 = vmatpush1.msra.mxu0 0.0
  %189 = vmatprep.subr.mxu0 0.0
  %190 = vmatpush1.msra.mxu0 0.0
  %191 = vmatprep.subr.mxu0 0.0
  %192 = vmatpush1.msra.mxu0 0.0
  %193 = vmatprep.subr.mxu0 0.0
  %194 = vmatpush1.msra.mxu0 0.0
  %195 = vmatprep.subr.mxu0 0.0
  %196 = vmatpush1.msra.mxu0 0.0
  %197 = vmatprep.subr.mxu0 0.0
  %198 = vmatpush1.msra.mxu0 0.0
  %199 = vmatprep.subr.mxu0 0.0
  %200 = vmatpush1.msra.mxu0 0.0
  %201 = vmatprep.subr.mxu0 0.0
  %202 = vmatpush1.msra.mxu0 0.0
  %203 = vmatprep.subr.mxu0 0.0
  %204 = vmatpush1.msra.mxu0 0.0
  %205 = vmatprep.mubr.f32.mxu0 0.0
  %206 = vmatmul.mubr.f32.gmra.mrb[0].mxu0 %v114
  %v207 = vpop.f32.mrb[0].mxu0
  %v208 = vadd.f32 0.0, %v207
  %v209 = vpop.f32.mrb[0].mxu0
  %210 = vmatprep.mubr.f32.mxu0 0.0
  %211 = vmatmul.mubr.f32.gmra.mrb[0].mxu0 %v117
  %v212 = vpop.f32.mrb[0].mxu0
  %v213 = vadd.f32 0.0, %v212
  %v214 = vpop.f32.mrb[0].mxu0
  %215 = vmatprep.mubr.f32.mxu0 0.0
  %216 = vmatmul.mubr.f32.gmra.mrb[0].mxu0 %v120
  %v217 = vpop.f32.mrb[0].mxu0
  %v218 = vadd.f32 0.0, %v217
  %v219 = vpop.f32.mrb[0].mxu0
  %220 = vmatprep.mubr.f32.mxu0 0.0
  %221 = vmatmul.mubr.f32.gmra.mrb[0].mxu0 %v123
  %v222 = vpop.f32.mrb[0].mxu0
  %v223 = vadd.f32 0.0, %v222
  %v224 = vpop.f32.mrb[0].mxu0
  %225 = vmatprep.mubr.f32.mxu0 0.0
  %226 = vmatmul.mubr.f32.gmra.mrb[0].mxu0 %v126
  %v227 = vpop.f32.mrb[0].mxu0
  %v228 = vadd.f32 0.0, %v227
  %v229 = vpop.f32.mrb[0].mxu0
  %230 = vmatprep.mubr.f32.mxu0 0.0
  %231 = vmatmul.mubr.f32.gmra.mrb[0].mxu0 %v129
  %v232 = vpop.f32.mrb[0].mxu0
  %v233 = vadd.f32 0.0, %v232
  %v234 = vpop.f32.mrb[0].mxu0
  %235 = vmatprep.mubr.f32.mxu0 0.0
  %236 = vmatmul.mubr.f32.gmra.mrb[0].mxu0 %v132
  %v237 = vpop.f32.mrb[0].mxu0
  %v238 = vadd.f32 0.0, %v237
  %v239 = vpop.f32.mrb[0].mxu0
  %240 = vmatprep.mubr.f32.mxu0 0.0
  %241 = vmatmul.mubr.f32.gmra.mrb[0].mxu0 %v135
  %v242 = vpop.f32.mrb[0].mxu0
  %v243 = vadd.f32 0.0, %v242
  %v244 = vpop.f32.mrb[0].mxu0
  %245 = vdwg.mxu0
  %v247 = vsel %vm112, 0.0, 0
  %v250 = vsel %vm112, %v83, 0
  %v253 = vsel %vm112, %v85, 0
  %v256 = vsel %vm112, %v87, 0
  %v259 = vsel %vm112, %v89, 0
  %v262 = vsel %vm112, %v91, 0
  %v265 = vsel %vm112, %v93, 0
  %v268 = vsel %vm112, %v95, 0
  %v271 = vsel %vm137, %v101, 0
  %273 = vmatprep.subr.mxu0 0.0
  %274 = vmatpush1.msra.mxu0 %v98
  %275 = vmatprep.subr.mxu0 0.0
  %276 = vmatpush1.msra.mxu0 %v99
  %277 = vmatprep.subr.mxu0 0.0
  %278 = vmatpush1.msra.mxu0 %v100
  %279 = vmatprep.subr.mxu0 0.0
  %280 = vmatpush1.msra.mxu0 %v271
  %281 = vmatprep.subr.mxu0 0.0
  %282 = vmatpush1.msra.mxu0 0.0
  %283 = vmatprep.subr.mxu0 0.0
  %284 = vmatpush1.msra.mxu0 0.0
  %285 = vmatprep.subr.mxu0 0.0
  %286 = vmatpush1.msra.mxu0 0.0
  %287 = vmatprep.subr.mxu0 0.0
  %288 = vmatpush1.msra.mxu0 0.0
  %289 = vmatprep.subr.mxu0 0.0
  %290 = vmatpush1.msra.mxu0 0.0
  %291 = vmatprep.subr.mxu0 0.0
  %292 = vmatpush1.msra.mxu0 0.0
  %293 = vmatprep.subr.mxu0 0.0
  %294 = vmatpush1.msra.mxu0 0.0
  %295 = vmatprep.subr.mxu0 0.0
  %296 = vmatpush1.msra.mxu0 0.0
  %297 = vmatprep.subr.mxu0 0.0
  %298 = vmatpush1.msra.mxu0 0.0
  %299 = vmatprep.subr.mxu0 0.0
  %300 = vmatpush1.msra.mxu0 0.0
  %301 = vmatprep.subr.mxu0 0.0
  %302 = vmatpush1.msra.mxu0 0.0
  %303 = vmatprep.subr.mxu0 0.0
  %304 = vmatpush1.msra.mxu0 0.0
  %305 = vmatprep.subr.mxu0 0.0
  %306 = vmatpush1.msra.mxu0 0.0
  %307 = vmatprep.subr.mxu0 0.0
  %308 = vmatpush1.msra.mxu0 0.0
  %309 = vmatprep.subr.mxu0 0.0
  %310 = vmatpush1.msra.mxu0 0.0
  %311 = vmatprep.subr.mxu0 0.0
  %312 = vmatpush1.msra.mxu0 0.0
  %313 = vmatprep.subr.mxu0 0.0
  %314 = vmatpush1.msra.mxu0 0.0
  %315 = vmatprep.subr.mxu0 0.0
  %316 = vmatpush1.msra.mxu0 0.0
  %317 = vmatprep.subr.mxu0 0.0
  %318 = vmatpush1.msra.mxu0 0.0
  %319 = vmatprep.subr.mxu0 0.0
  %320 = vmatpush1.msra.mxu0 0.0
  %321 = vmatprep.subr.mxu0 0.0
  %322 = vmatpush1.msra.mxu0 0.0
  %323 = vmatprep.subr.mxu0 0.0
  %324 = vmatpush1.msra.mxu0 0.0
  %325 = vmatprep.subr.mxu0 0.0
  %326 = vmatpush1.msra.mxu0 0.0
  %327 = vmatprep.subr.mxu0 0.0
  %328 = vmatpush1.msra.mxu0 0.0
  %329 = vmatprep.subr.mxu0 0.0
  %330 = vmatpush1.msra.mxu0 0.0
  %331 = vmatprep.subr.mxu0 0.0
  %332 = vmatpush1.msra.mxu0 0.0
  %333 = vmatprep.subr.mxu0 0.0
  %334 = vmatpush1.msra.mxu0 0.0
  %335 = vmatprep.subr.mxu0 0.0
  %336 = vmatpush1.msra.mxu0 0.0
  %337 = vmatprep.mubr.f32.mxu0 0.0
  %338 = vmatmul.mubr.f32.gmra.mrb[0].mxu0 %v247
  %v339 = vpop.f32.mrb[0].mxu0
  %v340 = vadd.f32 %v208, %v339
  %v341 = vpop.f32.mrb[0].mxu0
  %342 = vmatprep.mubr.f32.mxu0 0.0
  %343 = vmatmul.mubr.f32.gmra.mrb[0].mxu0 %v250
  %v344 = vpop.f32.mrb[0].mxu0
  %v345 = vadd.f32 %v213, %v344
  %v346 = vpop.f32.mrb[0].mxu0
  %347 = vmatprep.mubr.f32.mxu0 0.0
  %348 = vmatmul.mubr.f32.gmra.mrb[0].mxu0 %v253
  %v349 = vpop.f32.mrb[0].mxu0
  %v350 = vadd.f32 %v218, %v349
  %v351 = vpop.f32.mrb[0].mxu0
  %352 = vmatprep.mubr.f32.mxu0 0.0
  %353 = vmatmul.mubr.f32.gmra.mrb[0].mxu0 %v256
  %v354 = vpop.f32.mrb[0].mxu0
  %v355 = vadd.f32 %v223, %v354
  %v356 = vpop.f32.mrb[0].mxu0
  %357 = vmatprep.mubr.f32.mxu0 0.0
  %358 = vmatmul.mubr.f32.gmra.mrb[0].mxu0 %v259
  %v359 = vpop.f32.mrb[0].mxu0
  %v360 = vadd.f32 %v228, %v359
  %v361 = vpop.f32.mrb[0].mxu0
  %362 = vmatprep.mubr.f32.mxu0 0.0
  %363 = vmatmul.mubr.f32.gmra.mrb[0].mxu0 %v262
  %v364 = vpop.f32.mrb[0].mxu0
  %v365 = vadd.f32 %v233, %v364
  %v366 = vpop.f32.mrb[0].mxu0
  %367 = vmatprep.mubr.f32.mxu0 0.0
  %368 = vmatmul.mubr.f32.gmra.mrb[0].mxu0 %v265
  %v369 = vpop.f32.mrb[0].mxu0
  %v370 = vadd.f32 %v238, %v369
  %v371 = vpop.f32.mrb[0].mxu0
  %372 = vmatprep.mubr.f32.mxu0 0.0
  %373 = vmatmul.mubr.f32.gmra.mrb[0].mxu0 %v268
  %v374 = vpop.f32.mrb[0].mxu0
  %v375 = vadd.f32 %v243, %v374
  %v376 = vpop.f32.mrb[0].mxu0
  %377 = vdwg.mxu0
  %v379 = vsel %vm112, %v97, 0
  %v382 = vsel %vm137, %v111, 0
  %384 = vmatprep.subr.mxu0 0.0
  %385 = vmatpush1.msra.mxu0 %v108
  %386 = vmatprep.subr.mxu0 0.0
  %387 = vmatpush1.msra.mxu0 %v109
  %388 = vmatprep.subr.mxu0 0.0
  %389 = vmatpush1.msra.mxu0 %v110
  %390 = vmatprep.subr.mxu0 0.0
  %391 = vmatpush1.msra.mxu0 %v382
  %392 = vmatprep.subr.mxu0 0.0
  %393 = vmatpush1.msra.mxu0 0.0
  %394 = vmatprep.subr.mxu0 0.0
  %395 = vmatpush1.msra.mxu0 0.0
  %396 = vmatprep.subr.mxu0 0.0
  %397 = vmatpush1.msra.mxu0 0.0
  %398 = vmatprep.subr.mxu0 0.0
  %399 = vmatpush1.msra.mxu0 0.0
  %400 = vmatprep.subr.mxu0 0.0
  %401 = vmatpush1.msra.mxu0 0.0
  %402 = vmatprep.subr.mxu0 0.0
  %403 = vmatpush1.msra.mxu0 0.0
  %404 = vmatprep.subr.mxu0 0.0
  %405 = vmatpush1.msra.mxu0 0.0
  %406 = vmatprep.subr.mxu0 0.0
  %407 = vmatpush1.msra.mxu0 0.0
  %408 = vmatprep.subr.mxu0 0.0
  %409 = vmatpush1.msra.mxu0 0.0
  %410 = vmatprep.subr.mxu0 0.0
  %411 = vmatpush1.msra.mxu0 0.0
  %412 = vmatprep.subr.mxu0 0.0
  %413 = vmatpush1.msra.mxu0 0.0
  %414 = vmatprep.subr.mxu0 0.0
  %415 = vmatpush1.msra.mxu0 0.0
  %416 = vmatprep.subr.mxu0 0.0
  %417 = vmatpush1.msra.mxu0 0.0
  %418 = vmatprep.subr.mxu0 0.0
  %419 = vmatpush1.msra.mxu0 0.0
  %420 = vmatprep.subr.mxu0 0.0
  %421 = vmatpush1.msra.mxu0 0.0
  %422 = vmatprep.subr.mxu0 0.0
  %423 = vmatpush1.msra.mxu0 0.0
  %424 = vmatprep.subr.mxu0 0.0
  %425 = vmatpush1.msra.mxu0 0.0
  %426 = vmatprep.subr.mxu0 0.0
  %427 = vmatpush1.msra.mxu0 0.0
  %428 = vmatprep.subr.mxu0 0.0
  %429 = vmatpush1.msra.mxu0 0.0
  %430 = vmatprep.subr.mxu0 0.0
  %431 = vmatpush1.msra.mxu0 0.0
  %432 = vmatprep.subr.mxu0 0.0
  %433 = vmatpush1.msra.mxu0 0.0
  %434 = vmatprep.subr.mxu0 0.0
  %435 = vmatpush1.msra.mxu0 0.0
  %436 = vmatprep.subr.mxu0 0.0
  %437 = vmatpush1.msra.mxu0 0.0
  %438 = vmatprep.subr.mxu0 0.0
  %439 = vmatpush1.msra.mxu0 0.0
  %440 = vmatprep.subr.mxu0 0.0
  %441 = vmatpush1.msra.mxu0 0.0
  %442 = vmatprep.subr.mxu0 0.0
  %443 = vmatpush1.msra.mxu0 0.0
  %444 = vmatprep.subr.mxu0 0.0
  %445 = vmatpush1.msra.mxu0 0.0
  %446 = vmatprep.subr.mxu0 0.0
  %447 = vmatpush1.msra.mxu0 0.0
  %448 = vmatprep.mubr.f32.mxu0 0.0
  %449 = vmatmul.mubr.f32.gmra.mrb[0].mxu0 %v250
  %v450 = vpop.f32.mrb[0].mxu0
  %v451 = vadd.f32 0.0, %v450
  %v452 = vpop.f32.mrb[0].mxu0
  %453 = vmatprep.mubr.f32.mxu0 0.0
  %454 = vmatmul.mubr.f32.gmra.mrb[0].mxu0 %v253
  %v455 = vpop.f32.mrb[0].mxu0
  %v456 = vadd.f32 0.0, %v455
  %v457 = vpop.f32.mrb[0].mxu0
  %458 = vmatprep.mubr.f32.mxu0 0.0
  %459 = vmatmul.mubr.f32.gmra.mrb[0].mxu0 %v256
  %v460 = vpop.f32.mrb[0].mxu0
  %v461 = vadd.f32 0.0, %v460
  %v462 = vpop.f32.mrb[0].mxu0
  %463 = vmatprep.mubr.f32.mxu0 0.0
  %464 = vmatmul.mubr.f32.gmra.mrb[0].mxu0 %v259
  %v465 = vpop.f32.mrb[0].mxu0
  %v466 = vadd.f32 0.0, %v465
  %v467 = vpop.f32.mrb[0].mxu0
  %468 = vmatprep.mubr.f32.mxu0 0.0
  %469 = vmatmul.mubr.f32.gmra.mrb[0].mxu0 %v262
  %v470 = vpop.f32.mrb[0].mxu0
  %v471 = vadd.f32 0.0, %v470
  %v472 = vpop.f32.mrb[0].mxu0
  %473 = vmatprep.mubr.f32.mxu0 0.0
  %474 = vmatmul.mubr.f32.gmra.mrb[0].mxu0 %v265
  %v475 = vpop.f32.mrb[0].mxu0
  %v476 = vadd.f32 0.0, %v475
  %v477 = vpop.f32.mrb[0].mxu0
  %478 = vmatprep.mubr.f32.mxu0 0.0
  %479 = vmatmul.mubr.f32.gmra.mrb[0].mxu0 %v268
  %v480 = vpop.f32.mrb[0].mxu0
  %v481 = vadd.f32 0.0, %v480
  %v482 = vpop.f32.mrb[0].mxu0
  %483 = vmatprep.mubr.f32.mxu0 0.0
  %484 = vmatmul.mubr.f32.gmra.mrb[0].mxu0 %v379
  %v485 = vpop.f32.mrb[0].mxu0
  %v486 = vadd.f32 0.0, %v485
  %v487 = vpop.f32.mrb[0].mxu0
  %488 = vdwg.mxu0
  %v489 = vadd.f32 %v340, %v451
  %v490 = vadd.f32 %v345, %v456
  %v491 = vadd.f32 %v350, %v461
  %v492 = vadd.f32 %v355, %v466
  %v493 = vadd.f32 %v360, %v471
  %v494 = vadd.f32 %v365, %v476
  %v495 = vadd.f32 %v370, %v481
  %v496 = vadd.f32 %v375, %v486
  %v497 = vld [vmem:[%s2] sm:$0x1]
  %v499 = vlaneseq
  %v500 = vshrl.u32 %v499, 7
  %v501 = vsub.s32 0, %v500
  %v502 = vrot.slane %v497, %v501
  %v504 = vadd.f32 %v489, %v502
  %v505 = vadd.f32 %v490, %v502
  %v506 = vadd.f32 %v491, %v502
  %v507 = vadd.f32 %v492, %v502
  %v508 = vadd.f32 %v493, %v502
  %v509 = vadd.f32 %v494, %v502
  %v510 = vadd.f32 %v495, %v502
  %v511 = vadd.f32 %v496, %v502
  %vm512 = vcmp.ge.f32.partialorder %v504, 0.0
  %vm513 = vcmp.ge.f32.partialorder %v505, 0.0
  %vm514 = vcmp.ge.f32.partialorder %v506, 0.0
  %vm515 = vcmp.ge.f32.partialorder %v507, 0.0
  %vm516 = vcmp.ge.f32.partialorder %v508, 0.0
  %vm517 = vcmp.ge.f32.partialorder %v509, 0.0
  %vm518 = vcmp.ge.f32.partialorder %v510, 0.0
  %vm519 = vcmp.ge.f32.partialorder %v511, 0.0
  %v520 = vmul.f32 %v504, 0.02
  %v521 = vmul.f32 %v505, 0.02
  %v522 = vmul.f32 %v506, 0.02
  %v523 = vmul.f32 %v507, 0.02
  %v524 = vmul.f32 %v508, 0.02
  %v525 = vmul.f32 %v509, 0.02
  %v526 = vmul.f32 %v510, 0.02
  %v527 = vmul.f32 %v511, 0.02
  %v528 = vsel %vm512, %v504, %v520
  %v529 = vsel %vm513, %v505, %v521
  %v530 = vsel %vm514, %v506, %v522
  %v531 = vsel %vm515, %v507, %v523
  %v532 = vsel %vm516, %v508, %v524
  %v533 = vsel %vm517, %v509, %v525
  %v534 = vsel %vm518, %v510, %v526
  %v535 = vsel %vm519, %v511, %v527
  %v536 = vld [vmem:[%s3] sm:$0xff]
  %v537 = vld [vmem:[%s3 + $0x8] sm:$0xff]
  %v538 = vld [vmem:[%s3 + $0x10] sm:$0xff]
  %v539 = vld [vmem:[%s3 + $0x18] sm:$0xff]
  %s540 = scalar_lea.vmem %s3, 32
  %v541 = vld [vmem:[%s540] sm:$0xff]
  %v542 = vld [vmem:[%s540 + $0x8] sm:$0xff]
  %v543 = vld [vmem:[%s540 + $0x10] sm:$0xff]
  %v544 = vld [vmem:[%s540 + $0x18] sm:$0xff]
  %s545 = scalar_lea.vmem %s3, 64
  %v546 = vld [vmem:[%s545] sm:$0xff]
  %v547 = vld [vmem:[%s545 + $0x8] sm:$0xff]
  %v548 = vld [vmem:[%s545 + $0x10] sm:$0xff]
  %v549 = vld [vmem:[%s545 + $0x18] sm:$0xff]
  %vm550 = vcmask 261120
  %v552 = vsel %vm550, %v528, 0
  %v555 = vsel %vm550, %v530, 0
  %v558 = vsel %vm550, %v532, 0
  %v561 = vsel %vm550, %v534, 0
  %563 = vmatprep.subr.mxu0 0.0
  %564 = vmatpush1.msra.mxu0 %v541
  %565 = vmatprep.subr.mxu0 0.0
  %566 = vmatpush1.msra.mxu0 %v542
  %567 = vmatprep.subr.mxu0 0.0
  %568 = vmatpush1.msra.mxu0 %v543
  %569 = vmatprep.subr.mxu0 0.0
  %570 = vmatpush1.msra.mxu0 %v544
  %571 = vmatprep.subr.mxu0 0.0
  %572 = vmatpush1.msra.mxu0 0.0
  %573 = vmatprep.subr.mxu0 0.0
  %574 = vmatpush1.msra.mxu0 0.0
  %575 = vmatprep.subr.mxu0 0.0
  %576 = vmatpush1.msra.mxu0 0.0
  %577 = vmatprep.subr.mxu0 0.0
  %578 = vmatpush1.msra.mxu0 0.0
  %579 = vmatprep.subr.mxu0 0.0
  %580 = vmatpush1.msra.mxu0 0.0
  %581 = vmatprep.subr.mxu0 0.0
  %582 = vmatpush1.msra.mxu0 0.0
  %583 = vmatprep.subr.mxu0 0.0
  %584 = vmatpush1.msra.mxu0 0.0
  %585 = vmatprep.subr.mxu0 0.0
  %586 = vmatpush1.msra.mxu0 0.0
  %587 = vmatprep.subr.mxu0 0.0
  %588 = vmatpush1.msra.mxu0 0.0
  %589 = vmatprep.subr.mxu0 0.0
  %590 = vmatpush1.msra.mxu0 0.0
  %591 = vmatprep.subr.mxu0 0.0
  %592 = vmatpush1.msra.mxu0 0.0
  %593 = vmatprep.subr.mxu0 0.0
  %594 = vmatpush1.msra.mxu0 0.0
  %595 = vmatprep.subr.mxu0 0.0
  %596 = vmatpush1.msra.mxu0 0.0
  %597 = vmatprep.subr.mxu0 0.0
  %598 = vmatpush1.msra.mxu0 0.0
  %599 = vmatprep.subr.mxu0 0.0
  %600 = vmatpush1.msra.mxu0 0.0
  %601 = vmatprep.subr.mxu0 0.0
  %602 = vmatpush1.msra.mxu0 0.0
  %603 = vmatprep.subr.mxu0 0.0
  %604 = vmatpush1.msra.mxu0 0.0
  %605 = vmatprep.subr.mxu0 0.0
  %606 = vmatpush1.msra.mxu0 0.0
  %607 = vmatprep.subr.mxu0 0.0
  %608 = vmatpush1.msra.mxu0 0.0
  %609 = vmatprep.subr.mxu0 0.0
  %610 = vmatpush1.msra.mxu0 0.0
  %611 = vmatprep.subr.mxu0 0.0
  %612 = vmatpush1.msra.mxu0 0.0
  %613 = vmatprep.subr.mxu0 0.0
  %614 = vmatpush1.msra.mxu0 0.0
  %615 = vmatprep.subr.mxu0 0.0
  %616 = vmatpush1.msra.mxu0 0.0
  %617 = vmatprep.subr.mxu0 0.0
  %618 = vmatpush1.msra.mxu0 0.0
  %619 = vmatprep.subr.mxu0 0.0
  %620 = vmatpush1.msra.mxu0 0.0
  %621 = vmatprep.subr.mxu0 0.0
  %622 = vmatpush1.msra.mxu0 0.0
  %623 = vmatprep.subr.mxu0 0.0
  %624 = vmatpush1.msra.mxu0 0.0
  %625 = vmatprep.subr.mxu0 0.0
  %626 = vmatpush1.msra.mxu0 0.0
  %627 = vmatprep.mubr.f32.mxu0 0.0
  %628 = vmatmul.mubr.f32.gmra.mrb[0].mxu0 %v552
  %v629 = vpop.f32.mrb[0].mxu0
  %v630 = vadd.f32 0.0, %v629
  %v631 = vpop.f32.mrb[0].mxu0
  %632 = vmatprep.mubr.f32.mxu0 0.0
  %633 = vmatmul.mubr.f32.gmra.mrb[0].mxu0 %v555
  %v634 = vpop.f32.mrb[0].mxu0
  %v635 = vadd.f32 0.0, %v634
  %v636 = vpop.f32.mrb[0].mxu0
  %637 = vmatprep.mubr.f32.mxu0 0.0
  %638 = vmatmul.mubr.f32.gmra.mrb[0].mxu0 %v558
  %v639 = vpop.f32.mrb[0].mxu0
  %v640 = vadd.f32 0.0, %v639
  %v641 = vpop.f32.mrb[0].mxu0
  %642 = vmatprep.mubr.f32.mxu0 0.0
  %643 = vmatmul.mubr.f32.gmra.mrb[0].mxu0 %v561
  %v644 = vpop.f32.mrb[0].mxu0
  %v645 = vadd.f32 0.0, %v644
  %v646 = vpop.f32.mrb[0].mxu0
  %647 = vdwg.mxu0
  %v648 = vsel %vm550, 0.0, 0
  %v651 = vsel %vm550, %v529, 0
  %v654 = vsel %vm550, %v531, 0
  %v657 = vsel %vm550, %v533, 0
  %659 = vmatprep.subr.mxu0 0.0
  %660 = vmatpush1.msra.mxu0 %v536
  %661 = vmatprep.subr.mxu0 0.0
  %662 = vmatpush1.msra.mxu0 %v537
  %663 = vmatprep.subr.mxu0 0.0
  %664 = vmatpush1.msra.mxu0 %v538
  %665 = vmatprep.subr.mxu0 0.0
  %666 = vmatpush1.msra.mxu0 %v539
  %667 = vmatprep.subr.mxu0 0.0
  %668 = vmatpush1.msra.mxu0 0.0
  %669 = vmatprep.subr.mxu0 0.0
  %670 = vmatpush1.msra.mxu0 0.0
  %671 = vmatprep.subr.mxu0 0.0
  %672 = vmatpush1.msra.mxu0 0.0
  %673 = vmatprep.subr.mxu0 0.0
  %674 = vmatpush1.msra.mxu0 0.0
  %675 = vmatprep.subr.mxu0 0.0
  %676 = vmatpush1.msra.mxu0 0.0
  %677 = vmatprep.subr.mxu0 0.0
  %678 = vmatpush1.msra.mxu0 0.0
  %679 = vmatprep.subr.mxu0 0.0
  %680 = vmatpush1.msra.mxu0 0.0
  %681 = vmatprep.subr.mxu0 0.0
  %682 = vmatpush1.msra.mxu0 0.0
  %683 = vmatprep.subr.mxu0 0.0
  %684 = vmatpush1.msra.mxu0 0.0
  %685 = vmatprep.subr.mxu0 0.0
  %686 = vmatpush1.msra.mxu0 0.0
  %687 = vmatprep.subr.mxu0 0.0
  %688 = vmatpush1.msra.mxu0 0.0
  %689 = vmatprep.subr.mxu0 0.0
  %690 = vmatpush1.msra.mxu0 0.0
  %691 = vmatprep.subr.mxu0 0.0
  %692 = vmatpush1.msra.mxu0 0.0
  %693 = vmatprep.subr.mxu0 0.0
  %694 = vmatpush1.msra.mxu0 0.0
  %695 = vmatprep.subr.mxu0 0.0
  %696 = vmatpush1.msra.mxu0 0.0
  %697 = vmatprep.subr.mxu0 0.0
  %698 = vmatpush1.msra.mxu0 0.0
  %699 = vmatprep.subr.mxu0 0.0
  %700 = vmatpush1.msra.mxu0 0.0
  %701 = vmatprep.subr.mxu0 0.0
  %702 = vmatpush1.msra.mxu0 0.0
  %703 = vmatprep.subr.mxu0 0.0
  %704 = vmatpush1.msra.mxu0 0.0
  %705 = vmatprep.subr.mxu0 0.0
  %706 = vmatpush1.msra.mxu0 0.0
  %707 = vmatprep.subr.mxu0 0.0
  %708 = vmatpush1.msra.mxu0 0.0
  %709 = vmatprep.subr.mxu0 0.0
  %710 = vmatpush1.msra.mxu0 0.0
  %711 = vmatprep.subr.mxu0 0.0
  %712 = vmatpush1.msra.mxu0 0.0
  %713 = vmatprep.subr.mxu0 0.0
  %714 = vmatpush1.msra.mxu0 0.0
  %715 = vmatprep.subr.mxu0 0.0
  %716 = vmatpush1.msra.mxu0 0.0
  %717 = vmatprep.subr.mxu0 0.0
  %718 = vmatpush1.msra.mxu0 0.0
  %719 = vmatprep.subr.mxu0 0.0
  %720 = vmatpush1.msra.mxu0 0.0
  %721 = vmatprep.subr.mxu0 0.0
  %722 = vmatpush1.msra.mxu0 0.0
  %723 = vmatprep.mubr.f32.mxu0 0.0
  %724 = vmatmul.mubr.f32.gmra.mrb[0].mxu0 %v648
  %v725 = vpop.f32.mrb[0].mxu0
  %v726 = vadd.f32 %v630, %v725
  %v727 = vpop.f32.mrb[0].mxu0
  %728 = vmatprep.mubr.f32.mxu0 0.0
  %729 = vmatmul.mubr.f32.gmra.mrb[0].mxu0 %v651
  %v730 = vpop.f32.mrb[0].mxu0
  %v731 = vadd.f32 %v635, %v730
  %v732 = vpop.f32.mrb[0].mxu0
  %733 = vmatprep.mubr.f32.mxu0 0.0
  %734 = vmatmul.mubr.f32.gmra.mrb[0].mxu0 %v654
  %v735 = vpop.f32.mrb[0].mxu0
  %v736 = vadd.f32 %v640, %v735
  %v737 = vpop.f32.mrb[0].mxu0
  %738 = vmatprep.mubr.f32.mxu0 0.0
  %739 = vmatmul.mubr.f32.gmra.mrb[0].mxu0 %v657
  %v740 = vpop.f32.mrb[0].mxu0
  %v741 = vadd.f32 %v645, %v740
  %v742 = vpop.f32.mrb[0].mxu0
  %743 = vdwg.mxu0
  %v745 = vsel %vm550, %v535, 0
  %747 = vmatprep.subr.mxu0 0.0
  %748 = vmatpush1.msra.mxu0 %v546
  %749 = vmatprep.subr.mxu0 0.0
  %750 = vmatpush1.msra.mxu0 %v547
  %751 = vmatprep.subr.mxu0 0.0
  %752 = vmatpush1.msra.mxu0 %v548
  %753 = vmatprep.subr.mxu0 0.0
  %754 = vmatpush1.msra.mxu0 %v549
  %755 = vmatprep.subr.mxu0 0.0
  %756 = vmatpush1.msra.mxu0 0.0
  %757 = vmatprep.subr.mxu0 0.0
  %758 = vmatpush1.msra.mxu0 0.0
  %759 = vmatprep.subr.mxu0 0.0
  %760 = vmatpush1.msra.mxu0 0.0
  %761 = vmatprep.subr.mxu0 0.0
  %762 = vmatpush1.msra.mxu0 0.0
  %763 = vmatprep.subr.mxu0 0.0
  %764 = vmatpush1.msra.mxu0 0.0
  %765 = vmatprep.subr.mxu0 0.0
  %766 = vmatpush1.msra.mxu0 0.0
  %767 = vmatprep.subr.mxu0 0.0
  %768 = vmatpush1.msra.mxu0 0.0
  %769 = vmatprep.subr.mxu0 0.0
  %770 = vmatpush1.msra.mxu0 0.0
  %771 = vmatprep.subr.mxu0 0.0
  %772 = vmatpush1.msra.mxu0 0.0
  %773 = vmatprep.subr.mxu0 0.0
  %774 = vmatpush1.msra.mxu0 0.0
  %775 = vmatprep.subr.mxu0 0.0
  %776 = vmatpush1.msra.mxu0 0.0
  %777 = vmatprep.subr.mxu0 0.0
  %778 = vmatpush1.msra.mxu0 0.0
  %779 = vmatprep.subr.mxu0 0.0
  %780 = vmatpush1.msra.mxu0 0.0
  %781 = vmatprep.subr.mxu0 0.0
  %782 = vmatpush1.msra.mxu0 0.0
  %783 = vmatprep.subr.mxu0 0.0
  %784 = vmatpush1.msra.mxu0 0.0
  %785 = vmatprep.subr.mxu0 0.0
  %786 = vmatpush1.msra.mxu0 0.0
  %787 = vmatprep.subr.mxu0 0.0
  %788 = vmatpush1.msra.mxu0 0.0
  %789 = vmatprep.subr.mxu0 0.0
  %790 = vmatpush1.msra.mxu0 0.0
  %791 = vmatprep.subr.mxu0 0.0
  %792 = vmatpush1.msra.mxu0 0.0
  %793 = vmatprep.subr.mxu0 0.0
  %794 = vmatpush1.msra.mxu0 0.0
  %795 = vmatprep.subr.mxu0 0.0
  %796 = vmatpush1.msra.mxu0 0.0
  %797 = vmatprep.subr.mxu0 0.0
  %798 = vmatpush1.msra.mxu0 0.0
  %799 = vmatprep.subr.mxu0 0.0
  %800 = vmatpush1.msra.mxu0 0.0
  %801 = vmatprep.subr.mxu0 0.0
  %802 = vmatpush1.msra.mxu0 0.0
  %803 = vmatprep.subr.mxu0 0.0
  %804 = vmatpush1.msra.mxu0 0.0
  %805 = vmatprep.subr.mxu0 0.0
  %806 = vmatpush1.msra.mxu0 0.0
  %807 = vmatprep.subr.mxu0 0.0
  %808 = vmatpush1.msra.mxu0 0.0
  %809 = vmatprep.subr.mxu0 0.0
  %810 = vmatpush1.msra.mxu0 0.0
  %811 = vmatprep.mubr.f32.mxu0 0.0
  %812 = vmatmul.mubr.f32.gmra.mrb[0].mxu0 %v651
  %v813 = vpop.f32.mrb[0].mxu0
  %v814 = vadd.f32 0.0, %v813
  %v815 = vpop.f32.mrb[0].mxu0
  %816 = vmatprep.mubr.f32.mxu0 0.0
  %817 = vmatmul.mubr.f32.gmra.mrb[0].mxu0 %v654
  %v818 = vpop.f32.mrb[0].mxu0
  %v819 = vadd.f32 0.0, %v818
  %v820 = vpop.f32.mrb[0].mxu0
  %821 = vmatprep.mubr.f32.mxu0 0.0
  %822 = vmatmul.mubr.f32.gmra.mrb[0].mxu0 %v657
  %v823 = vpop.f32.mrb[0].mxu0
  %v824 = vadd.f32 0.0, %v823
  %v825 = vpop.f32.mrb[0].mxu0
  %826 = vmatprep.mubr.f32.mxu0 0.0
  %827 = vmatmul.mubr.f32.gmra.mrb[0].mxu0 %v745
  %v828 = vpop.f32.mrb[0].mxu0
  %v829 = vadd.f32 0.0, %v828
  %v830 = vpop.f32.mrb[0].mxu0
  %831 = vdwg.mxu0
  %v832 = vadd.f32 %v726, %v814
  %v833 = vadd.f32 %v731, %v819
  %v834 = vadd.f32 %v736, %v824
  %v835 = vadd.f32 %v741, %v829
  %v836 = vld [vmem:[%s4] sm:$0x1]
  %v838 = vlaneseq
  %v839 = vshrl.u32 %v838, 7
  %v840 = vsub.s32 0, %v839
  %v841 = vrot.slane %v836, %v840
  %v843 = vadd.f32 %v832, %v841
  %v844 = vadd.f32 %v833, %v841
  %v845 = vadd.f32 %v834, %v841
  %v846 = vadd.f32 %v835, %v841
  %vm847 = vcmp.ge.f32.partialorder %v843, 0.0
  %vm848 = vcmp.ge.f32.partialorder %v844, 0.0
  %vm849 = vcmp.ge.f32.partialorder %v845, 0.0
  %vm850 = vcmp.ge.f32.partialorder %v846, 0.0
  %v851 = vmul.f32 %v843, 0.02
  %v852 = vmul.f32 %v844, 0.02
  %v853 = vmul.f32 %v845, 0.02
  %v854 = vmul.f32 %v846, 0.02
  %v855 = vsel %vm847, %v843, %v851
  %v856 = vsel %vm848, %v844, %v852
  %v857 = vsel %vm849, %v845, %v853
  %v858 = vsel %vm850, %v846, %v854
  %v859 = vld [vmem:[%s5] sm:$0xff]
  %v860 = vld [vmem:[%s5 + $0x8] sm:$0xff]
  %v861 = vld [vmem:[%s5 + $0x10] sm:$0xff]
  %v862 = vld [vmem:[%s5 + $0x18] sm:$0xff]
  %s863 = scalar_lea.vmem %s5, 32
  %v864 = vld [vmem:[%s863] sm:$0xff]
  %v865 = vld [vmem:[%s863 + $0x8] sm:$0xff]
  %v866 = vld [vmem:[%s863 + $0x10] sm:$0xff]
  %v867 = vld [vmem:[%s863 + $0x18] sm:$0xff]
  %s868 = scalar_lea.vmem %s5, 64
  %v869 = vld [vmem:[%s868] sm:$0xff]
  %v870 = vld [vmem:[%s868 + $0x8] sm:$0xff]
  %v871 = vld [vmem:[%s868 + $0x10] sm:$0xff]
  %v872 = vld [vmem:[%s868 + $0x18] sm:$0xff]
  %v874 = vsel %vm550, %v855, 0
  %v877 = vsel %vm550, %v857, 0
  %879 = vmatprep.subr.mxu0 0.0
  %880 = vmatpush1.msra.mxu0 %v864
  %881 = vmatprep.subr.mxu0 0.0
  %882 = vmatpush1.msra.mxu0 %v865
  %883 = vmatprep.subr.mxu0 0.0
  %884 = vmatpush1.msra.mxu0 %v866
  %885 = vmatprep.subr.mxu0 0.0
  %886 = vmatpush1.msra.mxu0 %v867
  %887 = vmatprep.subr.mxu0 0.0
  %888 = vmatpush1.msra.mxu0 0.0
  %889 = vmatprep.subr.mxu0 0.0
  %890 = vmatpush1.msra.mxu0 0.0
  %891 = vmatprep.subr.mxu0 0.0
  %892 = vmatpush1.msra.mxu0 0.0
  %893 = vmatprep.subr.mxu0 0.0
  %894 = vmatpush1.msra.mxu0 0.0
  %895 = vmatprep.subr.mxu0 0.0
  %896 = vmatpush1.msra.mxu0 0.0
  %897 = vmatprep.subr.mxu0 0.0
  %898 = vmatpush1.msra.mxu0 0.0
  %899 = vmatprep.subr.mxu0 0.0
  %900 = vmatpush1.msra.mxu0 0.0
  %901 = vmatprep.subr.mxu0 0.0
  %902 = vmatpush1.msra.mxu0 0.0
  %903 = vmatprep.subr.mxu0 0.0
  %904 = vmatpush1.msra.mxu0 0.0
  %905 = vmatprep.subr.mxu0 0.0
  %906 = vmatpush1.msra.mxu0 0.0
  %907 = vmatprep.subr.mxu0 0.0
  %908 = vmatpush1.msra.mxu0 0.0
  %909 = vmatprep.subr.mxu0 0.0
  %910 = vmatpush1.msra.mxu0 0.0
  %911 = vmatprep.subr.mxu0 0.0
  %912 = vmatpush1.msra.mxu0 0.0
  %913 = vmatprep.subr.mxu0 0.0
  %914 = vmatpush1.msra.mxu0 0.0
  %915 = vmatprep.subr.mxu0 0.0
  %916 = vmatpush1.msra.mxu0 0.0
  %917 = vmatprep.subr.mxu0 0.0
  %918 = vmatpush1.msra.mxu0 0.0
  %919 = vmatprep.subr.mxu0 0.0
  %920 = vmatpush1.msra.mxu0 0.0
  %921 = vmatprep.subr.mxu0 0.0
  %922 = vmatpush1.msra.mxu0 0.0
  %923 = vmatprep.subr.mxu0 0.0
  %924 = vmatpush1.msra.mxu0 0.0
  %925 = vmatprep.subr.mxu0 0.0
  %926 = vmatpush1.msra.mxu0 0.0
  %927 = vmatprep.subr.mxu0 0.0
  %928 = vmatpush1.msra.mxu0 0.0
  %929 = vmatprep.subr.mxu0 0.0
  %930 = vmatpush1.msra.mxu0 0.0
  %931 = vmatprep.subr.mxu0 0.0
  %932 = vmatpush1.msra.mxu0 0.0
  %933 = vmatprep.subr.mxu0 0.0
  %934 = vmatpush1.msra.mxu0 0.0
  %935 = vmatprep.subr.mxu0 0.0
  %936 = vmatpush1.msra.mxu0 0.0
  %937 = vmatprep.subr.mxu0 0.0
  %938 = vmatpush1.msra.mxu0 0.0
  %939 = vmatprep.subr.mxu0 0.0
  %940 = vmatpush1.msra.mxu0 0.0
  %941 = vmatprep.subr.mxu0 0.0
  %942 = vmatpush1.msra.mxu0 0.0
  %943 = vmatprep.mubr.f32.mxu0 0.0
  %944 = vmatmul.mubr.f32.gmra.mrb[0].mxu0 %v874
  %v945 = vpop.f32.mrb[0].mxu0
  %v946 = vadd.f32 0.0, %v945
  %v947 = vpop.f32.mrb[0].mxu0
  %948 = vmatprep.mubr.f32.mxu0 0.0
  %949 = vmatmul.mubr.f32.gmra.mrb[0].mxu0 %v877
  %v950 = vpop.f32.mrb[0].mxu0
  %v951 = vadd.f32 0.0, %v950
  %v952 = vpop.f32.mrb[0].mxu0
  %953 = vdwg.mxu0
  %v955 = vsel %vm550, %v856, 0
  %957 = vmatprep.subr.mxu0 0.0
  %958 = vmatpush1.msra.mxu0 %v859
  %959 = vmatprep.subr.mxu0 0.0
  %960 = vmatpush1.msra.mxu0 %v860
  %961 = vmatprep.subr.mxu0 0.0
  %962 = vmatpush1.msra.mxu0 %v861
  %963 = vmatprep.subr.mxu0 0.0
  %964 = vmatpush1.msra.mxu0 %v862
  %965 = vmatprep.subr.mxu0 0.0
  %966 = vmatpush1.msra.mxu0 0.0
  %967 = vmatprep.subr.mxu0 0.0
  %968 = vmatpush1.msra.mxu0 0.0
  %969 = vmatprep.subr.mxu0 0.0
  %970 = vmatpush1.msra.mxu0 0.0
  %971 = vmatprep.subr.mxu0 0.0
  %972 = vmatpush1.msra.mxu0 0.0
  %973 = vmatprep.subr.mxu0 0.0
  %974 = vmatpush1.msra.mxu0 0.0
  %975 = vmatprep.subr.mxu0 0.0
  %976 = vmatpush1.msra.mxu0 0.0
  %977 = vmatprep.subr.mxu0 0.0
  %978 = vmatpush1.msra.mxu0 0.0
  %979 = vmatprep.subr.mxu0 0.0
  %980 = vmatpush1.msra.mxu0 0.0
  %981 = vmatprep.subr.mxu0 0.0
  %982 = vmatpush1.msra.mxu0 0.0
  %983 = vmatprep.subr.mxu0 0.0
  %984 = vmatpush1.msra.mxu0 0.0
  %985 = vmatprep.subr.mxu0 0.0
  %986 = vmatpush1.msra.mxu0 0.0
  %987 = vmatprep.subr.mxu0 0.0
  %988 = vmatpush1.msra.mxu0 0.0
  %989 = vmatprep.subr.mxu0 0.0
  %990 = vmatpush1.msra.mxu0 0.0
  %991 = vmatprep.subr.mxu0 0.0
  %992 = vmatpush1.msra.mxu0 0.0
  %993 = vmatprep.subr.mxu0 0.0
  %994 = vmatpush1.msra.mxu0 0.0
  %995 = vmatprep.subr.mxu0 0.0
  %996 = vmatpush1.msra.mxu0 0.0
  %997 = vmatprep.subr.mxu0 0.0
  %998 = vmatpush1.msra.mxu0 0.0
  %999 = vmatprep.subr.mxu0 0.0
  %1000 = vmatpush1.msra.mxu0 0.0
  %1001 = vmatprep.subr.mxu0 0.0
  %1002 = vmatpush1.msra.mxu0 0.0
  %1003 = vmatprep.subr.mxu0 0.0
  %1004 = vmatpush1.msra.mxu0 0.0
  %1005 = vmatprep.subr.mxu0 0.0
  %1006 = vmatpush1.msra.mxu0 0.0
  %1007 = vmatprep.subr.mxu0 0.0
  %1008 = vmatpush1.msra.mxu0 0.0
  %1009 = vmatprep.subr.mxu0 0.0
  %1010 = vmatpush1.msra.mxu0 0.0
  %1011 = vmatprep.subr.mxu0 0.0
  %1012 = vmatpush1.msra.mxu0 0.0
  %1013 = vmatprep.subr.mxu0 0.0
  %1014 = vmatpush1.msra.mxu0 0.0
  %1015 = vmatprep.subr.mxu0 0.0
  %1016 = vmatpush1.msra.mxu0 0.0
  %1017 = vmatprep.subr.mxu0 0.0
  %1018 = vmatpush1.msra.mxu0 0.0
  %1019 = vmatprep.subr.mxu0 0.0
  %1020 = vmatpush1.msra.mxu0 0.0
  %1021 = vmatprep.mubr.f32.mxu0 0.0
  %1022 = vmatmul.mubr.f32.gmra.mrb[0].mxu0 %v648
  %v1023 = vpop.f32.mrb[0].mxu0
  %v1024 = vadd.f32 %v946, %v1023
  %v1025 = vpop.f32.mrb[0].mxu0
  %1026 = vmatprep.mubr.f32.mxu0 0.0
  %1027 = vmatmul.mubr.f32.gmra.mrb[0].mxu0 %v955
  %v1028 = vpop.f32.mrb[0].mxu0
  %v1029 = vadd.f32 %v951, %v1028
  %v1030 = vpop.f32.mrb[0].mxu0
  %1031 = vdwg.mxu0
  %v1033 = vsel %vm550, %v858, 0
  %1035 = vmatprep.subr.mxu0 0.0
  %1036 = vmatpush1.msra.mxu0 %v869
  %1037 = vmatprep.subr.mxu0 0.0
  %1038 = vmatpush1.msra.mxu0 %v870
  %1039 = vmatprep.subr.mxu0 0.0
  %1040 = vmatpush1.msra.mxu0 %v871
  %1041 = vmatprep.subr.mxu0 0.0
  %1042 = vmatpush1.msra.mxu0 %v872
  %1043 = vmatprep.subr.mxu0 0.0
  %1044 = vmatpush1.msra.mxu0 0.0
  %1045 = vmatprep.subr.mxu0 0.0
  %1046 = vmatpush1.msra.mxu0 0.0
  %1047 = vmatprep.subr.mxu0 0.0
  %1048 = vmatpush1.msra.mxu0 0.0
  %1049 = vmatprep.subr.mxu0 0.0
  %1050 = vmatpush1.msra.mxu0 0.0
  %1051 = vmatprep.subr.mxu0 0.0
  %1052 = vmatpush1.msra.mxu0 0.0
  %1053 = vmatprep.subr.mxu0 0.0
  %1054 = vmatpush1.msra.mxu0 0.0
  %1055 = vmatprep.subr.mxu0 0.0
  %1056 = vmatpush1.msra.mxu0 0.0
  %1057 = vmatprep.subr.mxu0 0.0
  %1058 = vmatpush1.msra.mxu0 0.0
  %1059 = vmatprep.subr.mxu0 0.0
  %1060 = vmatpush1.msra.mxu0 0.0
  %1061 = vmatprep.subr.mxu0 0.0
  %1062 = vmatpush1.msra.mxu0 0.0
  %1063 = vmatprep.subr.mxu0 0.0
  %1064 = vmatpush1.msra.mxu0 0.0
  %1065 = vmatprep.subr.mxu0 0.0
  %1066 = vmatpush1.msra.mxu0 0.0
  %1067 = vmatprep.subr.mxu0 0.0
  %1068 = vmatpush1.msra.mxu0 0.0
  %1069 = vmatprep.subr.mxu0 0.0
  %1070 = vmatpush1.msra.mxu0 0.0
  %1071 = vmatprep.subr.mxu0 0.0
  %1072 = vmatpush1.msra.mxu0 0.0
  %1073 = vmatprep.subr.mxu0 0.0
  %1074 = vmatpush1.msra.mxu0 0.0
  %1075 = vmatprep.subr.mxu0 0.0
  %1076 = vmatpush1.msra.mxu0 0.0
  %1077 = vmatprep.subr.mxu0 0.0
  %1078 = vmatpush1.msra.mxu0 0.0
  %1079 = vmatprep.subr.mxu0 0.0
  %1080 = vmatpush1.msra.mxu0 0.0
  %1081 = vmatprep.subr.mxu0 0.0
  %1082 = vmatpush1.msra.mxu0 0.0
  %1083 = vmatprep.subr.mxu0 0.0
  %1084 = vmatpush1.msra.mxu0 0.0
  %1085 = vmatprep.subr.mxu0 0.0
  %1086 = vmatpush1.msra.mxu0 0.0
  %1087 = vmatprep.subr.mxu0 0.0
  %1088 = vmatpush1.msra.mxu0 0.0
  %1089 = vmatprep.subr.mxu0 0.0
  %1090 = vmatpush1.msra.mxu0 0.0
  %1091 = vmatprep.subr.mxu0 0.0
  %1092 = vmatpush1.msra.mxu0 0.0
  %1093 = vmatprep.subr.mxu0 0.0
  %1094 = vmatpush1.msra.mxu0 0.0
  %1095 = vmatprep.subr.mxu0 0.0
  %1096 = vmatpush1.msra.mxu0 0.0
  %1097 = vmatprep.subr.mxu0 0.0
  %1098 = vmatpush1.msra.mxu0 0.0
  %1099 = vmatprep.mubr.f32.mxu0 0.0
  %1100 = vmatmul.mubr.f32.gmra.mrb[0].mxu0 %v955
  %v1101 = vpop.f32.mrb[0].mxu0
  %v1102 = vadd.f32 0.0, %v1101
  %v1103 = vpop.f32.mrb[0].mxu0
  %1104 = vmatprep.mubr.f32.mxu0 0.0
  %1105 = vmatmul.mubr.f32.gmra.mrb[0].mxu0 %v1033
  %v1106 = vpop.f32.mrb[0].mxu0
  %v1107 = vadd.f32 0.0, %v1106
  %v1108 = vpop.f32.mrb[0].mxu0
  %1109 = vdwg.mxu0
  %v1110 = vadd.f32 %v1024, %v1102
  %v1111 = vadd.f32 %v1029, %v1107
  %v1112 = vld [vmem:[%s6] sm:$0x1]
  %v1114 = vlaneseq
  %v1115 = vshrl.u32 %v1114, 7
  %v1116 = vsub.s32 0, %v1115
  %v1117 = vrot.slane %v1112, %v1116
  %v1119 = vadd.f32 %v1110, %v1117
  %v1120 = vadd.f32 %v1111, %v1117
  %vm1121 = vcmp.ge.f32.partialorder %v1119, 0.0
  %vm1122 = vcmp.ge.f32.partialorder %v1120, 0.0
  %v1123 = vmul.f32 %v1119, 0.02
  %v1124 = vmul.f32 %v1120, 0.02
  %v1125 = vsel %vm1121, %v1119, %v1123
  %v1126 = vsel %vm1122, %v1120, %v1124
  %v1127 = vld [vmem:[%s7] sm:$0xff]
  %v1128 = vld [vmem:[%s7 + $0x8] sm:$0xff]
  %v1129 = vld [vmem:[%s7 + $0x10] sm:$0xff]
  %v1130 = vld [vmem:[%s7 + $0x18] sm:$0xff]
  %v1131 = vld [vmem:[%s7 + $0x20] sm:$0xff]
  %v1132 = vld [vmem:[%s7 + $0x28] sm:$0xff]
  %v1133 = vld [vmem:[%s7 + $0x30] sm:$0xff]
  %v1134 = vld [vmem:[%s7 + $0x38] sm:$0xff]
  %s1135 = scalar_lea.vmem %s7, 64
  %v1136 = vld [vmem:[%s1135] sm:$0xff]
  %v1137 = vld [vmem:[%s1135 + $0x8] sm:$0xff]
  %v1138 = vld [vmem:[%s1135 + $0x10] sm:$0xff]
  %v1139 = vld [vmem:[%s1135 + $0x18] sm:$0xff]
  %v1140 = vld [vmem:[%s1135 + $0x20] sm:$0xff]
  %v1141 = vld [vmem:[%s1135 + $0x28] sm:$0xff]
  %v1142 = vld [vmem:[%s1135 + $0x30] sm:$0xff]
  %v1143 = vld [vmem:[%s1135 + $0x38] sm:$0xff]
  %s1144 = scalar_lea.vmem %s7, 128
  %v1145 = vld [vmem:[%s1144] sm:$0xff]
  %v1146 = vld [vmem:[%s1144 + $0x8] sm:$0xff]
  %v1147 = vld [vmem:[%s1144 + $0x10] sm:$0xff]
  %v1148 = vld [vmem:[%s1144 + $0x18] sm:$0xff]
  %v1149 = vld [vmem:[%s1144 + $0x20] sm:$0xff]
  %v1150 = vld [vmem:[%s1144 + $0x28] sm:$0xff]
  %v1151 = vld [vmem:[%s1144 + $0x30] sm:$0xff]
  %v1152 = vld [vmem:[%s1144 + $0x38] sm:$0xff]
  %vm1153 = vcmask 523264
  %v1155 = vsel %vm1153, %v1125, 0
  %1157 = vmatprep.subr.mxu0 0.0
  %1158 = vmatpush1.msra.mxu0 %v1136
  %1159 = vmatprep.subr.mxu0 0.0
  %1160 = vmatpush1.msra.mxu0 %v1137
  %1161 = vmatprep.subr.mxu0 0.0
  %1162 = vmatpush1.msra.mxu0 %v1138
  %1163 = vmatprep.subr.mxu0 0.0
  %1164 = vmatpush1.msra.mxu0 %v1139
  %1165 = vmatprep.subr.mxu0 0.0
  %1166 = vmatpush1.msra.mxu0 %v1140
  %1167 = vmatprep.subr.mxu0 0.0
  %1168 = vmatpush1.msra.mxu0 %v1141
  %1169 = vmatprep.subr.mxu0 0.0
  %1170 = vmatpush1.msra.mxu0 %v1142
  %1171 = vmatprep.subr.mxu0 0.0
  %1172 = vmatpush1.msra.mxu0 %v1143
  %1173 = vmatprep.subr.mxu0 0.0
  %1174 = vmatpush1.msra.mxu0 0.0
  %1175 = vmatprep.subr.mxu0 0.0
  %1176 = vmatpush1.msra.mxu0 0.0
  %1177 = vmatprep.subr.mxu0 0.0
  %1178 = vmatpush1.msra.mxu0 0.0
  %1179 = vmatprep.subr.mxu0 0.0
  %1180 = vmatpush1.msra.mxu0 0.0
  %1181 = vmatprep.subr.mxu0 0.0
  %1182 = vmatpush1.msra.mxu0 0.0
  %1183 = vmatprep.subr.mxu0 0.0
  %1184 = vmatpush1.msra.mxu0 0.0
  %1185 = vmatprep.subr.mxu0 0.0
  %1186 = vmatpush1.msra.mxu0 0.0
  %1187 = vmatprep.subr.mxu0 0.0
  %1188 = vmatpush1.msra.mxu0 0.0
  %1189 = vmatprep.subr.mxu0 0.0
  %1190 = vmatpush1.msra.mxu0 0.0
  %1191 = vmatprep.subr.mxu0 0.0
  %1192 = vmatpush1.msra.mxu0 0.0
  %1193 = vmatprep.subr.mxu0 0.0
  %1194 = vmatpush1.msra.mxu0 0.0
  %1195 = vmatprep.subr.mxu0 0.0
  %1196 = vmatpush1.msra.mxu0 0.0
  %1197 = vmatprep.subr.mxu0 0.0
  %1198 = vmatpush1.msra.mxu0 0.0
  %1199 = vmatprep.subr.mxu0 0.0
  %1200 = vmatpush1.msra.mxu0 0.0
  %1201 = vmatprep.subr.mxu0 0.0
  %1202 = vmatpush1.msra.mxu0 0.0
  %1203 = vmatprep.subr.mxu0 0.0
  %1204 = vmatpush1.msra.mxu0 0.0
  %1205 = vmatprep.subr.mxu0 0.0
  %1206 = vmatpush1.msra.mxu0 0.0
  %1207 = vmatprep.subr.mxu0 0.0
  %1208 = vmatpush1.msra.mxu0 0.0
  %1209 = vmatprep.subr.mxu0 0.0
  %1210 = vmatpush1.msra.mxu0 0.0
  %1211 = vmatprep.subr.mxu0 0.0
  %1212 = vmatpush1.msra.mxu0 0.0
  %1213 = vmatprep.subr.mxu0 0.0
  %1214 = vmatpush1.msra.mxu0 0.0
  %1215 = vmatprep.subr.mxu0 0.0
  %1216 = vmatpush1.msra.mxu0 0.0
  %1217 = vmatprep.subr.mxu0 0.0
  %1218 = vmatpush1.msra.mxu0 0.0
  %1219 = vmatprep.subr.mxu0 0.0
  %1220 = vmatpush1.msra.mxu0 0.0
  %1221 = vmatprep.mubr.f32.mxu0 0.0
  %1222 = vmatmul.mubr.f32.gmra.mrb[0].mxu0 %v1155
  %v1223 = vpop.f32.mrb[0].mxu0
  %v1224 = vadd.f32 0.0, %v1223
  %v1225 = vpop.f32.mrb[0].mxu0
  %1226 = vdwg.mxu0
  %v1227 = vsel %vm1153, 0.0, 0
  %1229 = vmatprep.subr.mxu0 0.0
  %1230 = vmatpush1.msra.mxu0 %v1127
  %1231 = vmatprep.subr.mxu0 0.0
  %1232 = vmatpush1.msra.mxu0 %v1128
  %1233 = vmatprep.subr.mxu0 0.0
  %1234 = vmatpush1.msra.mxu0 %v1129
  %1235 = vmatprep.subr.mxu0 0.0
  %1236 = vmatpush1.msra.mxu0 %v1130
  %1237 = vmatprep.subr.mxu0 0.0
  %1238 = vmatpush1.msra.mxu0 %v1131
  %1239 = vmatprep.subr.mxu0 0.0
  %1240 = vmatpush1.msra.mxu0 %v1132
  %1241 = vmatprep.subr.mxu0 0.0
  %1242 = vmatpush1.msra.mxu0 %v1133
  %1243 = vmatprep.subr.mxu0 0.0
  %1244 = vmatpush1.msra.mxu0 %v1134
  %1245 = vmatprep.subr.mxu0 0.0
  %1246 = vmatpush1.msra.mxu0 0.0
  %1247 = vmatprep.subr.mxu0 0.0
  %1248 = vmatpush1.msra.mxu0 0.0
  %1249 = vmatprep.subr.mxu0 0.0
  %1250 = vmatpush1.msra.mxu0 0.0
  %1251 = vmatprep.subr.mxu0 0.0
  %1252 = vmatpush1.msra.mxu0 0.0
  %1253 = vmatprep.subr.mxu0 0.0
  %1254 = vmatpush1.msra.mxu0 0.0
  %1255 = vmatprep.subr.mxu0 0.0
  %1256 = vmatpush1.msra.mxu0 0.0
  %1257 = vmatprep.subr.mxu0 0.0
  %1258 = vmatpush1.msra.mxu0 0.0
  %1259 = vmatprep.subr.mxu0 0.0
  %1260 = vmatpush1.msra.mxu0 0.0
  %1261 = vmatprep.subr.mxu0 0.0
  %1262 = vmatpush1.msra.mxu0 0.0
  %1263 = vmatprep.subr.mxu0 0.0
  %1264 = vmatpush1.msra.mxu0 0.0
  %1265 = vmatprep.subr.mxu0 0.0
  %1266 = vmatpush1.msra.mxu0 0.0
  %1267 = vmatprep.subr.mxu0 0.0
  %1268 = vmatpush1.msra.mxu0 0.0
  %1269 = vmatprep.subr.mxu0 0.0
  %1270 = vmatpush1.msra.mxu0 0.0
  %1271 = vmatprep.subr.mxu0 0.0
  %1272 = vmatpush1.msra.mxu0 0.0
  %1273 = vmatprep.subr.mxu0 0.0
  %1274 = vmatpush1.msra.mxu0 0.0
  %1275 = vmatprep.subr.mxu0 0.0
  %1276 = vmatpush1.msra.mxu0 0.0
  %1277 = vmatprep.subr.mxu0 0.0
  %1278 = vmatpush1.msra.mxu0 0.0
  %1279 = vmatprep.subr.mxu0 0.0
  %1280 = vmatpush1.msra.mxu0 0.0
  %1281 = vmatprep.subr.mxu0 0.0
  %1282 = vmatpush1.msra.mxu0 0.0
  %1283 = vmatprep.subr.mxu0 0.0
  %1284 = vmatpush1.msra.mxu0 0.0
  %1285 = vmatprep.subr.mxu0 0.0
  %1286 = vmatpush1.msra.mxu0 0.0
  %1287 = vmatprep.subr.mxu0 0.0
  %1288 = vmatpush1.msra.mxu0 0.0
  %1289 = vmatprep.subr.mxu0 0.0
  %1290 = vmatpush1.msra.mxu0 0.0
  %1291 = vmatprep.subr.mxu0 0.0
  %1292 = vmatpush1.msra.mxu0 0.0
  %1293 = vmatprep.mubr.f32.mxu0 0.0
  %1294 = vmatmul.mubr.f32.gmra.mrb[0].mxu0 %v1227
  %v1295 = vpop.f32.mrb[0].mxu0
  %v1296 = vadd.f32 %v1224, %v1295
  %v1297 = vpop.f32.mrb[0].mxu0
  %1298 = vdwg.mxu0
  %v1300 = vsel %vm1153, %v1126, 0
  %1302 = vmatprep.subr.mxu0 0.0
  %1303 = vmatpush1.msra.mxu0 %v1145
  %1304 = vmatprep.subr.mxu0 0.0
  %1305 = vmatpush1.msra.mxu0 %v1146
  %1306 = vmatprep.subr.mxu0 0.0
  %1307 = vmatpush1.msra.mxu0 %v1147
  %1308 = vmatprep.subr.mxu0 0.0
  %1309 = vmatpush1.msra.mxu0 %v1148
  %1310 = vmatprep.subr.mxu0 0.0
  %1311 = vmatpush1.msra.mxu0 %v1149
  %1312 = vmatprep.subr.mxu0 0.0
  %1313 = vmatpush1.msra.mxu0 %v1150
  %1314 = vmatprep.subr.mxu0 0.0
  %1315 = vmatpush1.msra.mxu0 %v1151
  %1316 = vmatprep.subr.mxu0 0.0
  %1317 = vmatpush1.msra.mxu0 %v1152
  %1318 = vmatprep.subr.mxu0 0.0
  %1319 = vmatpush1.msra.mxu0 0.0
  %1320 = vmatprep.subr.mxu0 0.0
  %1321 = vmatpush1.msra.mxu0 0.0
  %1322 = vmatprep.subr.mxu0 0.0
  %1323 = vmatpush1.msra.mxu0 0.0
  %1324 = vmatprep.subr.mxu0 0.0
  %1325 = vmatpush1.msra.mxu0 0.0
  %1326 = vmatprep.subr.mxu0 0.0
  %1327 = vmatpush1.msra.mxu0 0.0
  %1328 = vmatprep.subr.mxu0 0.0
  %1329 = vmatpush1.msra.mxu0 0.0
  %1330 = vmatprep.subr.mxu0 0.0
  %1331 = vmatpush1.msra.mxu0 0.0
  %1332 = vmatprep.subr.mxu0 0.0
  %1333 = vmatpush1.msra.mxu0 0.0
  %1334 = vmatprep.subr.mxu0 0.0
  %1335 = vmatpush1.msra.mxu0 0.0
  %1336 = vmatprep.subr.mxu0 0.0
  %1337 = vmatpush1.msra.mxu0 0.0
  %1338 = vmatprep.subr.mxu0 0.0
  %1339 = vmatpush1.msra.mxu0 0.0
  %1340 = vmatprep.subr.mxu0 0.0
  %1341 = vmatpush1.msra.mxu0 0.0
  %1342 = vmatprep.subr.mxu0 0.0
  %1343 = vmatpush1.msra.mxu0 0.0
  %1344 = vmatprep.subr.mxu0 0.0
  %1345 = vmatpush1.msra.mxu0 0.0
  %1346 = vmatprep.subr.mxu0 0.0
  %1347 = vmatpush1.msra.mxu0 0.0
  %1348 = vmatprep.subr.mxu0 0.0
  %1349 = vmatpush1.msra.mxu0 0.0
  %1350 = vmatprep.subr.mxu0 0.0
  %1351 = vmatpush1.msra.mxu0 0.0
  %1352 = vmatprep.subr.mxu0 0.0
  %1353 = vmatpush1.msra.mxu0 0.0
  %1354 = vmatprep.subr.mxu0 0.0
  %1355 = vmatpush1.msra.mxu0 0.0
  %1356 = vmatprep.subr.mxu0 0.0
  %1357 = vmatpush1.msra.mxu0 0.0
  %1358 = vmatprep.subr.mxu0 0.0
  %1359 = vmatpush1.msra.mxu0 0.0
  %1360 = vmatprep.subr.mxu0 0.0
  %1361 = vmatpush1.msra.mxu0 0.0
  %1362 = vmatprep.subr.mxu0 0.0
  %1363 = vmatpush1.msra.mxu0 0.0
  %1364 = vmatprep.subr.mxu0 0.0
  %1365 = vmatpush1.msra.mxu0 0.0
  %1366 = vmatprep.mubr.f32.mxu0 0.0
  %1367 = vmatmul.mubr.f32.gmra.mrb[0].mxu0 %v1300
  %v1368 = vpop.f32.mrb[0].mxu0
  %v1369 = vadd.f32 0.0, %v1368
  %v1370 = vpop.f32.mrb[0].mxu0
  %1371 = vdwg.mxu0
  %v1372 = vadd.f32 %v1296, %v1369
  %v1373 = vld [vmem:[%s8] sm:$0x1]
  %v1375 = vlaneseq
  %v1376 = vshrl.u32 %v1375, 7
  %v1377 = vsub.s32 0, %v1376
  %v1378 = vrot.slane %v1373, %v1377
  %v1380 = vadd.f32 %v1372, %v1378
  %vm1381 = vcmp.ge.f32.partialorder %v1380, 0.0
  %v1382 = vmul.f32 %v1380, 0.02
  %v1383 = vsel %vm1381, %v1380, %v1382
  %v1384 = vld [vmem:[%s9] sm:$0xff]
  %v1385 = vld [vmem:[%s9 + $0x8] sm:$0xff]
  %v1386 = vld [vmem:[%s9 + $0x10] sm:$0xff]
  %v1387 = vld [vmem:[%s9 + $0x18] sm:$0xff]
  %v1388 = vld [vmem:[%s9 + $0x20] sm:$0xff]
  %v1389 = vld [vmem:[%s9 + $0x28] sm:$0xff]
  %v1390 = vld [vmem:[%s9 + $0x30] sm:$0xff]
  %v1391 = vld [vmem:[%s9 + $0x38] sm:$0xff]
  %v1392 = vld [vmem:[%s10] sm:$0x1]
  %v1394 = vlaneseq
  %v1395 = vshrl.u32 %v1394, 7
  %v1396 = vsub.s32 0, %v1395
  %v1397 = vrot.slane %v1392, %v1396
  %v1400 = vsel %vm1153, %v1383, 0
  %1402 = vmatprep.subr.mxu0 0.0
  %1403 = vmatpush1.msra.mxu0 %v1384
  %1404 = vmatprep.subr.mxu0 0.0
  %1405 = vmatpush1.msra.mxu0 %v1385
  %1406 = vmatprep.subr.mxu0 0.0
  %1407 = vmatpush1.msra.mxu0 %v1386
  %1408 = vmatprep.subr.mxu0 0.0
  %1409 = vmatpush1.msra.mxu0 %v1387
  %1410 = vmatprep.subr.mxu0 0.0
  %1411 = vmatpush1.msra.mxu0 %v1388
  %1412 = vmatprep.subr.mxu0 0.0
  %1413 = vmatpush1.msra.mxu0 %v1389
  %1414 = vmatprep.subr.mxu0 0.0
  %1415 = vmatpush1.msra.mxu0 %v1390
  %1416 = vmatprep.subr.mxu0 0.0
  %1417 = vmatpush1.msra.mxu0 %v1391
  %1418 = vmatprep.subr.mxu0 0.0
  %1419 = vmatpush1.msra.mxu0 0.0
  %1420 = vmatprep.subr.mxu0 0.0
  %1421 = vmatpush1.msra.mxu0 0.0
  %1422 = vmatprep.subr.mxu0 0.0
  %1423 = vmatpush1.msra.mxu0 0.0
  %1424 = vmatprep.subr.mxu0 0.0
  %1425 = vmatpush1.msra.mxu0 0.0
  %1426 = vmatprep.subr.mxu0 0.0
  %1427 = vmatpush1.msra.mxu0 0.0
  %1428 = vmatprep.subr.mxu0 0.0
  %1429 = vmatpush1.msra.mxu0 0.0
  %1430 = vmatprep.subr.mxu0 0.0
  %1431 = vmatpush1.msra.mxu0 0.0
  %1432 = vmatprep.subr.mxu0 0.0
  %1433 = vmatpush1.msra.mxu0 0.0
  %1434 = vmatprep.subr.mxu0 0.0
  %1435 = vmatpush1.msra.mxu0 0.0
  %1436 = vmatprep.subr.mxu0 0.0
  %1437 = vmatpush1.msra.mxu0 0.0
  %1438 = vmatprep.subr.mxu0 0.0
  %1439 = vmatpush1.msra.mxu0 0.0
  %1440 = vmatprep.subr.mxu0 0.0
  %1441 = vmatpush1.msra.mxu0 0.0
  %1442 = vmatprep.subr.mxu0 0.0
  %1443 = vmatpush1.msra.mxu0 0.0
  %1444 = vmatprep.subr.mxu0 0.0
  %1445 = vmatpush1.msra.mxu0 0.0
  %1446 = vmatprep.subr.mxu0 0.0
  %1447 = vmatpush1.msra.mxu0 0.0
  %1448 = vmatprep.subr.mxu0 0.0
  %1449 = vmatpush1.msra.mxu0 0.0
  %1450 = vmatprep.subr.mxu0 0.0
  %1451 = vmatpush1.msra.mxu0 0.0
  %1452 = vmatprep.subr.mxu0 0.0
  %1453 = vmatpush1.msra.mxu0 0.0
  %1454 = vmatprep.subr.mxu0 0.0
  %1455 = vmatpush1.msra.mxu0 0.0
  %1456 = vmatprep.subr.mxu0 0.0
  %1457 = vmatpush1.msra.mxu0 0.0
  %1458 = vmatprep.subr.mxu0 0.0
  %1459 = vmatpush1.msra.mxu0 0.0
  %1460 = vmatprep.subr.mxu0 0.0
  %1461 = vmatpush1.msra.mxu0 0.0
  %1462 = vmatprep.subr.mxu0 0.0
  %1463 = vmatpush1.msra.mxu0 0.0
  %1464 = vmatprep.subr.mxu0 0.0
  %1465 = vmatpush1.msra.mxu0 0.0
  %1466 = vmatprep.mubr.f32.mxu0 0.0
  %1467 = vmatmul.mubr.f32.gmra.mrb[0].mxu0 %v1400
  %v1468 = vpop.f32.mrb[0].mxu0
  %v1469 = vadd.f32 %v1397, %v1468
  %v1470 = vpop.f32.mrb[0].mxu0
  %1471 = vdwg.mxu0
  %vm1472 = vcmp.ge.f32.partialorder %v1469, 0.0
  %v1473 = vmul.f32 %v1469, 0.02
  %v1474 = vsel %vm1472, %v1469, %v1473
  %v1475 = vld [vmem:[%s11] sm:$0xff]
  %v1476 = vld [vmem:[%s11 + $0x8] sm:$0xff]
  %v1477 = vld [vmem:[%s11 + $0x10] sm:$0xff]
  %v1478 = vld [vmem:[%s11 + $0x18] sm:$0xff]
  %v1479 = vld [vmem:[%s11 + $0x20] sm:$0xff]
  %v1480 = vld [vmem:[%s11 + $0x28] sm:$0xff]
  %v1481 = vld [vmem:[%s11 + $0x30] sm:$0xff]
  %v1482 = vld [vmem:[%s11 + $0x38] sm:$0xff]
  %v1483 = vld [vmem:[%s12] sm:$0x1]
  %v1485 = vlaneseq
  %v1486 = vshrl.u32 %v1485, 7
  %v1487 = vsub.s32 0, %v1486
  %v1488 = vrot.slane %v1483, %v1487
  %v1491 = vsel %vm1153, %v1474, 0
  %1493 = vmatprep.subr.mxu0 0.0
  %1494 = vmatpush1.msra.mxu0 %v1475
  %1495 = vmatprep.subr.mxu0 0.0
  %1496 = vmatpush1.msra.mxu0 %v1476
  %1497 = vmatprep.subr.mxu0 0.0
  %1498 = vmatpush1.msra.mxu0 %v1477
  %1499 = vmatprep.subr.mxu0 0.0
  %1500 = vmatpush1.msra.mxu0 %v1478
  %1501 = vmatprep.subr.mxu0 0.0
  %1502 = vmatpush1.msra.mxu0 %v1479
  %1503 = vmatprep.subr.mxu0 0.0
  %1504 = vmatpush1.msra.mxu0 %v1480
  %1505 = vmatprep.subr.mxu0 0.0
  %1506 = vmatpush1.msra.mxu0 %v1481
  %1507 = vmatprep.subr.mxu0 0.0
  %1508 = vmatpush1.msra.mxu0 %v1482
  %1509 = vmatprep.subr.mxu0 0.0
  %1510 = vmatpush1.msra.mxu0 0.0
  %1511 = vmatprep.subr.mxu0 0.0
  %1512 = vmatpush1.msra.mxu0 0.0
  %1513 = vmatprep.subr.mxu0 0.0
  %1514 = vmatpush1.msra.mxu0 0.0
  %1515 = vmatprep.subr.mxu0 0.0
  %1516 = vmatpush1.msra.mxu0 0.0
  %1517 = vmatprep.subr.mxu0 0.0
  %1518 = vmatpush1.msra.mxu0 0.0
  %1519 = vmatprep.subr.mxu0 0.0
  %1520 = vmatpush1.msra.mxu0 0.0
  %1521 = vmatprep.subr.mxu0 0.0
  %1522 = vmatpush1.msra.mxu0 0.0
  %1523 = vmatprep.subr.mxu0 0.0
  %1524 = vmatpush1.msra.mxu0 0.0
  %1525 = vmatprep.subr.mxu0 0.0
  %1526 = vmatpush1.msra.mxu0 0.0
  %1527 = vmatprep.subr.mxu0 0.0
  %1528 = vmatpush1.msra.mxu0 0.0
  %1529 = vmatprep.subr.mxu0 0.0
  %1530 = vmatpush1.msra.mxu0 0.0
  %1531 = vmatprep.subr.mxu0 0.0
  %1532 = vmatpush1.msra.mxu0 0.0
  %1533 = vmatprep.subr.mxu0 0.0
  %1534 = vmatpush1.msra.mxu0 0.0
  %1535 = vmatprep.subr.mxu0 0.0
  %1536 = vmatpush1.msra.mxu0 0.0
  %1537 = vmatprep.subr.mxu0 0.0
  %1538 = vmatpush1.msra.mxu0 0.0
  %1539 = vmatprep.subr.mxu0 0.0
  %1540 = vmatpush1.msra.mxu0 0.0
  %1541 = vmatprep.subr.mxu0 0.0
  %1542 = vmatpush1.msra.mxu0 0.0
  %1543 = vmatprep.subr.mxu0 0.0
  %1544 = vmatpush1.msra.mxu0 0.0
  %1545 = vmatprep.subr.mxu0 0.0
  %1546 = vmatpush1.msra.mxu0 0.0
  %1547 = vmatprep.subr.mxu0 0.0
  %1548 = vmatpush1.msra.mxu0 0.0
  %1549 = vmatprep.subr.mxu0 0.0
  %1550 = vmatpush1.msra.mxu0 0.0
  %1551 = vmatprep.subr.mxu0 0.0
  %1552 = vmatpush1.msra.mxu0 0.0
  %1553 = vmatprep.subr.mxu0 0.0
  %1554 = vmatpush1.msra.mxu0 0.0
  %1555 = vmatprep.subr.mxu0 0.0
  %1556 = vmatpush1.msra.mxu0 0.0
  %1557 = vmatprep.mubr.f32.mxu0 0.0
  %1558 = vmatmul.mubr.f32.gmra.mrb[0].mxu0 %v1491
  %v1559 = vpop.f32.mrb[0].mxu0
  %v1560 = vadd.f32 %v1488, %v1559
  %v1561 = vpop.f32.mrb[0].mxu0
  %1562 = vdwg.mxu0
  %v1563 = vld [vmem:[%s13] sm:$0xff]
  %v1564 = vld [vmem:[%s13 + $0x8] sm:$0xff]
  %v1565 = vld [vmem:[%s13 + $0x10] sm:$0xff]
  %v1566 = vld [vmem:[%s13 + $0x18] sm:$0xff]
  %s1567 = scalar_lea.vmem %s13, 32
  %v1568 = vld [vmem:[%s1567] sm:$0xff]
  %v1569 = vld [vmem:[%s1567 + $0x8] sm:$0xff]
  %v1570 = vld [vmem:[%s1567 + $0x10] sm:$0xff]
  %v1571 = vld [vmem:[%s1567 + $0x18] sm:$0xff]
  %s1572 = scalar_lea.vmem %s13, 64
  %v1573 = vld [vmem:[%s1572] sm:$0xff]
  %v1574 = vld [vmem:[%s1572 + $0x8] sm:$0xff]
  %v1575 = vld [vmem:[%s1572 + $0x10] sm:$0xff]
  %v1576 = vld [vmem:[%s1572 + $0x18] sm:$0xff]
  %v1578 = vrot.slane %v1560, 7
  %vm1580 = vcmask 1040384
  %v1581 = vsel %vm1580, 0.0, %v1578
  %v1582 = vrot.slane %v1560, 1
  %vm1584 = vcmask 1046528
  %v1585 = vsel %vm1584, %v1582, 0.0
  %v1586 = vsel %vm550, %v1560, 0
  %1588 = vmatprep.subr.mxu0 0.0
  %1589 = vmatpush1.msra.mxu0 %v1568
  %1590 = vmatprep.subr.mxu0 0.0
  %1591 = vmatpush1.msra.mxu0 %v1569
  %1592 = vmatprep.subr.mxu0 0.0
  %1593 = vmatpush1.msra.mxu0 %v1570
  %1594 = vmatprep.subr.mxu0 0.0
  %1595 = vmatpush1.msra.mxu0 %v1571
  %1596 = vmatprep.subr.mxu0 0.0
  %1597 = vmatpush1.msra.mxu0 0.0
  %1598 = vmatprep.subr.mxu0 0.0
  %1599 = vmatpush1.msra.mxu0 0.0
  %1600 = vmatprep.subr.mxu0 0.0
  %1601 = vmatpush1.msra.mxu0 0.0
  %1602 = vmatprep.subr.mxu0 0.0
  %1603 = vmatpush1.msra.mxu0 0.0
  %1604 = vmatprep.subr.mxu0 0.0
  %1605 = vmatpush1.msra.mxu0 0.0
  %1606 = vmatprep.subr.mxu0 0.0
  %1607 = vmatpush1.msra.mxu0 0.0
  %1608 = vmatprep.subr.mxu0 0.0
  %1609 = vmatpush1.msra.mxu0 0.0
  %1610 = vmatprep.subr.mxu0 0.0
  %1611 = vmatpush1.msra.mxu0 0.0
  %1612 = vmatprep.subr.mxu0 0.0
  %1613 = vmatpush1.msra.mxu0 0.0
  %1614 = vmatprep.subr.mxu0 0.0
  %1615 = vmatpush1.msra.mxu0 0.0
  %1616 = vmatprep.subr.mxu0 0.0
  %1617 = vmatpush1.msra.mxu0 0.0
  %1618 = vmatprep.subr.mxu0 0.0
  %1619 = vmatpush1.msra.mxu0 0.0
  %1620 = vmatprep.subr.mxu0 0.0
  %1621 = vmatpush1.msra.mxu0 0.0
  %1622 = vmatprep.subr.mxu0 0.0
  %1623 = vmatpush1.msra.mxu0 0.0
  %1624 = vmatprep.subr.mxu0 0.0
  %1625 = vmatpush1.msra.mxu0 0.0
  %1626 = vmatprep.subr.mxu0 0.0
  %1627 = vmatpush1.msra.mxu0 0.0
  %1628 = vmatprep.subr.mxu0 0.0
  %1629 = vmatpush1.msra.mxu0 0.0
  %1630 = vmatprep.subr.mxu0 0.0
  %1631 = vmatpush1.msra.mxu0 0.0
  %1632 = vmatprep.subr.mxu0 0.0
  %1633 = vmatpush1.msra.mxu0 0.0
  %1634 = vmatprep.subr.mxu0 0.0
  %1635 = vmatpush1.msra.mxu0 0.0
  %1636 = vmatprep.subr.mxu0 0.0
  %1637 = vmatpush1.msra.mxu0 0.0
  %1638 = vmatprep.subr.mxu0 0.0
  %1639 = vmatpush1.msra.mxu0 0.0
  %1640 = vmatprep.subr.mxu0 0.0
  %1641 = vmatpush1.msra.mxu0 0.0
  %1642 = vmatprep.subr.mxu0 0.0
  %1643 = vmatpush1.msra.mxu0 0.0
  %1644 = vmatprep.subr.mxu0 0.0
  %1645 = vmatpush1.msra.mxu0 0.0
  %1646 = vmatprep.subr.mxu0 0.0
  %1647 = vmatpush1.msra.mxu0 0.0
  %1648 = vmatprep.subr.mxu0 0.0
  %1649 = vmatpush1.msra.mxu0 0.0
  %1650 = vmatprep.subr.mxu0 0.0
  %1651 = vmatpush1.msra.mxu0 0.0
  %1652 = vmatprep.mubr.f32.mxu0 0.0
  %1653 = vmatmul.mubr.f32.gmra.mrb[0].mxu0 %v1586
  %v1654 = vpop.f32.mrb[0].mxu0
  %v1655 = vadd.f32 0.0, %v1654
  %v1656 = vpop.f32.mrb[0].mxu0
  %1657 = vdwg.mxu0
  %v1659 = vsel %vm550, %v1581, 0
  %1661 = vmatprep.subr.mxu0 0.0
  %1662 = vmatpush1.msra.mxu0 %v1563
  %1663 = vmatprep.subr.mxu0 0.0
  %1664 = vmatpush1.msra.mxu0 %v1564
  %1665 = vmatprep.subr.mxu0 0.0
  %1666 = vmatpush1.msra.mxu0 %v1565
  %1667 = vmatprep.subr.mxu0 0.0
  %1668 = vmatpush1.msra.mxu0 %v1566
  %1669 = vmatprep.subr.mxu0 0.0
  %1670 = vmatpush1.msra.mxu0 0.0
  %1671 = vmatprep.subr.mxu0 0.0
  %1672 = vmatpush1.msra.mxu0 0.0
  %1673 = vmatprep.subr.mxu0 0.0
  %1674 = vmatpush1.msra.mxu0 0.0
  %1675 = vmatprep.subr.mxu0 0.0
  %1676 = vmatpush1.msra.mxu0 0.0
  %1677 = vmatprep.subr.mxu0 0.0
  %1678 = vmatpush1.msra.mxu0 0.0
  %1679 = vmatprep.subr.mxu0 0.0
  %1680 = vmatpush1.msra.mxu0 0.0
  %1681 = vmatprep.subr.mxu0 0.0
  %1682 = vmatpush1.msra.mxu0 0.0
  %1683 = vmatprep.subr.mxu0 0.0
  %1684 = vmatpush1.msra.mxu0 0.0
  %1685 = vmatprep.subr.mxu0 0.0
  %1686 = vmatpush1.msra.mxu0 0.0
  %1687 = vmatprep.subr.mxu0 0.0
  %1688 = vmatpush1.msra.mxu0 0.0
  %1689 = vmatprep.subr.mxu0 0.0
  %1690 = vmatpush1.msra.mxu0 0.0
  %1691 = vmatprep.subr.mxu0 0.0
  %1692 = vmatpush1.msra.mxu0 0.0
  %1693 = vmatprep.subr.mxu0 0.0
  %1694 = vmatpush1.msra.mxu0 0.0
  %1695 = vmatprep.subr.mxu0 0.0
  %1696 = vmatpush1.msra.mxu0 0.0
  %1697 = vmatprep.subr.mxu0 0.0
  %1698 = vmatpush1.msra.mxu0 0.0
  %1699 = vmatprep.subr.mxu0 0.0
  %1700 = vmatpush1.msra.mxu0 0.0
  %1701 = vmatprep.subr.mxu0 0.0
  %1702 = vmatpush1.msra.mxu0 0.0
  %1703 = vmatprep.subr.mxu0 0.0
  %1704 = vmatpush1.msra.mxu0 0.0
  %1705 = vmatprep.subr.mxu0 0.0
  %1706 = vmatpush1.msra.mxu0 0.0
  %1707 = vmatprep.subr.mxu0 0.0
  %1708 = vmatpush1.msra.mxu0 0.0
  %1709 = vmatprep.subr.mxu0 0.0
  %1710 = vmatpush1.msra.mxu0 0.0
  %1711 = vmatprep.subr.mxu0 0.0
  %1712 = vmatpush1.msra.mxu0 0.0
  %1713 = vmatprep.subr.mxu0 0.0
  %1714 = vmatpush1.msra.mxu0 0.0
  %1715 = vmatprep.subr.mxu0 0.0
  %1716 = vmatpush1.msra.mxu0 0.0
  %1717 = vmatprep.subr.mxu0 0.0
  %1718 = vmatpush1.msra.mxu0 0.0
  %1719 = vmatprep.subr.mxu0 0.0
  %1720 = vmatpush1.msra.mxu0 0.0
  %1721 = vmatprep.subr.mxu0 0.0
  %1722 = vmatpush1.msra.mxu0 0.0
  %1723 = vmatprep.subr.mxu0 0.0
  %1724 = vmatpush1.msra.mxu0 0.0
  %1725 = vmatprep.mubr.f32.mxu0 0.0
  %1726 = vmatmul.mubr.f32.gmra.mrb[0].mxu0 %v1659
  %v1727 = vpop.f32.mrb[0].mxu0
  %v1728 = vadd.f32 %v1655, %v1727
  %v1729 = vpop.f32.mrb[0].mxu0
  %1730 = vdwg.mxu0
  %v1732 = vsel %vm550, %v1585, 0
  %1734 = vmatprep.subr.mxu0 0.0
  %1735 = vmatpush1.msra.mxu0 %v1573
  %1736 = vmatprep.subr.mxu0 0.0
  %1737 = vmatpush1.msra.mxu0 %v1574
  %1738 = vmatprep.subr.mxu0 0.0
  %1739 = vmatpush1.msra.mxu0 %v1575
  %1740 = vmatprep.subr.mxu0 0.0
  %1741 = vmatpush1.msra.mxu0 %v1576
  %1742 = vmatprep.subr.mxu0 0.0
  %1743 = vmatpush1.msra.mxu0 0.0
  %1744 = vmatprep.subr.mxu0 0.0
  %1745 = vmatpush1.msra.mxu0 0.0
  %1746 = vmatprep.subr.mxu0 0.0
  %1747 = vmatpush1.msra.mxu0 0.0
  %1748 = vmatprep.subr.mxu0 0.0
  %1749 = vmatpush1.msra.mxu0 0.0
  %1750 = vmatprep.subr.mxu0 0.0
  %1751 = vmatpush1.msra.mxu0 0.0
  %1752 = vmatprep.subr.mxu0 0.0
  %1753 = vmatpush1.msra.mxu0 0.0
  %1754 = vmatprep.subr.mxu0 0.0
  %1755 = vmatpush1.msra.mxu0 0.0
  %1756 = vmatprep.subr.mxu0 0.0
  %1757 = vmatpush1.msra.mxu0 0.0
  %1758 = vmatprep.subr.mxu0 0.0
  %1759 = vmatpush1.msra.mxu0 0.0
  %1760 = vmatprep.subr.mxu0 0.0
  %1761 = vmatpush1.msra.mxu0 0.0
  %1762 = vmatprep.subr.mxu0 0.0
  %1763 = vmatpush1.msra.mxu0 0.0
  %1764 = vmatprep.subr.mxu0 0.0
  %1765 = vmatpush1.msra.mxu0 0.0
  %1766 = vmatprep.subr.mxu0 0.0
  %1767 = vmatpush1.msra.mxu0 0.0
  %1768 = vmatprep.subr.mxu0 0.0
  %1769 = vmatpush1.msra.mxu0 0.0
  %1770 = vmatprep.subr.mxu0 0.0
  %1771 = vmatpush1.msra.mxu0 0.0
  %1772 = vmatprep.subr.mxu0 0.0
  %1773 = vmatpush1.msra.mxu0 0.0
  %1774 = vmatprep.subr.mxu0 0.0
  %1775 = vmatpush1.msra.mxu0 0.0
  %1776 = vmatprep.subr.mxu0 0.0
  %1777 = vmatpush1.msra.mxu0 0.0
  %1778 = vmatprep.subr.mxu0 0.0
  %1779 = vmatpush1.msra.mxu0 0.0
  %1780 = vmatprep.subr.mxu0 0.0
  %1781 = vmatpush1.msra.mxu0 0.0
  %1782 = vmatprep.subr.mxu0 0.0
  %1783 = vmatpush1.msra.mxu0 0.0
  %1784 = vmatprep.subr.mxu0 0.0
  %1785 = vmatpush1.msra.mxu0 0.0
  %1786 = vmatprep.subr.mxu0 0.0
  %1787 = vmatpush1.msra.mxu0 0.0
  %1788 = vmatprep.subr.mxu0 0.0
  %1789 = vmatpush1.msra.mxu0 0.0
  %1790 = vmatprep.subr.mxu0 0.0
  %1791 = vmatpush1.msra.mxu0 0.0
  %1792 = vmatprep.subr.mxu0 0.0
  %1793 = vmatpush1.msra.mxu0 0.0
  %1794 = vmatprep.subr.mxu0 0.0
  %1795 = vmatpush1.msra.mxu0 0.0
  %1796 = vmatprep.subr.mxu0 0.0
  %1797 = vmatpush1.msra.mxu0 0.0
  %1798 = vmatprep.mubr.f32.mxu0 0.0
  %1799 = vmatmul.mubr.f32.gmra.mrb[0].mxu0 %v1732
  %v1800 = vpop.f32.mrb[0].mxu0
  %v1801 = vadd.f32 0.0, %v1800
  %v1802 = vpop.f32.mrb[0].mxu0
  %1803 = vdwg.mxu0
  %v1804 = vadd.f32 %v1728, %v1801
  %v1805 = vld [vmem:[%s14] sm:$0x1]
  %v1807 = vlaneseq
  %v1808 = vshrl.u32 %v1807, 7
  %v1809 = vsub.s32 0, %v1808
  %v1810 = vrot.slane %v1805, %v1809
  %v1812 = vadd.f32 %v1804, %v1810
  %vm1813 = vcmp.ge.f32.partialorder %v1812, 0.0
  %v1814 = vmul.f32 %v1812, 0.02
  %v1815 = vsel %vm1813, %v1812, %v1814
  %v1816 = vld [vmem:[%s15] sm:$0xff]
  %v1817 = vld [vmem:[%s15 + $0x8] sm:$0xff]
  %s1818 = scalar_lea.vmem %s15, 16
  %v1819 = vld [vmem:[%s1818] sm:$0xff]
  %v1820 = vld [vmem:[%s1818 + $0x8] sm:$0xff]
  %s1821 = scalar_lea.vmem %s15, 32
  %v1822 = vld [vmem:[%s1821] sm:$0xff]
  %v1823 = vld [vmem:[%s1821 + $0x8] sm:$0xff]
  %v1825 = vrot.slane %v1815, 7
  %v1827 = vsel %vm1580, 0.0, %v1825
  %v1828 = vrot.slane %v1815, 1
  %v1830 = vsel %vm1584, %v1828, 0.0
  %vm1831 = vcmask 130048
  %v1832 = vsel %vm1831, %v1815, 0
  %1834 = vmatprep.subr.mxu0 0.0
  %1835 = vmatpush1.msra.mxu0 %v1819
  %1836 = vmatprep.subr.mxu0 0.0
  %1837 = vmatpush1.msra.mxu0 %v1820
  %1838 = vmatprep.subr.mxu0 0.0
  %1839 = vmatpush1.msra.mxu0 0.0
  %1840 = vmatprep.subr.mxu0 0.0
  %1841 = vmatpush1.msra.mxu0 0.0
  %1842 = vmatprep.subr.mxu0 0.0
  %1843 = vmatpush1.msra.mxu0 0.0
  %1844 = vmatprep.subr.mxu0 0.0
  %1845 = vmatpush1.msra.mxu0 0.0
  %1846 = vmatprep.subr.mxu0 0.0
  %1847 = vmatpush1.msra.mxu0 0.0
  %1848 = vmatprep.subr.mxu0 0.0
  %1849 = vmatpush1.msra.mxu0 0.0
  %1850 = vmatprep.subr.mxu0 0.0
  %1851 = vmatpush1.msra.mxu0 0.0
  %1852 = vmatprep.subr.mxu0 0.0
  %1853 = vmatpush1.msra.mxu0 0.0
  %1854 = vmatprep.subr.mxu0 0.0
  %1855 = vmatpush1.msra.mxu0 0.0
  %1856 = vmatprep.subr.mxu0 0.0
  %1857 = vmatpush1.msra.mxu0 0.0
  %1858 = vmatprep.subr.mxu0 0.0
  %1859 = vmatpush1.msra.mxu0 0.0
  %1860 = vmatprep.subr.mxu0 0.0
  %1861 = vmatpush1.msra.mxu0 0.0
  %1862 = vmatprep.subr.mxu0 0.0
  %1863 = vmatpush1.msra.mxu0 0.0
  %1864 = vmatprep.subr.mxu0 0.0
  %1865 = vmatpush1.msra.mxu0 0.0
  %1866 = vmatprep.subr.mxu0 0.0
  %1867 = vmatpush1.msra.mxu0 0.0
  %1868 = vmatprep.subr.mxu0 0.0
  %1869 = vmatpush1.msra.mxu0 0.0
  %1870 = vmatprep.subr.mxu0 0.0
  %1871 = vmatpush1.msra.mxu0 0.0
  %1872 = vmatprep.subr.mxu0 0.0
  %1873 = vmatpush1.msra.mxu0 0.0
  %1874 = vmatprep.subr.mxu0 0.0
  %1875 = vmatpush1.msra.mxu0 0.0
  %1876 = vmatprep.subr.mxu0 0.0
  %1877 = vmatpush1.msra.mxu0 0.0
  %1878 = vmatprep.subr.mxu0 0.0
  %1879 = vmatpush1.msra.mxu0 0.0
  %1880 = vmatprep.subr.mxu0 0.0
  %1881 = vmatpush1.msra.mxu0 0.0
  %1882 = vmatprep.subr.mxu0 0.0
  %1883 = vmatpush1.msra.mxu0 0.0
  %1884 = vmatprep.subr.mxu0 0.0
  %1885 = vmatpush1.msra.mxu0 0.0
  %1886 = vmatprep.subr.mxu0 0.0
  %1887 = vmatpush1.msra.mxu0 0.0
  %1888 = vmatprep.subr.mxu0 0.0
  %1889 = vmatpush1.msra.mxu0 0.0
  %1890 = vmatprep.subr.mxu0 0.0
  %1891 = vmatpush1.msra.mxu0 0.0
  %1892 = vmatprep.subr.mxu0 0.0
  %1893 = vmatpush1.msra.mxu0 0.0
  %1894 = vmatprep.subr.mxu0 0.0
  %1895 = vmatpush1.msra.mxu0 0.0
  %1896 = vmatprep.subr.mxu0 0.0
  %1897 = vmatpush1.msra.mxu0 0.0
  %1898 = vmatprep.mubr.f32.mxu0 0.0
  %1899 = vmatmul.mubr.f32.gmra.mrb[0].mxu0 %v1832
  %v1900 = vpop.f32.mrb[0].mxu0
  %v1901 = vadd.f32 0.0, %v1900
  %v1902 = vpop.f32.mrb[0].mxu0
  %1903 = vdwg.mxu0
  %v1905 = vsel %vm1831, %v1827, 0
  %1907 = vmatprep.subr.mxu0 0.0
  %1908 = vmatpush1.msra.mxu0 %v1816
  %1909 = vmatprep.subr.mxu0 0.0
  %1910 = vmatpush1.msra.mxu0 %v1817
  %1911 = vmatprep.subr.mxu0 0.0
  %1912 = vmatpush1.msra.mxu0 0.0
  %1913 = vmatprep.subr.mxu0 0.0
  %1914 = vmatpush1.msra.mxu0 0.0
  %1915 = vmatprep.subr.mxu0 0.0
  %1916 = vmatpush1.msra.mxu0 0.0
  %1917 = vmatprep.subr.mxu0 0.0
  %1918 = vmatpush1.msra.mxu0 0.0
  %1919 = vmatprep.subr.mxu0 0.0
  %1920 = vmatpush1.msra.mxu0 0.0
  %1921 = vmatprep.subr.mxu0 0.0
  %1922 = vmatpush1.msra.mxu0 0.0
  %1923 = vmatprep.subr.mxu0 0.0
  %1924 = vmatpush1.msra.mxu0 0.0
  %1925 = vmatprep.subr.mxu0 0.0
  %1926 = vmatpush1.msra.mxu0 0.0
  %1927 = vmatprep.subr.mxu0 0.0
  %1928 = vmatpush1.msra.mxu0 0.0
  %1929 = vmatprep.subr.mxu0 0.0
  %1930 = vmatpush1.msra.mxu0 0.0
  %1931 = vmatprep.subr.mxu0 0.0
  %1932 = vmatpush1.msra.mxu0 0.0
  %1933 = vmatprep.subr.mxu0 0.0
  %1934 = vmatpush1.msra.mxu0 0.0
  %1935 = vmatprep.subr.mxu0 0.0
  %1936 = vmatpush1.msra.mxu0 0.0
  %1937 = vmatprep.subr.mxu0 0.0
  %1938 = vmatpush1.msra.mxu0 0.0
  %1939 = vmatprep.subr.mxu0 0.0
  %1940 = vmatpush1.msra.mxu0 0.0
  %1941 = vmatprep.subr.mxu0 0.0
  %1942 = vmatpush1.msra.mxu0 0.0
  %1943 = vmatprep.subr.mxu0 0.0
  %1944 = vmatpush1.msra.mxu0 0.0
  %1945 = vmatprep.subr.mxu0 0.0
  %1946 = vmatpush1.msra.mxu0 0.0
  %1947 = vmatprep.subr.mxu0 0.0
  %1948 = vmatpush1.msra.mxu0 0.0
  %1949 = vmatprep.subr.mxu0 0.0
  %1950 = vmatpush1.msra.mxu0 0.0
  %1951 = vmatprep.subr.mxu0 0.0
  %1952 = vmatpush1.msra.mxu0 0.0
  %1953 = vmatprep.subr.mxu0 0.0
  %1954 = vmatpush1.msra.mxu0 0.0
  %1955 = vmatprep.subr.mxu0 0.0
  %1956 = vmatpush1.msra.mxu0 0.0
  %1957 = vmatprep.subr.mxu0 0.0
  %1958 = vmatpush1.msra.mxu0 0.0
  %1959 = vmatprep.subr.mxu0 0.0
  %1960 = vmatpush1.msra.mxu0 0.0
  %1961 = vmatprep.subr.mxu0 0.0
  %1962 = vmatpush1.msra.mxu0 0.0
  %1963 = vmatprep.subr.mxu0 0.0
  %1964 = vmatpush1.msra.mxu0 0.0
  %1965 = vmatprep.subr.mxu0 0.0
  %1966 = vmatpush1.msra.mxu0 0.0
  %1967 = vmatprep.subr.mxu0 0.0
  %1968 = vmatpush1.msra.mxu0 0.0
  %1969 = vmatprep.subr.mxu0 0.0
  %1970 = vmatpush1.msra.mxu0 0.0
  %1971 = vmatprep.mubr.f32.mxu0 0.0
  %1972 = vmatmul.mubr.f32.gmra.mrb[0].mxu0 %v1905
  %v1973 = vpop.f32.mrb[0].mxu0
  %v1974 = vadd.f32 %v1901, %v1973
  %v1975 = vpop.f32.mrb[0].mxu0
  %1976 = vdwg.mxu0
  %v1978 = vsel %vm1831, %v1830, 0
  %1980 = vmatprep.subr.mxu0 0.0
  %1981 = vmatpush1.msra.mxu0 %v1822
  %1982 = vmatprep.subr.mxu0 0.0
  %1983 = vmatpush1.msra.mxu0 %v1823
  %1984 = vmatprep.subr.mxu0 0.0
  %1985 = vmatpush1.msra.mxu0 0.0
  %1986 = vmatprep.subr.mxu0 0.0
  %1987 = vmatpush1.msra.mxu0 0.0
  %1988 = vmatprep.subr.mxu0 0.0
  %1989 = vmatpush1.msra.mxu0 0.0
  %1990 = vmatprep.subr.mxu0 0.0
  %1991 = vmatpush1.msra.mxu0 0.0
  %1992 = vmatprep.subr.mxu0 0.0
  %1993 = vmatpush1.msra.mxu0 0.0
  %1994 = vmatprep.subr.mxu0 0.0
  %1995 = vmatpush1.msra.mxu0 0.0
  %1996 = vmatprep.subr.mxu0 0.0
  %1997 = vmatpush1.msra.mxu0 0.0
  %1998 = vmatprep.subr.mxu0 0.0
  %1999 = vmatpush1.msra.mxu0 0.0
  %2000 = vmatprep.subr.mxu0 0.0
  %2001 = vmatpush1.msra.mxu0 0.0
  %2002 = vmatprep.subr.mxu0 0.0
  %2003 = vmatpush1.msra.mxu0 0.0
  %2004 = vmatprep.subr.mxu0 0.0
  %2005 = vmatpush1.msra.mxu0 0.0
  %2006 = vmatprep.subr.mxu0 0.0
  %2007 = vmatpush1.msra.mxu0 0.0
  %2008 = vmatprep.subr.mxu0 0.0
  %2009 = vmatpush1.msra.mxu0 0.0
  %2010 = vmatprep.subr.mxu0 0.0
  %2011 = vmatpush1.msra.mxu0 0.0
  %2012 = vmatprep.subr.mxu0 0.0
  %2013 = vmatpush1.msra.mxu0 0.0
  %2014 = vmatprep.subr.mxu0 0.0
  %2015 = vmatpush1.msra.mxu0 0.0
  %2016 = vmatprep.subr.mxu0 0.0
  %2017 = vmatpush1.msra.mxu0 0.0
  %2018 = vmatprep.subr.mxu0 0.0
  %2019 = vmatpush1.msra.mxu0 0.0
  %2020 = vmatprep.subr.mxu0 0.0
  %2021 = vmatpush1.msra.mxu0 0.0
  %2022 = vmatprep.subr.mxu0 0.0
  %2023 = vmatpush1.msra.mxu0 0.0
  %2024 = vmatprep.subr.mxu0 0.0
  %2025 = vmatpush1.msra.mxu0 0.0
  %2026 = vmatprep.subr.mxu0 0.0
  %2027 = vmatpush1.msra.mxu0 0.0
  %2028 = vmatprep.subr.mxu0 0.0
  %2029 = vmatpush1.msra.mxu0 0.0
  %2030 = vmatprep.subr.mxu0 0.0
  %2031 = vmatpush1.msra.mxu0 0.0
  %2032 = vmatprep.subr.mxu0 0.0
  %2033 = vmatpush1.msra.mxu0 0.0
  %2034 = vmatprep.subr.mxu0 0.0
  %2035 = vmatpush1.msra.mxu0 0.0
  %2036 = vmatprep.subr.mxu0 0.0
  %2037 = vmatpush1.msra.mxu0 0.0
  %2038 = vmatprep.subr.mxu0 0.0
  %2039 = vmatpush1.msra.mxu0 0.0
  %2040 = vmatprep.subr.mxu0 0.0
  %2041 = vmatpush1.msra.mxu0 0.0
  %2042 = vmatprep.subr.mxu0 0.0
  %2043 = vmatpush1.msra.mxu0 0.0
  %2044 = vmatprep.mubr.f32.mxu0 0.0
  %2045 = vmatmul.mubr.f32.gmra.mrb[0].mxu0 %v1978
  %v2046 = vpop.f32.mrb[0].mxu0
  %v2047 = vadd.f32 0.0, %v2046
  %v2048 = vpop.f32.mrb[0].mxu0
  %2049 = vdwg.mxu0
  %v2050 = vadd.f32 %v1974, %v2047
  %v2051 = vld [vmem:[%s16] sm:$0x1]
  %v2053 = vlaneseq
  %v2054 = vshrl.u32 %v2053, 7
  %v2055 = vsub.s32 0, %v2054
  %v2056 = vrot.slane %v2051, %v2055
  %v2058 = vadd.f32 %v2050, %v2056
  %vm2059 = vcmp.ge.f32.partialorder %v2058, 0.0
  %v2060 = vmul.f32 %v2058, 0.02
  %v2061 = vsel %vm2059, %v2058, %v2060
  %v2062 = vld [vmem:[%s17] sm:$0xff]
  %s2063 = scalar_lea.vmem %s17, 8
  %v2064 = vld [vmem:[%s2063] sm:$0xff]
  %s2065 = scalar_lea.vmem %s17, 16
  %v2066 = vld [vmem:[%s2065] sm:$0xff]
  %v2068 = vrot.slane %v2061, 7
  %v2070 = vsel %vm1580, 0.0, %v2068
  %v2071 = vrot.slane %v2061, 1
  %v2073 = vsel %vm1584, %v2071, 0.0
  %vm2074 = vcmask 64512
  %v2075 = vsel %vm2074, %v2061, 0
  %2077 = vmatprep.subr.mxu0 0.0
  %2078 = vmatpush1.msra.mxu0 %v2064
  %2079 = vmatprep.subr.mxu0 0.0
  %2080 = vmatpush1.msra.mxu0 0.0
  %2081 = vmatprep.subr.mxu0 0.0
  %2082 = vmatpush1.msra.mxu0 0.0
  %2083 = vmatprep.subr.mxu0 0.0
  %2084 = vmatpush1.msra.mxu0 0.0
  %2085 = vmatprep.subr.mxu0 0.0
  %2086 = vmatpush1.msra.mxu0 0.0
  %2087 = vmatprep.subr.mxu0 0.0
  %2088 = vmatpush1.msra.mxu0 0.0
  %2089 = vmatprep.subr.mxu0 0.0
  %2090 = vmatpush1.msra.mxu0 0.0
  %2091 = vmatprep.subr.mxu0 0.0
  %2092 = vmatpush1.msra.mxu0 0.0
  %2093 = vmatprep.subr.mxu0 0.0
  %2094 = vmatpush1.msra.mxu0 0.0
  %2095 = vmatprep.subr.mxu0 0.0
  %2096 = vmatpush1.msra.mxu0 0.0
  %2097 = vmatprep.subr.mxu0 0.0
  %2098 = vmatpush1.msra.mxu0 0.0
  %2099 = vmatprep.subr.mxu0 0.0
  %2100 = vmatpush1.msra.mxu0 0.0
  %2101 = vmatprep.subr.mxu0 0.0
  %2102 = vmatpush1.msra.mxu0 0.0
  %2103 = vmatprep.subr.mxu0 0.0
  %2104 = vmatpush1.msra.mxu0 0.0
  %2105 = vmatprep.subr.mxu0 0.0
  %2106 = vmatpush1.msra.mxu0 0.0
  %2107 = vmatprep.subr.mxu0 0.0
  %2108 = vmatpush1.msra.mxu0 0.0
  %2109 = vmatprep.subr.mxu0 0.0
  %2110 = vmatpush1.msra.mxu0 0.0
  %2111 = vmatprep.subr.mxu0 0.0
  %2112 = vmatpush1.msra.mxu0 0.0
  %2113 = vmatprep.subr.mxu0 0.0
  %2114 = vmatpush1.msra.mxu0 0.0
  %2115 = vmatprep.subr.mxu0 0.0
  %2116 = vmatpush1.msra.mxu0 0.0
  %2117 = vmatprep.subr.mxu0 0.0
  %2118 = vmatpush1.msra.mxu0 0.0
  %2119 = vmatprep.subr.mxu0 0.0
  %2120 = vmatpush1.msra.mxu0 0.0
  %2121 = vmatprep.subr.mxu0 0.0
  %2122 = vmatpush1.msra.mxu0 0.0
  %2123 = vmatprep.subr.mxu0 0.0
  %2124 = vmatpush1.msra.mxu0 0.0
  %2125 = vmatprep.subr.mxu0 0.0
  %2126 = vmatpush1.msra.mxu0 0.0
  %2127 = vmatprep.subr.mxu0 0.0
  %2128 = vmatpush1.msra.mxu0 0.0
  %2129 = vmatprep.subr.mxu0 0.0
  %2130 = vmatpush1.msra.mxu0 0.0
  %2131 = vmatprep.subr.mxu0 0.0
  %2132 = vmatpush1.msra.mxu0 0.0
  %2133 = vmatprep.subr.mxu0 0.0
  %2134 = vmatpush1.msra.mxu0 0.0
  %2135 = vmatprep.subr.mxu0 0.0
  %2136 = vmatpush1.msra.mxu0 0.0
  %2137 = vmatprep.subr.mxu0 0.0
  %2138 = vmatpush1.msra.mxu0 0.0
  %2139 = vmatprep.subr.mxu0 0.0
  %2140 = vmatpush1.msra.mxu0 0.0
  %2141 = vmatprep.mubr.f32.mxu0 0.0
  %2142 = vmatmul.mubr.f32.gmra.mrb[0].mxu0 %v2075
  %v2143 = vpop.f32.mrb[0].mxu0
  %v2144 = vadd.f32 0.0, %v2143
  %v2145 = vpop.f32.mrb[0].mxu0
  %2146 = vdwg.mxu0
  %v2148 = vsel %vm2074, %v2070, 0
  %2150 = vmatprep.subr.mxu0 0.0
  %2151 = vmatpush1.msra.mxu0 %v2062
  %2152 = vmatprep.subr.mxu0 0.0
  %2153 = vmatpush1.msra.mxu0 0.0
  %2154 = vmatprep.subr.mxu0 0.0
  %2155 = vmatpush1.msra.mxu0 0.0
  %2156 = vmatprep.subr.mxu0 0.0
  %2157 = vmatpush1.msra.mxu0 0.0
  %2158 = vmatprep.subr.mxu0 0.0
  %2159 = vmatpush1.msra.mxu0 0.0
  %2160 = vmatprep.subr.mxu0 0.0
  %2161 = vmatpush1.msra.mxu0 0.0
  %2162 = vmatprep.subr.mxu0 0.0
  %2163 = vmatpush1.msra.mxu0 0.0
  %2164 = vmatprep.subr.mxu0 0.0
  %2165 = vmatpush1.msra.mxu0 0.0
  %2166 = vmatprep.subr.mxu0 0.0
  %2167 = vmatpush1.msra.mxu0 0.0
  %2168 = vmatprep.subr.mxu0 0.0
  %2169 = vmatpush1.msra.mxu0 0.0
  %2170 = vmatprep.subr.mxu0 0.0
  %2171 = vmatpush1.msra.mxu0 0.0
  %2172 = vmatprep.subr.mxu0 0.0
  %2173 = vmatpush1.msra.mxu0 0.0
  %2174 = vmatprep.subr.mxu0 0.0
  %2175 = vmatpush1.msra.mxu0 0.0
  %2176 = vmatprep.subr.mxu0 0.0
  %2177 = vmatpush1.msra.mxu0 0.0
  %2178 = vmatprep.subr.mxu0 0.0
  %2179 = vmatpush1.msra.mxu0 0.0
  %2180 = vmatprep.subr.mxu0 0.0
  %2181 = vmatpush1.msra.mxu0 0.0
  %2182 = vmatprep.subr.mxu0 0.0
  %2183 = vmatpush1.msra.mxu0 0.0
  %2184 = vmatprep.subr.mxu0 0.0
  %2185 = vmatpush1.msra.mxu0 0.0
  %2186 = vmatprep.subr.mxu0 0.0
  %2187 = vmatpush1.msra.mxu0 0.0
  %2188 = vmatprep.subr.mxu0 0.0
  %2189 = vmatpush1.msra.mxu0 0.0
  %2190 = vmatprep.subr.mxu0 0.0
  %2191 = vmatpush1.msra.mxu0 0.0
  %2192 = vmatprep.subr.mxu0 0.0
  %2193 = vmatpush1.msra.mxu0 0.0
  %2194 = vmatprep.subr.mxu0 0.0
  %2195 = vmatpush1.msra.mxu0 0.0
  %2196 = vmatprep.subr.mxu0 0.0
  %2197 = vmatpush1.msra.mxu0 0.0
  %2198 = vmatprep.subr.mxu0 0.0
  %2199 = vmatpush1.msra.mxu0 0.0
  %2200 = vmatprep.subr.mxu0 0.0
  %2201 = vmatpush1.msra.mxu0 0.0
  %2202 = vmatprep.subr.mxu0 0.0
  %2203 = vmatpush1.msra.mxu0 0.0
  %2204 = vmatprep.subr.mxu0 0.0
  %2205 = vmatpush1.msra.mxu0 0.0
  %2206 = vmatprep.subr.mxu0 0.0
  %2207 = vmatpush1.msra.mxu0 0.0
  %2208 = vmatprep.subr.mxu0 0.0
  %2209 = vmatpush1.msra.mxu0 0.0
  %2210 = vmatprep.subr.mxu0 0.0
  %2211 = vmatpush1.msra.mxu0 0.0
  %2212 = vmatprep.subr.mxu0 0.0
  %2213 = vmatpush1.msra.mxu0 0.0
  %2214 = vmatprep.mubr.f32.mxu0 0.0
  %2215 = vmatmul.mubr.f32.gmra.mrb[0].mxu0 %v2148
  %v2216 = vpop.f32.mrb[0].mxu0
  %v2217 = vadd.f32 %v2144, %v2216
  %v2218 = vpop.f32.mrb[0].mxu0
  %2219 = vdwg.mxu0
  %v2221 = vsel %vm2074, %v2073, 0
  %2223 = vmatprep.subr.mxu0 0.0
  %2224 = vmatpush1.msra.mxu0 %v2066
  %2225 = vmatprep.subr.mxu0 0.0
  %2226 = vmatpush1.msra.mxu0 0.0
  %2227 = vmatprep.subr.mxu0 0.0
  %2228 = vmatpush1.msra.mxu0 0.0
  %2229 = vmatprep.subr.mxu0 0.0
  %2230 = vmatpush1.msra.mxu0 0.0
  %2231 = vmatprep.subr.mxu0 0.0
  %2232 = vmatpush1.msra.mxu0 0.0
  %2233 = vmatprep.subr.mxu0 0.0
  %2234 = vmatpush1.msra.mxu0 0.0
  %2235 = vmatprep.subr.mxu0 0.0
  %2236 = vmatpush1.msra.mxu0 0.0
  %2237 = vmatprep.subr.mxu0 0.0
  %2238 = vmatpush1.msra.mxu0 0.0
  %2239 = vmatprep.subr.mxu0 0.0
  %2240 = vmatpush1.msra.mxu0 0.0
  %2241 = vmatprep.subr.mxu0 0.0
  %2242 = vmatpush1.msra.mxu0 0.0
  %2243 = vmatprep.subr.mxu0 0.0
  %2244 = vmatpush1.msra.mxu0 0.0
  %2245 = vmatprep.subr.mxu0 0.0
  %2246 = vmatpush1.msra.mxu0 0.0
  %2247 = vmatprep.subr.mxu0 0.0
  %2248 = vmatpush1.msra.mxu0 0.0
  %2249 = vmatprep.subr.mxu0 0.0
  %2250 = vmatpush1.msra.mxu0 0.0
  %2251 = vmatprep.subr.mxu0 0.0
  %2252 = vmatpush1.msra.mxu0 0.0
  %2253 = vmatprep.subr.mxu0 0.0
  %2254 = vmatpush1.msra.mxu0 0.0
  %2255 = vmatprep.subr.mxu0 0.0
  %2256 = vmatpush1.msra.mxu0 0.0
  %2257 = vmatprep.subr.mxu0 0.0
  %2258 = vmatpush1.msra.mxu0 0.0
  %2259 = vmatprep.subr.mxu0 0.0
  %2260 = vmatpush1.msra.mxu0 0.0
  %2261 = vmatprep.subr.mxu0 0.0
  %2262 = vmatpush1.msra.mxu0 0.0
  %2263 = vmatprep.subr.mxu0 0.0
  %2264 = vmatpush1.msra.mxu0 0.0
  %2265 = vmatprep.subr.mxu0 0.0
  %2266 = vmatpush1.msra.mxu0 0.0
  %2267 = vmatprep.subr.mxu0 0.0
  %2268 = vmatpush1.msra.mxu0 0.0
  %2269 = vmatprep.subr.mxu0 0.0
  %2270 = vmatpush1.msra.mxu0 0.0
  %2271 = vmatprep.subr.mxu0 0.0
  %2272 = vmatpush1.msra.mxu0 0.0
  %2273 = vmatprep.subr.mxu0 0.0
  %2274 = vmatpush1.msra.mxu0 0.0
  %2275 = vmatprep.subr.mxu0 0.0
  %2276 = vmatpush1.msra.mxu0 0.0
  %2277 = vmatprep.subr.mxu0 0.0
  %2278 = vmatpush1.msra.mxu0 0.0
  %2279 = vmatprep.subr.mxu0 0.0
  %2280 = vmatpush1.msra.mxu0 0.0
  %2281 = vmatprep.subr.mxu0 0.0
  %2282 = vmatpush1.msra.mxu0 0.0
  %2283 = vmatprep.subr.mxu0 0.0
  %2284 = vmatpush1.msra.mxu0 0.0
  %2285 = vmatprep.subr.mxu0 0.0
  %2286 = vmatpush1.msra.mxu0 0.0
  %2287 = vmatprep.mubr.f32.mxu0 0.0
  %2288 = vmatmul.mubr.f32.gmra.mrb[0].mxu0 %v2221
  %v2289 = vpop.f32.mrb[0].mxu0
  %v2290 = vadd.f32 0.0, %v2289
  %v2291 = vpop.f32.mrb[0].mxu0
  %2292 = vdwg.mxu0
  %v2293 = vadd.f32 %v2217, %v2290
  %v2294 = vld [vmem:[%s18] sm:$0x1]
  %v2296 = vlaneseq
  %v2297 = vshrl.u32 %v2296, 7
  %v2298 = vsub.s32 0, %v2297
  %v2299 = vrot.slane %v2294, %v2298
  %v2301 = vadd.f32 %v2293, %v2299
  %vm2302 = vcmp.ge.f32.partialorder %v2301, 0.0
  %v2303 = vmul.f32 %v2301, 0.02
  %v2304 = vsel %vm2302, %v2301, %v2303
  %v2305 = vld [vmem:[%s19] sm:$0xf]
  %s2306 = scalar_lea.vmem %s19, 4
  %v2307 = vld [vmem:[%s2306] sm:$0xf]
  %s2308 = scalar_lea.vmem %s19, 8
  %v2309 = vld [vmem:[%s2308] sm:$0xf]
  %v2311 = vrot.slane %v2304, 7
  %v2313 = vsel %vm1580, 0.0, %v2311
  %v2314 = vrot.slane %v2304, 1
  %v2316 = vsel %vm1584, %v2314, 0.0
  %vm2317 = vcmask 31744
  %v2318 = vsel %vm2317, %v2304, 0
  %vm2320 = vcmask 1043456
  %v2322 = vsel %vm2320, %v2307, 0
  %2324 = vmatprep.subr.mxu0 0.0
  %2325 = vmatpush1.msra.mxu0 %v2322
  %2326 = vmatprep.subr.mxu0 0.0
  %2327 = vmatpush1.msra.mxu0 0.0
  %2328 = vmatprep.subr.mxu0 0.0
  %2329 = vmatpush1.msra.mxu0 0.0
  %2330 = vmatprep.subr.mxu0 0.0
  %2331 = vmatpush1.msra.mxu0 0.0
  %2332 = vmatprep.subr.mxu0 0.0
  %2333 = vmatpush1.msra.mxu0 0.0
  %2334 = vmatprep.subr.mxu0 0.0
  %2335 = vmatpush1.msra.mxu0 0.0
  %2336 = vmatprep.subr.mxu0 0.0
  %2337 = vmatpush1.msra.mxu0 0.0
  %2338 = vmatprep.subr.mxu0 0.0
  %2339 = vmatpush1.msra.mxu0 0.0
  %2340 = vmatprep.subr.mxu0 0.0
  %2341 = vmatpush1.msra.mxu0 0.0
  %2342 = vmatprep.subr.mxu0 0.0
  %2343 = vmatpush1.msra.mxu0 0.0
  %2344 = vmatprep.subr.mxu0 0.0
  %2345 = vmatpush1.msra.mxu0 0.0
  %2346 = vmatprep.subr.mxu0 0.0
  %2347 = vmatpush1.msra.mxu0 0.0
  %2348 = vmatprep.subr.mxu0 0.0
  %2349 = vmatpush1.msra.mxu0 0.0
  %2350 = vmatprep.subr.mxu0 0.0
  %2351 = vmatpush1.msra.mxu0 0.0
  %2352 = vmatprep.subr.mxu0 0.0
  %2353 = vmatpush1.msra.mxu0 0.0
  %2354 = vmatprep.subr.mxu0 0.0
  %2355 = vmatpush1.msra.mxu0 0.0
  %2356 = vmatprep.subr.mxu0 0.0
  %2357 = vmatpush1.msra.mxu0 0.0
  %2358 = vmatprep.subr.mxu0 0.0
  %2359 = vmatpush1.msra.mxu0 0.0
  %2360 = vmatprep.subr.mxu0 0.0
  %2361 = vmatpush1.msra.mxu0 0.0
  %2362 = vmatprep.subr.mxu0 0.0
  %2363 = vmatpush1.msra.mxu0 0.0
  %2364 = vmatprep.subr.mxu0 0.0
  %2365 = vmatpush1.msra.mxu0 0.0
  %2366 = vmatprep.subr.mxu0 0.0
  %2367 = vmatpush1.msra.mxu0 0.0
  %2368 = vmatprep.subr.mxu0 0.0
  %2369 = vmatpush1.msra.mxu0 0.0
  %2370 = vmatprep.subr.mxu0 0.0
  %2371 = vmatpush1.msra.mxu0 0.0
  %2372 = vmatprep.subr.mxu0 0.0
  %2373 = vmatpush1.msra.mxu0 0.0
  %2374 = vmatprep.subr.mxu0 0.0
  %2375 = vmatpush1.msra.mxu0 0.0
  %2376 = vmatprep.subr.mxu0 0.0
  %2377 = vmatpush1.msra.mxu0 0.0
  %2378 = vmatprep.subr.mxu0 0.0
  %2379 = vmatpush1.msra.mxu0 0.0
  %2380 = vmatprep.subr.mxu0 0.0
  %2381 = vmatpush1.msra.mxu0 0.0
  %2382 = vmatprep.subr.mxu0 0.0
  %2383 = vmatpush1.msra.mxu0 0.0
  %2384 = vmatprep.subr.mxu0 0.0
  %2385 = vmatpush1.msra.mxu0 0.0
  %2386 = vmatprep.subr.mxu0 0.0
  %2387 = vmatpush1.msra.mxu0 0.0
  %2388 = vmatprep.mubr.f32.mxu0 0.0
  %2389 = vmatmul.mubr.f32.gmra.mrb[0].mxu0 %v2318
  %v2390 = vpop.f32.mrb[0].mxu0
  %v2391 = vadd.f32 0.0, %v2390
  %v2392 = vpop.f32.mrb[0].mxu0
  %2393 = vdwg.mxu0
  %v2395 = vsel %vm2317, %v2313, 0
  %v2398 = vsel %vm2320, %v2305, 0
  %2400 = vmatprep.subr.mxu0 0.0
  %2401 = vmatpush1.msra.mxu0 %v2398
  %2402 = vmatprep.subr.mxu0 0.0
  %2403 = vmatpush1.msra.mxu0 0.0
  %2404 = vmatprep.subr.mxu0 0.0
  %2405 = vmatpush1.msra.mxu0 0.0
  %2406 = vmatprep.subr.mxu0 0.0
  %2407 = vmatpush1.msra.mxu0 0.0
  %2408 = vmatprep.subr.mxu0 0.0
  %2409 = vmatpush1.msra.mxu0 0.0
  %2410 = vmatprep.subr.mxu0 0.0
  %2411 = vmatpush1.msra.mxu0 0.0
  %2412 = vmatprep.subr.mxu0 0.0
  %2413 = vmatpush1.msra.mxu0 0.0
  %2414 = vmatprep.subr.mxu0 0.0
  %2415 = vmatpush1.msra.mxu0 0.0
  %2416 = vmatprep.subr.mxu0 0.0
  %2417 = vmatpush1.msra.mxu0 0.0
  %2418 = vmatprep.subr.mxu0 0.0
  %2419 = vmatpush1.msra.mxu0 0.0
  %2420 = vmatprep.subr.mxu0 0.0
  %2421 = vmatpush1.msra.mxu0 0.0
  %2422 = vmatprep.subr.mxu0 0.0
  %2423 = vmatpush1.msra.mxu0 0.0
  %2424 = vmatprep.subr.mxu0 0.0
  %2425 = vmatpush1.msra.mxu0 0.0
  %2426 = vmatprep.subr.mxu0 0.0
  %2427 = vmatpush1.msra.mxu0 0.0
  %2428 = vmatprep.subr.mxu0 0.0
  %2429 = vmatpush1.msra.mxu0 0.0
  %2430 = vmatprep.subr.mxu0 0.0
  %2431 = vmatpush1.msra.mxu0 0.0
  %2432 = vmatprep.subr.mxu0 0.0
  %2433 = vmatpush1.msra.mxu0 0.0
  %2434 = vmatprep.subr.mxu0 0.0
  %2435 = vmatpush1.msra.mxu0 0.0
  %2436 = vmatprep.subr.mxu0 0.0
  %2437 = vmatpush1.msra.mxu0 0.0
  %2438 = vmatprep.subr.mxu0 0.0
  %2439 = vmatpush1.msra.mxu0 0.0
  %2440 = vmatprep.subr.mxu0 0.0
  %2441 = vmatpush1.msra.mxu0 0.0
  %2442 = vmatprep.subr.mxu0 0.0
  %2443 = vmatpush1.msra.mxu0 0.0
  %2444 = vmatprep.subr.mxu0 0.0
  %2445 = vmatpush1.msra.mxu0 0.0
  %2446 = vmatprep.subr.mxu0 0.0
  %2447 = vmatpush1.msra.mxu0 0.0
  %2448 = vmatprep.subr.mxu0 0.0
  %2449 = vmatpush1.msra.mxu0 0.0
  %2450 = vmatprep.subr.mxu0 0.0
  %2451 = vmatpush1.msra.mxu0 0.0
  %2452 = vmatprep.subr.mxu0 0.0
  %2453 = vmatpush1.msra.mxu0 0.0
  %2454 = vmatprep.subr.mxu0 0.0
  %2455 = vmatpush1.msra.mxu0 0.0
  %2456 = vmatprep.subr.mxu0 0.0
  %2457 = vmatpush1.msra.mxu0 0.0
  %2458 = vmatprep.subr.mxu0 0.0
  %2459 = vmatpush1.msra.mxu0 0.0
  %2460 = vmatprep.subr.mxu0 0.0
  %2461 = vmatpush1.msra.mxu0 0.0
  %2462 = vmatprep.subr.mxu0 0.0
  %2463 = vmatpush1.msra.mxu0 0.0
  %2464 = vmatprep.mubr.f32.mxu0 0.0
  %2465 = vmatmul.mubr.f32.gmra.mrb[0].mxu0 %v2395
  %v2466 = vpop.f32.mrb[0].mxu0
  %v2467 = vadd.f32 %v2391, %v2466
  %v2468 = vpop.f32.mrb[0].mxu0
  %2469 = vdwg.mxu0
  %v2471 = vsel %vm2317, %v2316, 0
  %v2474 = vsel %vm2320, %v2309, 0
  %2476 = vmatprep.subr.mxu0 0.0
  %2477 = vmatpush1.msra.mxu0 %v2474
  %2478 = vmatprep.subr.mxu0 0.0
  %2479 = vmatpush1.msra.mxu0 0.0
  %2480 = vmatprep.subr.mxu0 0.0
  %2481 = vmatpush1.msra.mxu0 0.0
  %2482 = vmatprep.subr.mxu0 0.0
  %2483 = vmatpush1.msra.mxu0 0.0
  %2484 = vmatprep.subr.mxu0 0.0
  %2485 = vmatpush1.msra.mxu0 0.0
  %2486 = vmatprep.subr.mxu0 0.0
  %2487 = vmatpush1.msra.mxu0 0.0
  %2488 = vmatprep.subr.mxu0 0.0
  %2489 = vmatpush1.msra.mxu0 0.0
  %2490 = vmatprep.subr.mxu0 0.0
  %2491 = vmatpush1.msra.mxu0 0.0
  %2492 = vmatprep.subr.mxu0 0.0
  %2493 = vmatpush1.msra.mxu0 0.0
  %2494 = vmatprep.subr.mxu0 0.0
  %2495 = vmatpush1.msra.mxu0 0.0
  %2496 = vmatprep.subr.mxu0 0.0
  %2497 = vmatpush1.msra.mxu0 0.0
  %2498 = vmatprep.subr.mxu0 0.0
  %2499 = vmatpush1.msra.mxu0 0.0
  %2500 = vmatprep.subr.mxu0 0.0
  %2501 = vmatpush1.msra.mxu0 0.0
  %2502 = vmatprep.subr.mxu0 0.0
  %2503 = vmatpush1.msra.mxu0 0.0
  %2504 = vmatprep.subr.mxu0 0.0
  %2505 = vmatpush1.msra.mxu0 0.0
  %2506 = vmatprep.subr.mxu0 0.0
  %2507 = vmatpush1.msra.mxu0 0.0
  %2508 = vmatprep.subr.mxu0 0.0
  %2509 = vmatpush1.msra.mxu0 0.0
  %2510 = vmatprep.subr.mxu0 0.0
  %2511 = vmatpush1.msra.mxu0 0.0
  %2512 = vmatprep.subr.mxu0 0.0
  %2513 = vmatpush1.msra.mxu0 0.0
  %2514 = vmatprep.subr.mxu0 0.0
  %2515 = vmatpush1.msra.mxu0 0.0
  %2516 = vmatprep.subr.mxu0 0.0
  %2517 = vmatpush1.msra.mxu0 0.0
  %2518 = vmatprep.subr.mxu0 0.0
  %2519 = vmatpush1.msra.mxu0 0.0
  %2520 = vmatprep.subr.mxu0 0.0
  %2521 = vmatpush1.msra.mxu0 0.0
  %2522 = vmatprep.subr.mxu0 0.0
  %2523 = vmatpush1.msra.mxu0 0.0
  %2524 = vmatprep.subr.mxu0 0.0
  %2525 = vmatpush1.msra.mxu0 0.0
  %2526 = vmatprep.subr.mxu0 0.0
  %2527 = vmatpush1.msra.mxu0 0.0
  %2528 = vmatprep.subr.mxu0 0.0
  %2529 = vmatpush1.msra.mxu0 0.0
  %2530 = vmatprep.subr.mxu0 0.0
  %2531 = vmatpush1.msra.mxu0 0.0
  %2532 = vmatprep.subr.mxu0 0.0
  %2533 = vmatpush1.msra.mxu0 0.0
  %2534 = vmatprep.subr.mxu0 0.0
  %2535 = vmatpush1.msra.mxu0 0.0
  %2536 = vmatprep.subr.mxu0 0.0
  %2537 = vmatpush1.msra.mxu0 0.0
  %2538 = vmatprep.subr.mxu0 0.0
  %2539 = vmatpush1.msra.mxu0 0.0
  %2540 = vmatprep.mubr.f32.mxu0 0.0
  %2541 = vmatmul.mubr.f32.gmra.mrb[0].mxu0 %v2471
  %v2542 = vpop.f32.mrb[0].mxu0
  %v2543 = vadd.f32 0.0, %v2542
  %v2544 = vpop.f32.mrb[0].mxu0
  %2545 = vdwg.mxu0
  %v2546 = vadd.f32 %v2467, %v2543
  %v2547 = vld [vmem:[%s20] sm:$0x1]
  %v2549 = vlaneseq
  %v2550 = vshrl.u32 %v2549, 7
  %v2551 = vsub.s32 0, %v2550
  %v2552 = vrot.slane %v2547, %v2551
  %v2554 = vadd.f32 %v2546, %v2552
  %vm2555 = vcmp.ge.f32.partialorder %v2554, 0.0
  %v2556 = vmul.f32 %v2554, 0.02
  %v2557 = vsel %vm2555, %v2554, %v2556
  %v2558 = vld [vmem:[%s21] sm:$0x3]
  %s2559 = scalar_lea.vmem %s21, 2
  %v2560 = vld [vmem:[%s2559] sm:$0x3]
  %s2561 = scalar_lea.vmem %s21, 4
  %v2562 = vld [vmem:[%s2561] sm:$0x3]
  %v2564 = vrot.slane %v2557, 7
  %v2566 = vsel %vm1580, 0.0, %v2564
  %v2567 = vrot.slane %v2557, 1
  %v2569 = vsel %vm1584, %v2567, 0.0
  %vm2570 = vcmask 15360
  %v2571 = vsel %vm2570, %v2557, 0
  %vm2573 = vcmask 1041408
  %v2575 = vsel %vm2573, %v2560, 0
  %2577 = vmatprep.subr.mxu0 0.0
  %2578 = vmatpush1.msra.mxu0 %v2575
  %2579 = vmatprep.subr.mxu0 0.0
  %2580 = vmatpush1.msra.mxu0 0.0
  %2581 = vmatprep.subr.mxu0 0.0
  %2582 = vmatpush1.msra.mxu0 0.0
  %2583 = vmatprep.subr.mxu0 0.0
  %2584 = vmatpush1.msra.mxu0 0.0
  %2585 = vmatprep.subr.mxu0 0.0
  %2586 = vmatpush1.msra.mxu0 0.0
  %2587 = vmatprep.subr.mxu0 0.0
  %2588 = vmatpush1.msra.mxu0 0.0
  %2589 = vmatprep.subr.mxu0 0.0
  %2590 = vmatpush1.msra.mxu0 0.0
  %2591 = vmatprep.subr.mxu0 0.0
  %2592 = vmatpush1.msra.mxu0 0.0
  %2593 = vmatprep.subr.mxu0 0.0
  %2594 = vmatpush1.msra.mxu0 0.0
  %2595 = vmatprep.subr.mxu0 0.0
  %2596 = vmatpush1.msra.mxu0 0.0
  %2597 = vmatprep.subr.mxu0 0.0
  %2598 = vmatpush1.msra.mxu0 0.0
  %2599 = vmatprep.subr.mxu0 0.0
  %2600 = vmatpush1.msra.mxu0 0.0
  %2601 = vmatprep.subr.mxu0 0.0
  %2602 = vmatpush1.msra.mxu0 0.0
  %2603 = vmatprep.subr.mxu0 0.0
  %2604 = vmatpush1.msra.mxu0 0.0
  %2605 = vmatprep.subr.mxu0 0.0
  %2606 = vmatpush1.msra.mxu0 0.0
  %2607 = vmatprep.subr.mxu0 0.0
  %2608 = vmatpush1.msra.mxu0 0.0
  %2609 = vmatprep.subr.mxu0 0.0
  %2610 = vmatpush1.msra.mxu0 0.0
  %2611 = vmatprep.subr.mxu0 0.0
  %2612 = vmatpush1.msra.mxu0 0.0
  %2613 = vmatprep.subr.mxu0 0.0
  %2614 = vmatpush1.msra.mxu0 0.0
  %2615 = vmatprep.subr.mxu0 0.0
  %2616 = vmatpush1.msra.mxu0 0.0
  %2617 = vmatprep.subr.mxu0 0.0
  %2618 = vmatpush1.msra.mxu0 0.0
  %2619 = vmatprep.subr.mxu0 0.0
  %2620 = vmatpush1.msra.mxu0 0.0
  %2621 = vmatprep.subr.mxu0 0.0
  %2622 = vmatpush1.msra.mxu0 0.0
  %2623 = vmatprep.subr.mxu0 0.0
  %2624 = vmatpush1.msra.mxu0 0.0
  %2625 = vmatprep.subr.mxu0 0.0
  %2626 = vmatpush1.msra.mxu0 0.0
  %2627 = vmatprep.subr.mxu0 0.0
  %2628 = vmatpush1.msra.mxu0 0.0
  %2629 = vmatprep.subr.mxu0 0.0
  %2630 = vmatpush1.msra.mxu0 0.0
  %2631 = vmatprep.subr.mxu0 0.0
  %2632 = vmatpush1.msra.mxu0 0.0
  %2633 = vmatprep.subr.mxu0 0.0
  %2634 = vmatpush1.msra.mxu0 0.0
  %2635 = vmatprep.subr.mxu0 0.0
  %2636 = vmatpush1.msra.mxu0 0.0
  %2637 = vmatprep.subr.mxu0 0.0
  %2638 = vmatpush1.msra.mxu0 0.0
  %2639 = vmatprep.subr.mxu0 0.0
  %2640 = vmatpush1.msra.mxu0 0.0
  %2641 = vmatprep.mubr.f32.mxu0 0.0
  %2642 = vmatmul.mubr.f32.gmra.mrb[0].mxu0 %v2571
  %v2643 = vpop.f32.mrb[0].mxu0
  %v2644 = vadd.f32 0.0, %v2643
  %v2645 = vpop.f32.mrb[0].mxu0
  %2646 = vdwg.mxu0
  %v2648 = vsel %vm2570, %v2566, 0
  %v2651 = vsel %vm2573, %v2558, 0
  %2653 = vmatprep.subr.mxu0 0.0
  %2654 = vmatpush1.msra.mxu0 %v2651
  %2655 = vmatprep.subr.mxu0 0.0
  %2656 = vmatpush1.msra.mxu0 0.0
  %2657 = vmatprep.subr.mxu0 0.0
  %2658 = vmatpush1.msra.mxu0 0.0
  %2659 = vmatprep.subr.mxu0 0.0
  %2660 = vmatpush1.msra.mxu0 0.0
  %2661 = vmatprep.subr.mxu0 0.0
  %2662 = vmatpush1.msra.mxu0 0.0
  %2663 = vmatprep.subr.mxu0 0.0
  %2664 = vmatpush1.msra.mxu0 0.0
  %2665 = vmatprep.subr.mxu0 0.0
  %2666 = vmatpush1.msra.mxu0 0.0
  %2667 = vmatprep.subr.mxu0 0.0
  %2668 = vmatpush1.msra.mxu0 0.0
  %2669 = vmatprep.subr.mxu0 0.0
  %2670 = vmatpush1.msra.mxu0 0.0
  %2671 = vmatprep.subr.mxu0 0.0
  %2672 = vmatpush1.msra.mxu0 0.0
  %2673 = vmatprep.subr.mxu0 0.0
  %2674 = vmatpush1.msra.mxu0 0.0
  %2675 = vmatprep.subr.mxu0 0.0
  %2676 = vmatpush1.msra.mxu0 0.0
  %2677 = vmatprep.subr.mxu0 0.0
  %2678 = vmatpush1.msra.mxu0 0.0
  %2679 = vmatprep.subr.mxu0 0.0
  %2680 = vmatpush1.msra.mxu0 0.0
  %2681 = vmatprep.subr.mxu0 0.0
  %2682 = vmatpush1.msra.mxu0 0.0
  %2683 = vmatprep.subr.mxu0 0.0
  %2684 = vmatpush1.msra.mxu0 0.0
  %2685 = vmatprep.subr.mxu0 0.0
  %2686 = vmatpush1.msra.mxu0 0.0
  %2687 = vmatprep.subr.mxu0 0.0
  %2688 = vmatpush1.msra.mxu0 0.0
  %2689 = vmatprep.subr.mxu0 0.0
  %2690 = vmatpush1.msra.mxu0 0.0
  %2691 = vmatprep.subr.mxu0 0.0
  %2692 = vmatpush1.msra.mxu0 0.0
  %2693 = vmatprep.subr.mxu0 0.0
  %2694 = vmatpush1.msra.mxu0 0.0
  %2695 = vmatprep.subr.mxu0 0.0
  %2696 = vmatpush1.msra.mxu0 0.0
  %2697 = vmatprep.subr.mxu0 0.0
  %2698 = vmatpush1.msra.mxu0 0.0
  %2699 = vmatprep.subr.mxu0 0.0
  %2700 = vmatpush1.msra.mxu0 0.0
  %2701 = vmatprep.subr.mxu0 0.0
  %2702 = vmatpush1.msra.mxu0 0.0
  %2703 = vmatprep.subr.mxu0 0.0
  %2704 = vmatpush1.msra.mxu0 0.0
  %2705 = vmatprep.subr.mxu0 0.0
  %2706 = vmatpush1.msra.mxu0 0.0
  %2707 = vmatprep.subr.mxu0 0.0
  %2708 = vmatpush1.msra.mxu0 0.0
  %2709 = vmatprep.subr.mxu0 0.0
  %2710 = vmatpush1.msra.mxu0 0.0
  %2711 = vmatprep.subr.mxu0 0.0
  %2712 = vmatpush1.msra.mxu0 0.0
  %2713 = vmatprep.subr.mxu0 0.0
  %2714 = vmatpush1.msra.mxu0 0.0
  %2715 = vmatprep.subr.mxu0 0.0
  %2716 = vmatpush1.msra.mxu0 0.0
  %2717 = vmatprep.mubr.f32.mxu0 0.0
  %2718 = vmatmul.mubr.f32.gmra.mrb[0].mxu0 %v2648
  %v2719 = vpop.f32.mrb[0].mxu0
  %v2720 = vadd.f32 %v2644, %v2719
  %v2721 = vpop.f32.mrb[0].mxu0
  %2722 = vdwg.mxu0
  %v2724 = vsel %vm2570, %v2569, 0
  %v2727 = vsel %vm2573, %v2562, 0
  %2729 = vmatprep.subr.mxu0 0.0
  %2730 = vmatpush1.msra.mxu0 %v2727
  %2731 = vmatprep.subr.mxu0 0.0
  %2732 = vmatpush1.msra.mxu0 0.0
  %2733 = vmatprep.subr.mxu0 0.0
  %2734 = vmatpush1.msra.mxu0 0.0
  %2735 = vmatprep.subr.mxu0 0.0
  %2736 = vmatpush1.msra.mxu0 0.0
  %2737 = vmatprep.subr.mxu0 0.0
  %2738 = vmatpush1.msra.mxu0 0.0
  %2739 = vmatprep.subr.mxu0 0.0
  %2740 = vmatpush1.msra.mxu0 0.0
  %2741 = vmatprep.subr.mxu0 0.0
  %2742 = vmatpush1.msra.mxu0 0.0
  %2743 = vmatprep.subr.mxu0 0.0
  %2744 = vmatpush1.msra.mxu0 0.0
  %2745 = vmatprep.subr.mxu0 0.0
  %2746 = vmatpush1.msra.mxu0 0.0
  %2747 = vmatprep.subr.mxu0 0.0
  %2748 = vmatpush1.msra.mxu0 0.0
  %2749 = vmatprep.subr.mxu0 0.0
  %2750 = vmatpush1.msra.mxu0 0.0
  %2751 = vmatprep.subr.mxu0 0.0
  %2752 = vmatpush1.msra.mxu0 0.0
  %2753 = vmatprep.subr.mxu0 0.0
  %2754 = vmatpush1.msra.mxu0 0.0
  %2755 = vmatprep.subr.mxu0 0.0
  %2756 = vmatpush1.msra.mxu0 0.0
  %2757 = vmatprep.subr.mxu0 0.0
  %2758 = vmatpush1.msra.mxu0 0.0
  %2759 = vmatprep.subr.mxu0 0.0
  %2760 = vmatpush1.msra.mxu0 0.0
  %2761 = vmatprep.subr.mxu0 0.0
  %2762 = vmatpush1.msra.mxu0 0.0
  %2763 = vmatprep.subr.mxu0 0.0
  %2764 = vmatpush1.msra.mxu0 0.0
  %2765 = vmatprep.subr.mxu0 0.0
  %2766 = vmatpush1.msra.mxu0 0.0
  %2767 = vmatprep.subr.mxu0 0.0
  %2768 = vmatpush1.msra.mxu0 0.0
  %2769 = vmatprep.subr.mxu0 0.0
  %2770 = vmatpush1.msra.mxu0 0.0
  %2771 = vmatprep.subr.mxu0 0.0
  %2772 = vmatpush1.msra.mxu0 0.0
  %2773 = vmatprep.subr.mxu0 0.0
  %2774 = vmatpush1.msra.mxu0 0.0
  %2775 = vmatprep.subr.mxu0 0.0
  %2776 = vmatpush1.msra.mxu0 0.0
  %2777 = vmatprep.subr.mxu0 0.0
  %2778 = vmatpush1.msra.mxu0 0.0
  %2779 = vmatprep.subr.mxu0 0.0
  %2780 = vmatpush1.msra.mxu0 0.0
  %2781 = vmatprep.subr.mxu0 0.0
  %2782 = vmatpush1.msra.mxu0 0.0
  %2783 = vmatprep.subr.mxu0 0.0
  %2784 = vmatpush1.msra.mxu0 0.0
  %2785 = vmatprep.subr.mxu0 0.0
  %2786 = vmatpush1.msra.mxu0 0.0
  %2787 = vmatprep.subr.mxu0 0.0
  %2788 = vmatpush1.msra.mxu0 0.0
  %2789 = vmatprep.subr.mxu0 0.0
  %2790 = vmatpush1.msra.mxu0 0.0
  %2791 = vmatprep.subr.mxu0 0.0
  %2792 = vmatpush1.msra.mxu0 0.0
  %2793 = vmatprep.mubr.f32.mxu0 0.0
  %2794 = vmatmul.mubr.f32.gmra.mrb[0].mxu0 %v2724
  %v2795 = vpop.f32.mrb[0].mxu0
  %v2796 = vadd.f32 0.0, %v2795
  %v2797 = vpop.f32.mrb[0].mxu0
  %2798 = vdwg.mxu0
  %v2799 = vadd.f32 %v2720, %v2796
  %v2800 = vld [vmem:[#allocation2] sm:$0x1]
  %v2802 = vlaneseq
  %v2803 = vshrl.u32 %v2802, 7
  %v2804 = vsub.s32 0, %v2803
  %v2805 = vrot.slane %v2800, %v2804
  %v2807 = vadd.f32 %v2799, %v2805
  %vm2808 = vcmp.ge.f32.partialorder %v2807, 0.0
  %v2809 = vmul.f32 %v2807, 0.02
  %v2810 = vsel %vm2808, %v2807, %v2809
  %v2811 = vld [vmem:[%s23] sm:$0xff]
  %v2812 = vld [vmem:[%s24] sm:$0xff]
  %v2814 = vsel %vm2074, %v2811, 0
  %2816 = vmatprep.subr.mxu0 0.0
  %2817 = vmatpush1.msra.mxu0 %v2810
  %2818 = vmatprep.subr.mxu0 0.0
  %2819 = vmatpush1.msra.mxu0 0.0
  %2820 = vmatprep.subr.mxu0 0.0
  %2821 = vmatpush1.msra.mxu0 0.0
  %2822 = vmatprep.subr.mxu0 0.0
  %2823 = vmatpush1.msra.mxu0 0.0
  %2824 = vmatprep.subr.mxu0 0.0
  %2825 = vmatpush1.msra.mxu0 0.0
  %2826 = vmatprep.subr.mxu0 0.0
  %2827 = vmatpush1.msra.mxu0 0.0
  %2828 = vmatprep.subr.mxu0 0.0
  %2829 = vmatpush1.msra.mxu0 0.0
  %2830 = vmatprep.subr.mxu0 0.0
  %2831 = vmatpush1.msra.mxu0 0.0
  %2832 = vmatprep.subr.mxu0 0.0
  %2833 = vmatpush1.msra.mxu0 0.0
  %2834 = vmatprep.subr.mxu0 0.0
  %2835 = vmatpush1.msra.mxu0 0.0
  %2836 = vmatprep.subr.mxu0 0.0
  %2837 = vmatpush1.msra.mxu0 0.0
  %2838 = vmatprep.subr.mxu0 0.0
  %2839 = vmatpush1.msra.mxu0 0.0
  %2840 = vmatprep.subr.mxu0 0.0
  %2841 = vmatpush1.msra.mxu0 0.0
  %2842 = vmatprep.subr.mxu0 0.0
  %2843 = vmatpush1.msra.mxu0 0.0
  %2844 = vmatprep.subr.mxu0 0.0
  %2845 = vmatpush1.msra.mxu0 0.0
  %2846 = vmatprep.subr.mxu0 0.0
  %2847 = vmatpush1.msra.mxu0 0.0
  %2848 = vmatprep.subr.mxu0 0.0
  %2849 = vmatpush1.msra.mxu0 0.0
  %2850 = vmatprep.subr.mxu0 0.0
  %2851 = vmatpush1.msra.mxu0 0.0
  %2852 = vmatprep.subr.mxu0 0.0
  %2853 = vmatpush1.msra.mxu0 0.0
  %2854 = vmatprep.subr.mxu0 0.0
  %2855 = vmatpush1.msra.mxu0 0.0
  %2856 = vmatprep.subr.mxu0 0.0
  %2857 = vmatpush1.msra.mxu0 0.0
  %2858 = vmatprep.subr.mxu0 0.0
  %2859 = vmatpush1.msra.mxu0 0.0
  %2860 = vmatprep.subr.mxu0 0.0
  %2861 = vmatpush1.msra.mxu0 0.0
  %2862 = vmatprep.subr.mxu0 0.0
  %2863 = vmatpush1.msra.mxu0 0.0
  %2864 = vmatprep.subr.mxu0 0.0
  %2865 = vmatpush1.msra.mxu0 0.0
  %2866 = vmatprep.subr.mxu0 0.0
  %2867 = vmatpush1.msra.mxu0 0.0
  %2868 = vmatprep.subr.mxu0 0.0
  %2869 = vmatpush1.msra.mxu0 0.0
  %2870 = vmatprep.subr.mxu0 0.0
  %2871 = vmatpush1.msra.mxu0 0.0
  %2872 = vmatprep.subr.mxu0 0.0
  %2873 = vmatpush1.msra.mxu0 0.0
  %2874 = vmatprep.subr.mxu0 0.0
  %2875 = vmatpush1.msra.mxu0 0.0
  %2876 = vmatprep.subr.mxu0 0.0
  %2877 = vmatpush1.msra.mxu0 0.0
  %2878 = vmatprep.subr.mxu0 0.0
  %2879 = vmatpush1.msra.mxu0 0.0
  %2880 = vmatprep.mubr.f32.mxu0 0.0
  %2881 = vmatmul.mubr.f32.gmra.mrb[0].mxu0 %v2814
  %v2882 = vpop.f32.mrb[0].mxu0
  %v2883 = vadd.f32 %v2812, %v2882
  %v2884 = vpop.f32.mrb[0].mxu0
  %2885 = vdwg.mxu0
  %vm2886 = vcmask 7168
  %v2887 = vsel %vm2886, %v2883, -inf
  %v2888 = vrot.slane %v2887, 4
  %v2889 = vmax.f32 %v2887, %v2888
  %v2890 = vrot.slane %v2889, 2
  %v2891 = vmax.f32 %v2889, %v2890
  %v2892 = vrot.slane %v2891, 1
  %v2893 = vmax.f32 %v2891, %v2892
  %v2894 = vsub.f32 %v2883, %v2893
  %v2895 = vmul.f32 %v2894, 1.442695
  %v2896 = vpow.pop %v2895
  %v2897 = vsel %vm2886, %v2896, 0.0
  %v2898 = vrot.slane %v2897, 4
  %v2899 = vadd.f32 %v2897, %v2898
  %v2900 = vrot.slane %v2899, 2
  %v2901 = vadd.f32 %v2899, %v2900
  %v2902 = vrot.slane %v2901, 1
  %v2903 = vadd.f32 %v2901, %v2902
  %v2904 = vrcp.pop %v2903
  %v2905 = vmul.f32 %v2896, %v2904
  %2907 = vset.pattern.permute.xlu0 0
  %2908 = vperm.xlu0 %2907, %v2905
  %v2909 = vpop.permute.xlu0 %2908
  %v2911 = vmul.f32 %v2909, %v1560
  %v2912 = vsel %vm550, %v2911, 0.0
  %v2913 = vrot.slane %v2912, 4
  %v2914 = vadd.f32 %v2912, %v2913
  %v2915 = vrot.slane %v2914, 2
  %v2916 = vadd.f32 %v2914, %v2915
  %v2917 = vrot.slane %v2916, 1
  %v2918 = vadd.f32 %v2916, %v2917
  %vm2919 = vcmask 253952
  %2920 = vst.msk [vmem:[%s25] sm:$0x1] %vm2919, %v2918
  // Predicated region
  $region102: #{mouth_motion_forward.2} parent=0 // pred_check
    _
  $region103: #{mouth_motion_forward.2} parent=0 // pred_check_branch
    %2922 = sbr.rel (0) target = $region105
  $region104: #{mouth_motion_forward.2} parent=0 // pred_region
    _
  $region105: #{mouth_motion_forward.2} parent=0 // pred_fallthru
    _
  // Predicated region
  $region106: #{mouth_motion_forward.2} parent=0 // pred_check
    _
  $region107: #{mouth_motion_forward.2} parent=0 // pred_check_branch
    %2924 = sbr.rel (0) target = $region109
  $region108: #{mouth_motion_forward.2} parent=0 // pred_region
    _
  $region109: #{mouth_motion_forward.2} parent=0 // pred_fallthru
    _

// kernel: mouth_motion_forward.3
$region0: #{mouth_motion_forward.3}
  #allocation0 [shape = 'u32[]', space=smem, size = 0x4, offset = 0x4, fixed_abs, tag = 'smem constant byte address 0x4 - core index']
  #allocation1 [shape = 'u32[144,128]{1,0:T(1,128)}', space=vmem, size = 0x12000, scoped, tag = 'internal scratch']
  %s0 = inlined_call_operand.vmem [shape: bf16[256,68], index: 0, kind: input, shape index: {}]
  %s1 = inlined_call_operand.vmem [shape: f32[1,64], index: 1, kind: input, shape index: {}]
  %s2 = inlined_call_operand.vmem [shape: bf16[196,64], index: 2, kind: input, shape index: {}]
  %s3 = inlined_call_operand.vmem [shape: f32[256,6], index: 3, kind: output, shape index: {}]
  %s4 = sld [smem:[#allocation0]]
  $region45: #{mouth_motion_forward.3} parent=0
    _
  %s6 = ssub.s32 1, %s4
  %s7 = scalar_select 0, %s6, %s4
  loop: start=0, step=1, limit=4
  $region2: #{mouth_motion_forward.3} parent=0 // loop_pre_header
    _
  $region3: #{mouth_motion_forward.3} parent=0 // loop_header
    %s9 = sphi 0, %s13
    %p10 = scmp.ge.s32.totalorder %s9, 4
    %s19 = sphi 0, %s21
    %s22 = sphi 0, %s19
    %s23 = sphi 0, %s22
    %s39 = sphi 0, %s23
    %s43 = sphi 0, %s43
    %s45 = sphi 0, %s43
    %s46 = sphi 0, %s45
    %s60 = sphi 0, %s46
    %s64 = sphi 0, %s64
    %s66 = sphi 0, %s64
    %s67 = sphi 0, %s66
    %s81 = sphi 0, %s67
    %s87 = sphi 0, %s89
    %s90 = sphi 0, %s87
    %s91 = sphi 0, %s90
    %s107 = sphi 0, %s91
  $region4: #{mouth_motion_forward.3} parent=0 // loop_header_branch
    %12 = sbr.rel (%p10) target = $region8
  $region5: #{mouth_motion_forward.3} parent=0 // loop_body
    %s14 = ssub.s32 %s9, 1
    %s15 = ssub.s32 %s9, 2
    %s16 = sadd.s32 %s9, 1
    %s17 = ssub.s32 %s9, %s16
    %p18 = scmp.eq.s32.totalorder %s17, 0
    %s20 = sadd.s32 %s19, 1
    %s21 = scalar_select %p18, %s19, %s20
    %p24 = pneg %p18
    %p25 = scmp.eq.s32.totalorder %s9, 1
    %p26 = por %p24, %p25
    %p27 = scmp.ne.s32.totalorder %s19, %s22
    %p28 = scmp.eq.s32.totalorder %s9, 0
    %p29 = por %p27, %p28
    %p30 = scmp.ne.s32.totalorder %s19, %s22
    %p31 = scmp.eq.s32.totalorder %s14, 1
    %p32 = por %p30, %p31
    %p33 = scmp.ne.s32.totalorder %s22, %s23
    %p34 = scmp.eq.s32.totalorder %s14, 0
    %p35 = por %p33, %p34
    %p36 = scmp.ne.s32.totalorder %s22, %s23
    %p37 = scmp.eq.s32.totalorder %s15, 1
    %p38 = por %p36, %p37
    %p40 = scmp.ne.s32.totalorder %s23, %s39
    %p41 = scmp.eq.s32.totalorder %s15, 0
    %p42 = por %p40, %p41
    %s44 = sadd.s32 %s43, 1
    %p47 = scmp.eq.s32.totalorder %s9, 1
    %p48 = scmp.ne.s32.totalorder %s43, %s45
    %p49 = scmp.eq.s32.totalorder %s9, 0
    %p50 = por %p48, %p49
    %p51 = scmp.ne.s32.totalorder %s43, %s45
    %p52 = scmp.eq.s32.totalorder %s14, 1
    %p53 = por %p51, %p52
    %p54 = scmp.ne.s32.totalorder %s45, %s46
    %p55 = scmp.eq.s32.totalorder %s14, 0
    %p56 = por %p54, %p55
    %p57 = scmp.ne.s32.totalorder %s45, %s46
    %p58 = scmp.eq.s32.totalorder %s15, 1
    %p59 = por %p57, %p58
    %p61 = scmp.ne.s32.totalorder %s46, %s60
    %p62 = scmp.eq.s32.totalorder %s15, 0
    %p63 = por %p61, %p62
    %s65 = sadd.s32 %s64, 1
    %p68 = scmp.eq.s32.totalorder %s9, 1
    %p69 = scmp.ne.s32.totalorder %s64, %s66
    %p70 = scmp.eq.s32.totalorder %s9, 0
    %p71 = por %p69, %p70
    %p72 = scmp.ne.s32.totalorder %s64, %s66
    %p73 = scmp.eq.s32.totalorder %s14, 1
    %p74 = por %p72, %p73
    %p75 = scmp.ne.s32.totalorder %s66, %s67
    %p76 = scmp.eq.s32.totalorder %s14, 0
    %p77 = por %p75, %p76
    %p78 = scmp.ne.s32.totalorder %s66, %s67
    %p79 = scmp.eq.s32.totalorder %s15, 1
    %p80 = por %p78, %p79
    %p82 = scmp.ne.s32.totalorder %s67, %s81
    %p83 = scmp.eq.s32.totalorder %s15, 0
    %p84 = por %p82, %p83
    %s85 = ssub.s32 %s9, %s16
    %p86 = scmp.eq.s32.totalorder %s85, 0
    %s88 = sadd.s32 %s87, 1
    %s89 = scalar_select %p86, %s87, %s88
    %p92 = pneg %p86
    %p93 = scmp.eq.s32.totalorder %s9, 1
    %p94 = por %p92, %p93
    %p95 = scmp.ne.s32.totalorder %s87, %s90
    %p96 = scmp.eq.s32.totalorder %s9, 0
    %p97 = por %p95, %p96
    %p98 = scmp.ne.s32.totalorder %s87, %s90
    %p99 = scmp.eq.s32.totalorder %s14, 1
    %p100 = por %p98, %p99
    %p101 = scmp.ne.s32.totalorder %s90, %s91
    %p102 = scmp.eq.s32.totalorder %s14, 0
    %p103 = por %p101, %p102
    %p104 = scmp.ne.s32.totalorder %s90, %s91
    %p105 = scmp.eq.s32.totalorder %s15, 1
    %p106 = por %p104, %p105
    %p108 = scmp.ne.s32.totalorder %s91, %s107
    %p109 = scmp.eq.s32.totalorder %s15, 0
    %p110 = por %p108, %p109
    %p111 = scmp.le.s32.totalorder 1, %s9
    %p112 = scmp.lt.s32.totalorder %s9, 3
    %p113 = pnand %p111, %p112
    %p114 = pneg %p113
    // Predicated region
    $region9: #{mouth_motion_forward.3} parent=5 // pred_check
      _
    $region10: #{mouth_motion_forward.3} parent=5 // pred_check_branch
      %116 = sbr.rel (%p113) target = $region12
    $region11: #{mouth_motion_forward.3} parent=5 // pred_region
      %s117 = ssub.s32 %s9, 1
      // Predicated region
      $region13: #{mouth_motion_forward.3} parent=11 // pred_check
        %p118 = pneg %p56
      $region14: #{mouth_motion_forward.3} parent=11 // pred_check_branch
        %120 = sbr.rel (%p118) target = $region16
      $region15: #{mouth_motion_forward.3} parent=11 // pred_region
        _
      $region16: #{mouth_motion_forward.3} parent=11 // pred_fallthru
        _
      // Predicated region
      $region17: #{mouth_motion_forward.3} parent=11 // pred_check
        %p121 = pneg %p77
      $region18: #{mouth_motion_forward.3} parent=11 // pred_check_branch
        %123 = sbr.rel (%p121) target = $region20
      $region19: #{mouth_motion_forward.3} parent=11 // pred_region
        _
      $region20: #{mouth_motion_forward.3} parent=11 // pred_fallthru
        _
    $region12: #{mouth_motion_forward.3} parent=5 // pred_fallthru
      _
    %p124 = scmp.lt.s32.totalorder %s9, 2
    // Predicated region
    $region21: #{mouth_motion_forward.3} parent=5 // pred_check
      %p125 = pneg %p124
    $region22: #{mouth_motion_forward.3} parent=5 // pred_check_branch
      %127 = sbr.rel (%p125) target = $region24
    $region23: #{mouth_motion_forward.3} parent=5 // pred_region
      // Predicated region
      $region25: #{mouth_motion_forward.3} parent=23 // pred_check
        %p128 = pneg %p29
      $region26: #{mouth_motion_forward.3} parent=23 // pred_check_branch
        %130 = sbr.rel (%p128) target = $region28
      $region27: #{mouth_motion_forward.3} parent=23 // pred_region
        %s131 = smul.u32 16, %s9
        %p132 = scmp.lt.s32.totalorder %s131, 31
        %s133 = scalar_select %p132, %s131, 31
        %s134 = smul.addr %s133, 4
        %s135 = scalar_lea.vmem %s0, %s134
        %s136 = smul.u32 16, %s9
      $region28: #{mouth_motion_forward.3} parent=23 // pred_fallthru
        _
    $region24: #{mouth_motion_forward.3} parent=5 // pred_fallthru
      _
    %p137 = scmp.le.s32.totalorder 1, %s9
    %p138 = scmp.lt.s32.totalorder %s9, 3
    %p139 = pnand %p137, %p138
    %p140 = pneg %p139
    // Predicated region
    $region29: #{mouth_motion_forward.3} parent=5 // pred_check
      _
    $region30: #{mouth_motion_forward.3} parent=5 // pred_check_branch
      %142 = sbr.rel (%p139) target = $region32
    $region31: #{mouth_motion_forward.3} parent=5 // pred_region
      %s143 = ssub.s32 %s9, 1
      %s144 = smul.u32 16, %s14
      %p145 = scmp.lt.s32.totalorder %s144, 31
      %s146 = scalar_select %p145, %s144, 31
      %s147 = smul.addr %s146, 4
      %s148 = scalar_lea.vmem %s0, %s147
      %p149 = pneg %p35
      %p150 = pneg %p32
      %p151 = pneg %p56
      %p152 = pneg %p53
      %p153 = pneg %p77
      %p154 = pneg %p74
      %p155 = pneg %p103
      %p156 = pneg %p100
      %s157 = smul.u32 16, %s14
      %p158 = scmp.lt.s32.totalorder %s157, 31
      %s159 = scalar_select %p158, %s157, 31
      %s160 = smul.addr %s159, 8
      %s161 = scalar_lea.vmem %s3, %s160
      %s162 = smul.u32 16, %s14
      %p163 = scmp.lt.s32.totalorder %s162, 31
      %s164 = scalar_select %p163, %s162, 31
      %s165 = smul.addr %s164, 4
      %s166 = scalar_lea.vmem %s0, %s165
      %s167 = smul.u32 16, %s14
      %s168 = smul.u32 16, %s14
      %p169 = scmp.lt.s32.totalorder %s168, 31
      %s170 = scalar_select %p169, %s168, 31
      %s171 = smul.addr %s170, 8
      %s172 = scalar_lea.vmem %s3, %s171
      %s173 = smul.u32 16, %s14
      %v175 = vld [vmem:[%s2] sm:$0xf]
      %v176 = vld [vmem:[%s2 + $0x4] sm:$0xf]
      %v177 = vld [vmem:[%s2 + $0x8] sm:$0xf]
      %v178 = vld [vmem:[%s2 + $0xc] sm:$0xf]
      %v179 = vld [vmem:[%s2 + $0x10] sm:$0xf]
      %v180 = vld [vmem:[%s2 + $0x14] sm:$0xf]
      %v181 = vld [vmem:[%s2 + $0x18] sm:$0xf]
      %v182 = vld [vmem:[%s2 + $0x1c] sm:$0xf]
      %v183 = vld [vmem:[%s2 + $0x20] sm:$0xf]
      %v184 = vld [vmem:[%s2 + $0x24] sm:$0xf]
      %v185 = vld [vmem:[%s2 + $0x28] sm:$0xf]
      %v186 = vld [vmem:[%s2 + $0x2c] sm:$0xf]
      %v187 = vld [vmem:[%s2 + $0x30] sm:$0xf]
      %v188 = vld [vmem:[%s2 + $0x34] sm:$0xf]
      %v189 = vld [vmem:[%s2 + $0x38] sm:$0xf]
      %v190 = vld [vmem:[%s2 + $0x3c] sm:$0xf]
      %v191 = vld [vmem:[%s2 + $0x40] sm:$0xf]
      %v192 = vld [vmem:[%s2 + $0x44] sm:$0xf]
      %v193 = vld [vmem:[%s2 + $0x48] sm:$0xf]
      %v194 = vld [vmem:[%s2 + $0x4c] sm:$0xf]
      %v195 = vld [vmem:[%s2 + $0x50] sm:$0xf]
      %v196 = vld [vmem:[%s2 + $0x54] sm:$0xf]
      %v197 = vld [vmem:[%s2 + $0x58] sm:$0xf]
      %v198 = vld [vmem:[%s2 + $0x5c] sm:$0xf]
      %v199 = vld [vmem:[%s2 + $0x60] sm:$0x3]
      %v200 = vld [vmem:[%s166] sm:$0xf]
      %v201 = vld [vmem:[%s166 + $0x4] sm:$0xf]
      %v202 = vld [vmem:[%s166 + $0x8] sm:$0xf]
      %v203 = vld [vmem:[%s166 + $0xc] sm:$0xf]
      %v204 = vld [vmem:[%s166 + $0x10] sm:$0xf]
      %v205 = vld [vmem:[%s166 + $0x14] sm:$0xf]
      %v206 = vld [vmem:[%s166 + $0x18] sm:$0xf]
      %v207 = vld [vmem:[%s166 + $0x1c] sm:$0xf]
      %v208 = vld [vmem:[%s166 + $0x20] sm:$0xf]
      %v209 = vld [vmem:[%s166 + $0x24] sm:$0xf]
      %v210 = vld [vmem:[%s166 + $0x28] sm:$0xf]
      %v211 = vld [vmem:[%s166 + $0x2c] sm:$0xf]
      %v212 = vld [vmem:[%s166 + $0x30] sm:$0xf]
      %v213 = vld [vmem:[%s166 + $0x34] sm:$0xf]
      %v214 = vld [vmem:[%s166 + $0x38] sm:$0xf]
      %v215 = vld [vmem:[%s166 + $0x3c] sm:$0xf]
      %v216 = vld [vmem:[%s1] sm:$0x1]
      %v218 = vlaneseq
      %v219 = vshrl.u32 %v218, 7
      %v220 = vsub.s32 0, %v219
      %v221 = vrot.slane %v216, %v220
      %v239 = vunpack.c.l.b16 %v200
      %v240 = vunpack.c.l.b16 %v201
      %v241 = vunpack.c.l.b16 %v202
      %v242 = vunpack.c.l.b16 %v203
      %v243 = vunpack.c.l.b16 %v204
      %v244 = vunpack.c.l.b16 %v205
      %v245 = vunpack.c.l.b16 %v206
      %v246 = vunpack.c.l.b16 %v207
      %v247 = vunpack.c.l.b16 %v208
      %v248 = vunpack.c.l.b16 %v209
      %v249 = vunpack.c.l.b16 %v210
      %v250 = vunpack.c.l.b16 %v211
      %v251 = vunpack.c.l.b16 %v212
      %v252 = vunpack.c.l.b16 %v213
      %v253 = vunpack.c.l.b16 %v214
      %v254 = vunpack.c.l.b16 %v215
      %v255 = vpack.c.b16 %v240, %v239
      %v256 = vpack.c.b16 %v242, %v241
      %v257 = vpack.c.b16 %v244, %v243
      %v258 = vpack.c.b16 %v246, %v245
      %v259 = vpack.c.b16 %v248, %v247
      %v260 = vpack.c.b16 %v250, %v249
      %v261 = vpack.c.b16 %v252, %v251
      %v262 = vpack.c.b16 %v254, %v253
      %v272 = vunpack.c.l.b16 %v191
      %v273 = vunpack.c.l.b16 %v192
      %v274 = vunpack.c.l.b16 %v193
      %v275 = vunpack.c.l.b16 %v194
      %v276 = vunpack.c.l.b16 %v195
      %v277 = vunpack.c.l.b16 %v196
      %v278 = vunpack.c.l.b16 %v197
      %v279 = vunpack.c.l.b16 %v198
      %v280 = vunpack.c.l.b16 %v199
      %v281 = vpack.c.b16 %v273, %v272
      %v282 = vpack.c.b16 %v275, %v274
      %v283 = vpack.c.b16 %v277, %v276
      %v284 = vpack.c.b16 %v279, %v278
      %v285 = vpack.c.b16 %v280, %v280
      %vm290 = vcmask 556032
      %v292 = vsel %vm290, %v255, 0
      %v295 = vsel %vm290, %v256, 0
      %v298 = vsel %vm290, %v257, 0
      %v301 = vsel %vm290, %v258, 0
      %v304 = vsel %vm290, %v259, 0
      %v307 = vsel %vm290, %v260, 0
      %v310 = vsel %vm290, %v261, 0
      %v313 = vsel %vm290, %v262, 0
      %vm315 = vcmask 1041408
      %v317 = vsel %vm315, %v285, 0
      %319 = vmatprep.subr.bf16.mxu0 0
      %320 = vmatpush1.bf16.msra.mxu0 %v281
      %321 = vmatprep.subr.bf16.mxu0 0
      %322 = vmatpush1.bf16.msra.mxu0 %v282
      %323 = vmatprep.subr.bf16.mxu0 0
      %324 = vmatpush1.bf16.msra.mxu0 %v283
      %325 = vmatprep.subr.bf16.mxu0 0
      %326 = vmatpush1.bf16.msra.mxu0 %v284
      %327 = vmatprep.subr.bf16.mxu0 0
      %328 = vmatpush1.bf16.msra.mxu0 %v317
      %329 = vmatprep.subr.bf16.mxu0 0
      %330 = vmatpush1.bf16.msra.mxu0 0
      %331 = vmatprep.subr.bf16.mxu0 0
      %332 = vmatpush1.bf16.msra.mxu0 0
      %333 = vmatprep.subr.bf16.mxu0 0
      %334 = vmatpush1.bf16.msra.mxu0 0
      %335 = vmatprep.subr.bf16.mxu0 0
      %336 = vmatpush1.bf16.msra.mxu0 0
      %337 = vmatprep.subr.bf16.mxu0 0
      %338 = vmatpush1.bf16.msra.mxu0 0
      %339 = vmatprep.subr.bf16.mxu0 0
      %340 = vmatpush1.bf16.msra.mxu0 0
      %341 = vmatprep.subr.bf16.mxu0 0
      %342 = vmatpush1.bf16.msra.mxu0 0
      %343 = vmatprep.subr.bf16.mxu0 0
      %344 = vmatpush1.bf16.msra.mxu0 0
      %345 = vmatprep.subr.bf16.mxu0 0
      %346 = vmatpush1.bf16.msra.mxu0 0
      %347 = vmatprep.subr.bf16.mxu0 0
      %348 = vmatpush1.bf16.msra.mxu0 0
      %349 = vmatprep.subr.bf16.mxu0 0
      %350 = vmatpush1.bf16.msra.mxu0 0
      %351 = vmatprep.mubr.bf16.mxu0 0
      %352 = vmatmul.mubr.bf16.gmra.mrb[0].mxu0 %v292
      %v353 = vpop.f32.mrb[0].mxu0
      %v354 = vadd.f32 %v221, %v353
      %v355 = vpop.f32.mrb[0].mxu0
      %v356 = vpop.f32.mrb[0].mxu0
      %v357 = vadd.f32 %v221, %v356
      %v358 = vpop.f32.mrb[0].mxu0
      %359 = vmatprep.mubr.bf16.mxu0 0
      %360 = vmatmul.mubr.bf16.gmra.mrb[0].mxu0 %v295
      %v361 = vpop.f32.mrb[0].mxu0
      %v362 = vadd.f32 %v221, %v361
      %v363 = vpop.f32.mrb[0].mxu0
      %v364 = vpop.f32.mrb[0].mxu0
      %v365 = vadd.f32 %v221, %v364
      %v366 = vpop.f32.mrb[0].mxu0
      %367 = vmatprep.mubr.bf16.mxu0 0
      %368 = vmatmul.mubr.bf16.gmra.mrb[0].mxu0 %v298
      %v369 = vpop.f32.mrb[0].mxu0
      %v370 = vadd.f32 %v221, %v369
      %v371 = vpop.f32.mrb[0].mxu0
      %v372 = vpop.f32.mrb[0].mxu0
      %v373 = vadd.f32 %v221, %v372
      %v374 = vpop.f32.mrb[0].mxu0
      %375 = vmatprep.mubr.bf16.mxu0 0
      %376 = vmatmul.mubr.bf16.gmra.mrb[0].mxu0 %v301
      %v377 = vpop.f32.mrb[0].mxu0
      %v378 = vadd.f32 %v221, %v377
      %v379 = vpop.f32.mrb[0].mxu0
      %v380 = vpop.f32.mrb[0].mxu0
      %v381 = vadd.f32 %v221, %v380
      %v382 = vpop.f32.mrb[0].mxu0
      %383 = vmatprep.mubr.bf16.mxu0 0
      %384 = vmatmul.mubr.bf16.gmra.mrb[0].mxu0 %v304
      %v385 = vpop.f32.mrb[0].mxu0
      %v386 = vadd.f32 %v221, %v385
      %v387 = vpop.f32.mrb[0].mxu0
      %v388 = vpop.f32.mrb[0].mxu0
      %v389 = vadd.f32 %v221, %v388
      %v390 = vpop.f32.mrb[0].mxu0
      %391 = vmatprep.mubr.bf16.mxu0 0
      %392 = vmatmul.mubr.bf16.gmra.mrb[0].mxu0 %v307
      %v393 = vpop.f32.mrb[0].mxu0
      %v394 = vadd.f32 %v221, %v393
      %v395 = vpop.f32.mrb[0].mxu0
      %v396 = vpop.f32.mrb[0].mxu0
      %v397 = vadd.f32 %v221, %v396
      %v398 = vpop.f32.mrb[0].mxu0
      %399 = vmatprep.mubr.bf16.mxu0 0
      %400 = vmatmul.mubr.bf16.gmra.mrb[0].mxu0 %v310
      %v401 = vpop.f32.mrb[0].mxu0
      %v402 = vadd.f32 %v221, %v401
      %v403 = vpop.f32.mrb[0].mxu0
      %v404 = vpop.f32.mrb[0].mxu0
      %v405 = vadd.f32 %v221, %v404
      %v406 = vpop.f32.mrb[0].mxu0
      %407 = vmatprep.mubr.bf16.mxu0 0
      %408 = vmatmul.mubr.bf16.gmra.mrb[0].mxu0 %v313
      %v409 = vpop.f32.mrb[0].mxu0
      %v410 = vadd.f32 %v221, %v409
      %v411 = vpop.f32.mrb[0].mxu0
      %v412 = vpop.f32.mrb[0].mxu0
      %v413 = vadd.f32 %v221, %v412
      %v414 = vpop.f32.mrb[0].mxu0
      %415 = vdwg.mxu0
      %v416 = vmax.f32 %v354, 0.0
      %v417 = vmax.f32 %v357, 0.0
      %v418 = vmax.f32 %v362, 0.0
      %v419 = vmax.f32 %v365, 0.0
      %v420 = vmax.f32 %v370, 0.0
      %v421 = vmax.f32 %v373, 0.0
      %v422 = vmax.f32 %v378, 0.0
      %v423 = vmax.f32 %v381, 0.0
      %v424 = vmax.f32 %v386, 0.0
      %v425 = vmax.f32 %v389, 0.0
      %v426 = vmax.f32 %v394, 0.0
      %v427 = vmax.f32 %v397, 0.0
      %v428 = vmax.f32 %v402, 0.0
      %v429 = vmax.f32 %v405, 0.0
      %v430 = vmax.f32 %v410, 0.0
      %v431 = vmax.f32 %v413, 0.0
      %v432 = vpack.c.bf16 %v417, %v416
      %v433 = vpack.c.bf16 %v419, %v418
      %v434 = vpack.c.bf16 %v421, %v420
      %v435 = vpack.c.bf16 %v423, %v422
      %v436 = vpack.c.bf16 %v425, %v424
      %v437 = vpack.c.bf16 %v427, %v426
      %v438 = vpack.c.bf16 %v429, %v428
      %v439 = vpack.c.bf16 %v431, %v430
      %v448 = vunpack.c.l.b16 %v175
      %v449 = vunpack.c.l.b16 %v176
      %v450 = vunpack.c.l.b16 %v177
      %v451 = vunpack.c.l.b16 %v178
      %v452 = vunpack.c.l.b16 %v179
      %v453 = vunpack.c.l.b16 %v180
      %v454 = vunpack.c.l.b16 %v181
      %v455 = vunpack.c.l.b16 %v182
      %v456 = vpack.c.b16 %v449, %v448
      %v457 = vpack.c.b16 %v451, %v450
      %v458 = vpack.c.b16 %v453, %v452
      %v459 = vpack.c.b16 %v455, %v454
      %vm464 = vcmask 523264
      %v466 = vsel %vm464, %v432, 0
      %v469 = vsel %vm464, %v433, 0
      %v472 = vsel %vm464, %v434, 0
      %v475 = vsel %vm464, %v435, 0
      %v478 = vsel %vm464, %v436, 0
      %v481 = vsel %vm464, %v437, 0
      %v484 = vsel %vm464, %v438, 0
      %v487 = vsel %vm464, %v439, 0
      %489 = vmatprep.subr.bf16.mxu0 0
      %490 = vmatpush1.bf16.msra.mxu0 %v456
      %491 = vmatprep.subr.bf16.mxu0 0
      %492 = vmatpush1.bf16.msra.mxu0 %v457
      %493 = vmatprep.subr.bf16.mxu0 0
      %494 = vmatpush1.bf16.msra.mxu0 %v458
      %495 = vmatprep.subr.bf16.mxu0 0
      %496 = vmatpush1.bf16.msra.mxu0 %v459
      %497 = vmatprep.subr.bf16.mxu0 0
      %498 = vmatpush1.bf16.msra.mxu0 0
      %499 = vmatprep.subr.bf16.mxu0 0
      %500 = vmatpush1.bf16.msra.mxu0 0
      %501 = vmatprep.subr.bf16.mxu0 0
      %502 = vmatpush1.bf16.msra.mxu0 0
      %503 = vmatprep.subr.bf16.mxu0 0
      %504 = vmatpush1.bf16.msra.mxu0 0
      %505 = vmatprep.subr.bf16.mxu0 0
      %506 = vmatpush1.bf16.msra.mxu0 0
      %507 = vmatprep.subr.bf16.mxu0 0
      %508 = vmatpush1.bf16.msra.mxu0 0
      %509 = vmatprep.subr.bf16.mxu0 0
      %510 = vmatpush1.bf16.msra.mxu0 0
      %511 = vmatprep.subr.bf16.mxu0 0
      %512 = vmatpush1.bf16.msra.mxu0 0
      %513 = vmatprep.subr.bf16.mxu0 0
      %514 = vmatpush1.bf16.msra.mxu0 0
      %515 = vmatprep.subr.bf16.mxu0 0
      %516 = vmatpush1.bf16.msra.mxu0 0
      %517 = vmatprep.subr.bf16.mxu0 0
      %518 = vmatpush1.bf16.msra.mxu0 0
      %519 = vmatprep.subr.bf16.mxu0 0
      %520 = vmatpush1.bf16.msra.mxu0 0
      %521 = vmatprep.mubr.bf16.mxu0 0
      %522 = vmatmul.mubr.bf16.gmra.mrb[0].mxu0 %v466
      %v523 = vpop.f32.mrb[0].mxu0
      %v524 = vadd.f32 0.0, %v523
      %v525 = vpop.f32.mrb[0].mxu0
      %v526 = vpop.f32.mrb[0].mxu0
      %v527 = vadd.f32 0.0, %v526
      %v528 = vpop.f32.mrb[0].mxu0
      %529 = vmatprep.mubr.bf16.mxu0 0
      %530 = vmatmul.mubr.bf16.gmra.mrb[0].mxu0 %v469
      %v531 = vpop.f32.mrb[0].mxu0
      %v532 = vadd.f32 0.0, %v531
      %v533 = vpop.f32.mrb[0].mxu0
      %v534 = vpop.f32.mrb[0].mxu0
      %v535 = vadd.f32 0.0, %v534
      %v536 = vpop.f32.mrb[0].mxu0
      %537 = vmatprep.mubr.bf16.mxu0 0
      %538 = vmatmul.mubr.bf16.gmra.mrb[0].mxu0 %v472
      %v539 = vpop.f32.mrb[0].mxu0
      %v540 = vadd.f32 0.0, %v539
      %v541 = vpop.f32.mrb[0].mxu0
      %v542 = vpop.f32.mrb[0].mxu0
      %v543 = vadd.f32 0.0, %v542
      %v544 = vpop.f32.mrb[0].mxu0
      %545 = vmatprep.mubr.bf16.mxu0 0
      %546 = vmatmul.mubr.bf16.gmra.mrb[0].mxu0 %v475
      %v547 = vpop.f32.mrb[0].mxu0
      %v548 = vadd.f32 0.0, %v547
      %v549 = vpop.f32.mrb[0].mxu0
      %v550 = vpop.f32.mrb[0].mxu0
      %v551 = vadd.f32 0.0, %v550
      %v552 = vpop.f32.mrb[0].mxu0
      %553 = vmatprep.mubr.bf16.mxu0 0
      %554 = vmatmul.mubr.bf16.gmra.mrb[0].mxu0 %v478
      %v555 = vpop.f32.mrb[0].mxu0
      %v556 = vadd.f32 0.0, %v555
      %v557 = vpop.f32.mrb[0].mxu0
      %v558 = vpop.f32.mrb[0].mxu0
      %v559 = vadd.f32 0.0, %v558
      %v560 = vpop.f32.mrb[0].mxu0
      %561 = vmatprep.mubr.bf16.mxu0 0
      %562 = vmatmul.mubr.bf16.gmra.mrb[0].mxu0 %v481
      %v563 = vpop.f32.mrb[0].mxu0
      %v564 = vadd.f32 0.0, %v563
      %v565 = vpop.f32.mrb[0].mxu0
      %v566 = vpop.f32.mrb[0].mxu0
      %v567 = vadd.f32 0.0, %v566
      %v568 = vpop.f32.mrb[0].mxu0
      %569 = vmatprep.mubr.bf16.mxu0 0
      %570 = vmatmul.mubr.bf16.gmra.mrb[0].mxu0 %v484
      %v571 = vpop.f32.mrb[0].mxu0
      %v572 = vadd.f32 0.0, %v571
      %v573 = vpop.f32.mrb[0].mxu0
      %v574 = vpop.f32.mrb[0].mxu0
      %v575 = vadd.f32 0.0, %v574
      %v576 = vpop.f32.mrb[0].mxu0
      %577 = vmatprep.mubr.bf16.mxu0 0
      %578 = vmatmul.mubr.bf16.gmra.mrb[0].mxu0 %v487
      %v579 = vpop.f32.mrb[0].mxu0
      %v580 = vadd.f32 0.0, %v579
      %v581 = vpop.f32.mrb[0].mxu0
      %v582 = vpop.f32.mrb[0].mxu0
      %v583 = vadd.f32 0.0, %v582
      %v584 = vpop.f32.mrb[0].mxu0
      %585 = vdwg.mxu0
      %v586 = vmax.f32 %v524, 0.0
      %v587 = vmax.f32 %v527, 0.0
      %v588 = vmax.f32 %v532, 0.0
      %v589 = vmax.f32 %v535, 0.0
      %v590 = vmax.f32 %v540, 0.0
      %v591 = vmax.f32 %v543, 0.0
      %v592 = vmax.f32 %v548, 0.0
      %v593 = vmax.f32 %v551, 0.0
      %v594 = vmax.f32 %v556, 0.0
      %v595 = vmax.f32 %v559, 0.0
      %v596 = vmax.f32 %v564, 0.0
      %v597 = vmax.f32 %v567, 0.0
      %v598 = vmax.f32 %v572, 0.0
      %v599 = vmax.f32 %v575, 0.0
      %v600 = vmax.f32 %v580, 0.0
      %v601 = vmax.f32 %v583, 0.0
      %v602 = vpack.c.bf16 %v587, %v586
      %v603 = vpack.c.bf16 %v589, %v588
      %v604 = vpack.c.bf16 %v591, %v590
      %v605 = vpack.c.bf16 %v593, %v592
      %v606 = vpack.c.bf16 %v595, %v594
      %v607 = vpack.c.bf16 %v597, %v596
      %v608 = vpack.c.bf16 %v599, %v598
      %v609 = vpack.c.bf16 %v601, %v600
      %v618 = vunpack.c.l.b16 %v183
      %v619 = vunpack.c.l.b16 %v184
      %v620 = vunpack.c.l.b16 %v185
      %v621 = vunpack.c.l.b16 %v186
      %v622 = vunpack.c.l.b16 %v187
      %v623 = vunpack.c.l.b16 %v188
      %v624 = vunpack.c.l.b16 %v189
      %v625 = vunpack.c.l.b16 %v190
      %v626 = vpack.c.b16 %v619, %v618
      %v627 = vpack.c.b16 %v621, %v620
      %v628 = vpack.c.b16 %v623, %v622
      %v629 = vpack.c.b16 %v625, %v624
      %v635 = vsel %vm464, %v602, 0
      %v638 = vsel %vm464, %v603, 0
      %v641 = vsel %vm464, %v604, 0
      %v644 = vsel %vm464, %v605, 0
      %v647 = vsel %vm464, %v606, 0
      %v650 = vsel %vm464, %v607, 0
      %v653 = vsel %vm464, %v608, 0
      %v656 = vsel %vm464, %v609, 0
      %658 = vmatprep.subr.bf16.mxu0 0
      %659 = vmatpush1.bf16.msra.mxu0 %v626
      %660 = vmatprep.subr.bf16.mxu0 0
      %661 = vmatpush1.bf16.msra.mxu0 %v627
      %662 = vmatprep.subr.bf16.mxu0 0
      %663 = vmatpush1.bf16.msra.mxu0 %v628
      %664 = vmatprep.subr.bf16.mxu0 0
      %665 = vmatpush1.bf16.msra.mxu0 %v629
      %666 = vmatprep.subr.bf16.mxu0 0
      %667 = vmatpush1.bf16.msra.mxu0 0
      %668 = vmatprep.subr.bf16.mxu0 0
      %669 = vmatpush1.bf16.msra.mxu0 0
      %670 = vmatprep.subr.bf16.mxu0 0
      %671 = vmatpush1.bf16.msra.mxu0 0
      %672 = vmatprep.subr.bf16.mxu0 0
      %673 = vmatpush1.bf16.msra.mxu0 0
      %674 = vmatprep.subr.bf16.mxu0 0
      %675 = vmatpush1.bf16.msra.mxu0 0
      %676 = vmatprep.subr.bf16.mxu0 0
      %677 = vmatpush1.bf16.msra.mxu0 0
      %678 = vmatprep.subr.bf16.mxu0 0
      %679 = vmatpush1.bf16.msra.mxu0 0
      %680 = vmatprep.subr.bf16.mxu0 0
      %681 = vmatpush1.bf16.msra.mxu0 0
      %682 = vmatprep.subr.bf16.mxu0 0
      %683 = vmatpush1.bf16.msra.mxu0 0
      %684 = vmatprep.subr.bf16.mxu0 0
      %685 = vmatpush1.bf16.msra.mxu0 0
      %686 = vmatprep.subr.bf16.mxu0 0
      %687 = vmatpush1.bf16.msra.mxu0 0
      %688 = vmatprep.subr.bf16.mxu0 0
      %689 = vmatpush1.bf16.msra.mxu0 0
      %690 = vmatprep.mubr.bf16.mxu0 0
      %691 = vmatmul.mubr.bf16.gmra.mrb[0].mxu0 %v635
      %v692 = vpop.f32.mrb[0].mxu0
      %v693 = vadd.f32 0.0, %v692
      %v694 = vpop.f32.mrb[0].mxu0
      %v695 = vpop.f32.mrb[0].mxu0
      %v696 = vadd.f32 0.0, %v695
      %v697 = vpop.f32.mrb[0].mxu0
      %698 = vmatprep.mubr.bf16.mxu0 0
      %699 = vmatmul.mubr.bf16.gmra.mrb[0].mxu0 %v638
      %v700 = vpop.f32.mrb[0].mxu0
      %v701 = vadd.f32 0.0, %v700
      %v702 = vpop.f32.mrb[0].mxu0
      %v703 = vpop.f32.mrb[0].mxu0
      %v704 = vadd.f32 0.0, %v703
      %v705 = vpop.f32.mrb[0].mxu0
      %706 = vmatprep.mubr.bf16.mxu0 0
      %707 = vmatmul.mubr.bf16.gmra.mrb[0].mxu0 %v641
      %v708 = vpop.f32.mrb[0].mxu0
      %v709 = vadd.f32 0.0, %v708
      %v710 = vpop.f32.mrb[0].mxu0
      %v711 = vpop.f32.mrb[0].mxu0
      %v712 = vadd.f32 0.0, %v711
      %v713 = vpop.f32.mrb[0].mxu0
      %714 = vmatprep.mubr.bf16.mxu0 0
      %715 = vmatmul.mubr.bf16.gmra.mrb[0].mxu0 %v644
      %v716 = vpop.f32.mrb[0].mxu0
      %v717 = vadd.f32 0.0, %v716
      %v718 = vpop.f32.mrb[0].mxu0
      %v719 = vpop.f32.mrb[0].mxu0
      %v720 = vadd.f32 0.0, %v719
      %v721 = vpop.f32.mrb[0].mxu0
      %722 = vmatprep.mubr.bf16.mxu0 0
      %723 = vmatmul.mubr.bf16.gmra.mrb[0].mxu0 %v647
      %v724 = vpop.f32.mrb[0].mxu0
      %v725 = vadd.f32 0.0, %v724
      %v726 = vpop.f32.mrb[0].mxu0
      %v727 = vpop.f32.mrb[0].mxu0
      %v728 = vadd.f32 0.0, %v727
      %v729 = vpop.f32.mrb[0].mxu0
      %730 = vmatprep.mubr.bf16.mxu0 0
      %731 = vmatmul.mubr.bf16.gmra.mrb[0].mxu0 %v650
      %v732 = vpop.f32.mrb[0].mxu0
      %v733 = vadd.f32 0.0, %v732
      %v734 = vpop.f32.mrb[0].mxu0
      %v735 = vpop.f32.mrb[0].mxu0
      %v736 = vadd.f32 0.0, %v735
      %v737 = vpop.f32.mrb[0].mxu0
      %738 = vmatprep.mubr.bf16.mxu0 0
      %739 = vmatmul.mubr.bf16.gmra.mrb[0].mxu0 %v653
      %v740 = vpop.f32.mrb[0].mxu0
      %v741 = vadd.f32 0.0, %v740
      %v742 = vpop.f32.mrb[0].mxu0
      %v743 = vpop.f32.mrb[0].mxu0
      %v744 = vadd.f32 0.0, %v743
      %v745 = vpop.f32.mrb[0].mxu0
      %746 = vmatprep.mubr.bf16.mxu0 0
      %747 = vmatmul.mubr.bf16.gmra.mrb[0].mxu0 %v656
      %v748 = vpop.f32.mrb[0].mxu0
      %v749 = vadd.f32 0.0, %v748
      %v750 = vpop.f32.mrb[0].mxu0
      %v751 = vpop.f32.mrb[0].mxu0
      %v752 = vadd.f32 0.0, %v751
      %v753 = vpop.f32.mrb[0].mxu0
      %754 = vdwg.mxu0
      %vm755 = vcmask 48128
      %756 = vst.msk [vmem:[%s172] sm:$0xff] %vm755, %v693
      %757 = vst.msk [vmem:[%s172 + $0x8] sm:$0xff] %vm755, %v696
      %758 = vst.msk [vmem:[%s172 + $0x10] sm:$0xff] %vm755, %v701
      %759 = vst.msk [vmem:[%s172 + $0x18] sm:$0xff] %vm755, %v704
      %760 = vst.msk [vmem:[%s172 + $0x20] sm:$0xff] %vm755, %v709
      %761 = vst.msk [vmem:[%s172 + $0x28] sm:$0xff] %vm755, %v712
      %762 = vst.msk [vmem:[%s172 + $0x30] sm:$0xff] %vm755, %v717
      %763 = vst.msk [vmem:[%s172 + $0x38] sm:$0xff] %vm755, %v720
      %764 = vst.msk [vmem:[%s172 + $0x40] sm:$0xff] %vm755, %v725
      %765 = vst.msk [vmem:[%s172 + $0x48] sm:$0xff] %vm755, %v728
      %766 = vst.msk [vmem:[%s172 + $0x50] sm:$0xff] %vm755, %v733
      %767 = vst.msk [vmem:[%s172 + $0x58] sm:$0xff] %vm755, %v736
      %768 = vst.msk [vmem:[%s172 + $0x60] sm:$0xff] %vm755, %v741
      %769 = vst.msk [vmem:[%s172 + $0x68] sm:$0xff] %vm755, %v744
      %770 = vst.msk [vmem:[%s172 + $0x70] sm:$0xff] %vm755, %v749
      %771 = vst.msk [vmem:[%s172 + $0x78] sm:$0xff] %vm755, %v752
      %s772 = smul.u32 16, %s14
      %p773 = scmp.lt.s32.totalorder %s772, 31
      %s774 = scalar_select %p773, %s772, 31
      %s775 = smul.addr %s774, 8
      %s776 = scalar_lea.vmem %s3, %s775
      // Predicated region
      $region33: #{mouth_motion_forward.3} parent=31 // pred_check
        %p777 = pneg %p100
      $region34: #{mouth_motion_forward.3} parent=31 // pred_check_branch
        %779 = sbr.rel (%p777) target = $region36
      $region35: #{mouth_motion_forward.3} parent=31 // pred_region
        %s780 = smul.u32 16, %s14
      $region36: #{mouth_motion_forward.3} parent=31 // pred_fallthru
        _
    $region32: #{mouth_motion_forward.3} parent=5 // pred_fallthru
      _
    %p781 = scmp.le.s32.totalorder 2, %s9
    // Predicated region
    $region37: #{mouth_motion_forward.3} parent=5 // pred_check
      %p782 = pneg %p781
    $region38: #{mouth_motion_forward.3} parent=5 // pred_check_branch
      %784 = sbr.rel (%p782) target = $region40
    $region39: #{mouth_motion_forward.3} parent=5 // pred_region
      %s785 = ssub.s32 %s9, 2
      // Predicated region
      $region41: #{mouth_motion_forward.3} parent=39 // pred_check
        %p786 = pneg %p106
      $region42: #{mouth_motion_forward.3} parent=39 // pred_check_branch
        %788 = sbr.rel (%p786) target = $region44
      $region43: #{mouth_motion_forward.3} parent=39 // pred_region
        %s789 = smul.u32 16, %s15
        %p790 = scmp.lt.s32.totalorder %s789, 31
        %s791 = scalar_select %p790, %s789, 31
        %s792 = smul.addr %s791, 8
        %s793 = scalar_lea.vmem %s3, %s792
      $region44: #{mouth_motion_forward.3} parent=39 // pred_fallthru
        _
    $region40: #{mouth_motion_forward.3} parent=5 // pred_fallthru
      _
  $region6: #{mouth_motion_forward.3} parent=0 // loop_footer
    %s13 = sadd.s32 1, %s9
  $region7: #{mouth_motion_forward.3} parent=0 // loop_footer_branch
    %8 = sbr.rel target = $region3
  $region8: #{mouth_motion_forward.3} parent=0 // loop_exit
    _

</llo_original>
